<compile_context>
chip_gen: v7x
topology: tpu7x:2x2x1
jax: 0.10.0
libtpu: 0.0.40
codegen_flags: <defaults>
</compile_context>

<pallas_src>
import jax
import jax.numpy as jnp
from jax import lax
from jax.experimental import pallas as pl
from jax.experimental.pallas import tpu as pltpu

EPS = 1e-5
_VMEM_LIMIT = 32 * 1024 * 1024      # explicit scoped-VMEM budget (>= working set on all gens)
_TM_TARGET = 512                    # pixel-tile rows; ~85% HBM roofline, fits v7x 64 MiB VMEM


def _round_up(x, m):
    return ((x + m - 1) // m) * m


def _make_kernels(tm, m_true, need_mask):
    """Build the three pixel-tiled kernels (closures over static tile params)."""

    def _sums(h, i):
        # fused sum / sum-of-squares reduction over the pixel rows of this tile,
        # masking rows past the true M when the pixel axis was padded.
        if need_mask:
            rows = lax.broadcasted_iota(jnp.int32, (tm, 1), 0) + i * tm
            m = (rows < m_true).astype(h.dtype)
            hm = h * m
            return (jnp.sum(hm, axis=0, keepdims=True),
                    jnp.sum(h * hm, axis=0, keepdims=True))
        return (jnp.sum(h, axis=0, keepdims=True),
                jnp.sum(h * h, axis=0, keepdims=True))

    # pass 1: accumulate BN1 stats of h1 = x @ Wf + bf   (tap-expanded channels)
    def stats1_kernel(x_ref, wf_ref, bf_ref, sum_ref, sq_ref):
        i = pl.program_id(0)

        @pl.when(i == 0)
        def _():
            sum_ref[...] = jnp.zeros_like(sum_ref)
            sq_ref[...] = jnp.zeros_like(sq_ref)

        h1 = jnp.dot(x_ref[...], wf_ref[...],
                     preferred_element_type=jnp.float32) + bf_ref[...]
        s, ss = _sums(h1, i)
        sum_ref[...] += s
        sq_ref[...] += ss

    # pass 2: accumulate BN2 stats of h2 = relu(bn1(h1)) @ W2_blockdiag + b2
    def stats2_kernel(x_ref, wf_ref, bf_ref, sc1_ref, sh1_ref, w2_ref, b2_ref,
                      sum_ref, sq_ref):
        i = pl.program_id(0)

        @pl.when(i == 0)
        def _():
            sum_ref[...] = jnp.zeros_like(sum_ref)
            sq_ref[...] = jnp.zeros_like(sq_ref)

        h1 = jnp.dot(x_ref[...], wf_ref[...],
                     preferred_element_type=jnp.float32) + bf_ref[...]
        a1 = jnp.maximum(h1 * sc1_ref[...] + sh1_ref[...], 0.0)
        h2 = jnp.dot(a1, w2_ref[...],
                     preferred_element_type=jnp.float32) + b2_ref[...]
        s, ss = _sums(h2, i)
        sum_ref[...] += s
        sq_ref[...] += ss

    # pass 3: recompute chain, apply BN2 + ReLU, lane-dense [tm, 8*Cout] store
    def final_kernel(x_ref, wf_ref, bf_ref, sc1_ref, sh1_ref, w2_ref, b2_ref,
                     sc2_ref, sh2_ref, o_ref):
        h1 = jnp.dot(x_ref[...], wf_ref[...],
                     preferred_element_type=jnp.float32) + bf_ref[...]
        a1 = jnp.maximum(h1 * sc1_ref[...] + sh1_ref[...], 0.0)
        h2 = jnp.dot(a1, w2_ref[...],
                     preferred_element_type=jnp.float32) + b2_ref[...]
        o_ref[...] = jnp.maximum(h2 * sc2_ref[...] + sh2_ref[...], 0.0).astype(o_ref.dtype)

    return stats1_kernel, stats2_kernel, final_kernel


def decoder_forward(x_ncdhw, params, tm_target=_TM_TARGET):
    """x_ncdhw: [N, Cin, D, H, W] f32 -> [N, Cout, 2D, 2H, 2W] f32."""
    N, Cin, D, H, W = x_ncdhw.shape
    Cout = params["w1"].shape[1]
    C8 = 8 * Cout
    M = N * D * H * W

    # NCDHW -> channels-last, pixel-flattened [M, Cin]
    x_flat = jnp.transpose(x_ncdhw, (0, 2, 3, 4, 1)).reshape(M, Cin)

    # pixel tiling (grid over M); pad M to a multiple of the tile if needed
    tm = min(tm_target, _round_up(M, 8))
    m_pad = _round_up(M, tm)
    need_mask = (m_pad != M)
    if need_mask:
        x_flat = jnp.pad(x_flat, ((0, m_pad - M), (0, 0)))
    grid = (m_pad // tm,)

    # --- algebraic fusion: ConvTranspose3d(k=2,s=2) o Conv1x1  -----------------
    # Wf[c, t*Cout+j] = sum_o W_up[c, o, t] * W1[o, j];  bias is tap-independent.
    w_up_t = jnp.transpose(params["w_up"], (0, 2, 3, 4, 1)).reshape(Cin, 8, Cin)
    wf = jnp.einsum("cto,oj->ctj", w_up_t, params["w1"]).reshape(Cin, C8)
    bf = params["b_up"] @ params["w1"] + params["b1"]          # [Cout]
    bf_t = jnp.tile(bf, 8)[None, :]                             # [1, 8*Cout]

    # conv2 as a block-diagonal matmul in the tap-expanded layout
    w2_bd = jnp.kron(jnp.eye(8, dtype=params["w2"].dtype), params["w2"])  # [8Cout, 8Cout]
    b2_t = jnp.tile(params["b2"], 8)[None, :]

    stats1_kernel, stats2_kernel, final_kernel = _make_kernels(tm, M, need_mask)

    x_spec = pl.BlockSpec((tm, Cin), lambda i: (i, 0))

    def const_spec(shape):                 # weights / affine params: VMEM-resident
        return pl.BlockSpec(shape, lambda i: (0, 0))

    stat_spec = pl.BlockSpec((1, C8), lambda i: (0, 0))          # resident accumulator
    stat_shape = jax.ShapeDtypeStruct((1, C8), jnp.float32)

    cp_red = pltpu.CompilerParams(dimension_semantics=("arbitrary",),
                                  vmem_limit_bytes=_VMEM_LIMIT)
    cp_par = pltpu.CompilerParams(dimension_semantics=("parallel",),
                                  vmem_limit_bytes=_VMEM_LIMIT)

    n_pix = jnp.float32(8 * M)   # BN counts all output voxels = 8 * input voxels

    # ---- pass 1: BN1 batch statistics ----------------------------------------
    s1, ss1 = pl.pallas_call(
        stats1_kernel,
        out_shape=(stat_shape, stat_shape),
        grid=grid,
        in_specs=[x_spec, const_spec((Cin, C8)), const_spec((1, C8))],
        out_specs=(stat_spec, stat_spec),
        compiler_params=cp_red,
    )(x_flat, wf, bf_t)

    mu1 = s1.reshape(8, Cout).sum(0) / n_pix
    var1 = jnp.maximum(ss1.reshape(8, Cout).sum(0) / n_pix - mu1 * mu1, 0.0)
    sc1 = params["g1"] * lax.rsqrt(var1 + EPS)
    sh1 = params["be1"] - mu1 * sc1
    sc1_t, sh1_t = jnp.tile(sc1, 8)[None, :], jnp.tile(sh1, 8)[None, :]

    # ---- pass 2: BN2 batch statistics ----------------------------------------
    s2, ss2 = pl.pallas_call(
        stats2_kernel,
        out_shape=(stat_shape, stat_shape),
        grid=grid,
        in_specs=[x_spec, const_spec((Cin, C8)), const_spec((1, C8)),
                  const_spec((1, C8)), const_spec((1, C8)),
                  const_spec((C8, C8)), const_spec((1, C8))],
        out_specs=(stat_spec, stat_spec),
        compiler_params=cp_red,
    )(x_flat, wf, bf_t, sc1_t, sh1_t, w2_bd, b2_t)

    mu2 = s2.reshape(8, Cout).sum(0) / n_pix
    var2 = jnp.maximum(ss2.reshape(8, Cout).sum(0) / n_pix - mu2 * mu2, 0.0)
    sc2 = params["g2"] * lax.rsqrt(var2 + EPS)
    sh2 = params["be2"] - mu2 * sc2
    sc2_t, sh2_t = jnp.tile(sc2, 8)[None, :], jnp.tile(sh2, 8)[None, :]

    # ---- pass 3: apply BN2 + ReLU, lane-dense output --------------------------
    out_flat = pl.pallas_call(
        final_kernel,
        out_shape=jax.ShapeDtypeStruct((m_pad, C8), jnp.float32),
        grid=grid,
        in_specs=[x_spec, const_spec((Cin, C8)), const_spec((1, C8)),
                  const_spec((1, C8)), const_spec((1, C8)),
                  const_spec((C8, C8)), const_spec((1, C8)),
                  const_spec((1, C8)), const_spec((1, C8))],
        out_specs=pl.BlockSpec((tm, C8), lambda i: (i, 0)),
        compiler_params=cp_par,
    )(x_flat, wf, bf_t, sc1_t, sh1_t, w2_bd, b2_t, sc2_t, sh2_t)

    # tap -> spatial scatter happens once, on the final output, in XLA
    out = out_flat[:M].reshape(N, D, H, W, 2, 2, 2, Cout)
    out = jnp.transpose(out, (0, 7, 1, 4, 2, 5, 3, 6))   # N, Cout, D, kd, H, kh, W, kw
    return out.reshape(N, Cout, 2 * D, 2 * H, 2 * W)

    # TODO(synk): on v6e/v7x, streaming x as bf16 (keeping f32 accum) would shave
    # the small input-read cost, but is skipped here to keep 1e-4 f32 parity.


# ---------------------------------------------------------------------------
# Pure-JAX reference (same math, no Pallas) used for a correctness check.
# ---------------------------------------------------------------------------
def decoder_reference(x, p):
    N, Cin, D, H, W = x.shape
    y = jnp.einsum("ncdhw,coijk->nodihjwk", x, p["w_up"])
    up = y.reshape(N, Cin, 2 * D, 2 * H, 2 * W) + p["b_up"][None, :, None, None, None]

    def bn_relu(h, g, b):
        mu = jnp.mean(h, axis=(0, 2, 3, 4), keepdims=True)
        var = jnp.mean(jnp.square(h - mu), axis=(0, 2, 3, 4), keepdims=True)
        gn = g[None, :, None, None, None]
        bn = b[None, :, None, None, None]
        return jnp.maximum(gn * (h - mu) * jax.lax.rsqrt(var + EPS) + bn, 0.0)

    h1 = jnp.einsum("ncdhw,co->nodhw", up, p["w1"]) + p["b1"][None, :, None, None, None]
    a1 = bn_relu(h1, p["g1"], p["be1"])
    h2 = jnp.einsum("ncdhw,co->nodhw", a1, p["w2"]) + p["b2"][None, :, None, None, None]
    return bn_relu(h2, p["g2"], p["be2"])


def init_params(key, cin, cout):
    ks = jax.random.split(key, 8)
    s = 0.1
    return {
        # ConvTranspose3d weight: (in_channels, out_channels, kD, kH, kW)
        "w_up": jax.random.normal(ks[0], (cin, cin, 2, 2, 2), jnp.float32) * s,
        "b_up": jax.random.normal(ks[1], (cin,), jnp.float32) * s,
        # 1x1 convs stored as [C_in, C_out] (channels-last matmul form)
        "w1": jax.random.normal(ks[2], (cin, cout), jnp.float32) * s,
        "b1": jax.random.normal(ks[3], (cout,), jnp.float32) * s,
        "g1": 1.0 + jax.random.normal(ks[4], (cout,), jnp.float32) * s,
        "be1": jax.random.normal(ks[5], (cout,), jnp.float32) * s,
        "w2": jax.random.normal(ks[6], (cout, cout), jnp.float32) * s,
        "b2": jax.random.normal(ks[7], (cout,), jnp.float32) * s,
        "g2": jnp.ones((cout,), jnp.float32),
        "be2": jnp.zeros((cout,), jnp.float32),
    }


if __name__ == "__main__":
    key = jax.random.PRNGKey(0)
    kx, kp = jax.random.split(key)

    N, Cin, Cout, D, H, W = 2, 8, 16, 8, 8, 8
    x = jax.random.normal(kx, (N, Cin, D, H, W), jnp.float32)
    params = init_params(kp, Cin, Cout)

    fwd = jax.jit(decoder_forward)
    out = jax.block_until_ready(fwd(x, params))
    ref = jax.block_until_ready(decoder_reference(x, params))

    assert out.shape == (N, Cout, 2 * D, 2 * H, 2 * W), out.shape
    assert jnp.allclose(out, ref, rtol=1e-4, atol=1e-4), \
        float(jnp.max(jnp.abs(out - ref)))
    print("KERNEL_OK")
</pallas_src>

<mosaic_0001>
module attributes {stable_mosaic.version = 11 : i64} {
  func.func @stats1_kernel(%arg0: i32, %arg1: memref<512x8xf32, #tpu.memory_space<vmem>>, %arg2: memref<8x128xf32, #tpu.memory_space<vmem>>, %arg3: memref<1x128xf32, #tpu.memory_space<vmem>>, %arg4: memref<1x128xf32, #tpu.memory_space<vmem>>, %arg5: memref<1x128xf32, #tpu.memory_space<vmem>>) attributes {dimension_semantics = [#tpu.dimension_semantics<arbitrary>], iteration_bounds = array<i64: 2>, scalar_prefetch = 0 : i64, scratch_operands = 0 : i64, tpu.core_type = #tpu.core_type<tc>, window_params = [{transform_indices = @transform_0, window_bounds = array<i64: 512, 8>}, {pipeline_mode = #tpu.pipeline_mode<synchronous>, transform_indices = @transform_1, window_bounds = array<i64: 8, 128>}, {pipeline_mode = #tpu.pipeline_mode<synchronous>, transform_indices = @transform_2, window_bounds = array<i64: 1, 128>}, {pipeline_mode = #tpu.pipeline_mode<synchronous>, transform_indices = @transform_3, window_bounds = array<i64: 1, 128>}, {pipeline_mode = #tpu.pipeline_mode<synchronous>, transform_indices = @transform_4, window_bounds = array<i64: 1, 128>}]} {
    %c0_i32 = arith.constant 0 : i32
    %0 = arith.cmpi eq, %arg0, %c0_i32 : i32
    %1 = arith.extui %0 : i1 to i32
    %c0_i32_0 = arith.constant 0 : i32
    %2 = arith.cmpi ne, %1, %c0_i32_0 : i32
    scf.if %2 {
      %cst_16 = arith.constant 0.000000e+00 : f32
      %20 = vector.broadcast %cst_16 : f32 to vector<1x128xf32>
      %c0_17 = arith.constant 0 : index
      %c0_18 = arith.constant 0 : index
      %21 = vector.load %arg4[%c0_17, %c0_18] : memref<1x128xf32, #tpu.memory_space<vmem>>, vector<1x128xf32>
      tpu.vector_store %arg4[%c0_17, %c0_18], %20 {strides = array<i32>} : memref<1x128xf32, #tpu.memory_space<vmem>>, vector<1x128xf32>,
      %cst_19 = arith.constant 0.000000e+00 : f32
      %22 = vector.broadcast %cst_19 : f32 to vector<1x128xf32>
      %c0_20 = arith.constant 0 : index
      %c0_21 = arith.constant 0 : index
      %23 = vector.load %arg5[%c0_20, %c0_21] : memref<1x128xf32, #tpu.memory_space<vmem>>, vector<1x128xf32>
      tpu.vector_store %arg5[%c0_20, %c0_21], %22 {strides = array<i32>} : memref<1x128xf32, #tpu.memory_space<vmem>>, vector<1x128xf32>,
    } else {
    }
    %c0 = arith.constant 0 : index
    %c0_1 = arith.constant 0 : index
    %3 = vector.load %arg1[%c0, %c0_1] : memref<512x8xf32, #tpu.memory_space<vmem>>, vector<512x8xf32>
    %c0_2 = arith.constant 0 : index
    %c0_3 = arith.constant 0 : index
    %4 = vector.load %arg2[%c0_2, %c0_3] : memref<8x128xf32, #tpu.memory_space<vmem>>, vector<8x128xf32>
    %cst = arith.constant dense<0.000000e+00> : vector<512x128xf32>
    %5 = tpu.matmul %3, %4, %cst {dimension_numbers = #tpu.dot_dimension_numbers<[1], [0], [0], [1], [0, 0, 1, 1], [], []>} : vector<512x8xf32>, vector<8x128xf32>, vector<512x128xf32> -> vector<512x128xf32>
    %c0_4 = arith.constant 0 : index
    %c0_5 = arith.constant 0 : index
    %6 = vector.load %arg3[%c0_4, %c0_5] : memref<1x128xf32, #tpu.memory_space<vmem>>, vector<1x128xf32>
    %7 = vector.broadcast %6 : vector<1x128xf32> to vector<512x128xf32>
    %8 = arith.addf %5, %7 : vector<512x128xf32>
    %cst_6 = arith.constant dense<0.000000e+00> : vector<128xf32>
    %9 = vector.multi_reduction <add>, %8, %cst_6 [0] : vector<512x128xf32> to vector<128xf32>
    %10 = vector.shape_cast %9 : vector<128xf32> to vector<1x128xf32>
    %11 = arith.mulf %8, %8 : vector<512x128xf32>
    %cst_7 = arith.constant dense<0.000000e+00> : vector<128xf32>
    %12 = vector.multi_reduction <add>, %11, %cst_7 [0] : vector<512x128xf32> to vector<128xf32>
    %13 = vector.shape_cast %12 : vector<128xf32> to vector<1x128xf32>
    %c0_8 = arith.constant 0 : index
    %c0_9 = arith.constant 0 : index
    %14 = vector.load %arg4[%c0_8, %c0_9] : memref<1x128xf32, #tpu.memory_space<vmem>>, vector<1x128xf32>
    %15 = arith.addf %14, %10 : vector<1x128xf32>
    %c0_10 = arith.constant 0 : index
    %c0_11 = arith.constant 0 : index
    %16 = vector.load %arg4[%c0_10, %c0_11] : memref<1x128xf32, #tpu.memory_space<vmem>>, vector<1x128xf32>
    tpu.vector_store %arg4[%c0_10, %c0_11], %15 {strides = array<i32>} : memref<1x128xf32, #tpu.memory_space<vmem>>, vector<1x128xf32>,
    %c0_12 = arith.constant 0 : index
    %c0_13 = arith.constant 0 : index
    %17 = vector.load %arg5[%c0_12, %c0_13] : memref<1x128xf32, #tpu.memory_space<vmem>>, vector<1x128xf32>
    %18 = arith.addf %17, %13 : vector<1x128xf32>
    %c0_14 = arith.constant 0 : index
    %c0_15 = arith.constant 0 : index
    %19 = vector.load %arg5[%c0_14, %c0_15] : memref<1x128xf32, #tpu.memory_space<vmem>>, vector<1x128xf32>
    tpu.vector_store %arg5[%c0_14, %c0_15], %18 {strides = array<i32>} : memref<1x128xf32, #tpu.memory_space<vmem>>, vector<1x128xf32>,
    return
  }
  func.func @transform_0(%arg0: i32) -> (i32, i32) {
    %c0_i32 = arith.constant 0 : i32
    %c0_i32_0 = arith.constant 0 : i32
    return %arg0, %c0_i32 : i32, i32
  }
  func.func @transform_1(%arg0: i32) -> (i32, i32) {
    %c0_i32 = arith.constant 0 : i32
    %c0_i32_0 = arith.constant 0 : i32
    %c0_i32_1 = arith.constant 0 : i32
    return %c0_i32, %c0_i32_0 : i32, i32
  }
  func.func @transform_2(%arg0: i32) -> (i32, i32) {
    %c0_i32 = arith.constant 0 : i32
    %c0_i32_0 = arith.constant 0 : i32
    %c0_i32_1 = arith.constant 0 : i32
    return %c0_i32, %c0_i32_0 : i32, i32
  }
  func.func @transform_3(%arg0: i32) -> (i32, i32) {
    %c0_i32 = arith.constant 0 : i32
    %c0_i32_0 = arith.constant 0 : i32
    %c0_i32_1 = arith.constant 0 : i32
    return %c0_i32, %c0_i32_0 : i32, i32
  }
  func.func @transform_4(%arg0: i32) -> (i32, i32) {
    %c0_i32 = arith.constant 0 : i32
    %c0_i32_0 = arith.constant 0 : i32
    %c0_i32_1 = arith.constant 0 : i32
    return %c0_i32, %c0_i32_0 : i32, i32
  }
}

module attributes {stable_mosaic.version = 11 : i64} {
  func.func @stats2_kernel(%arg0: i32, %arg1: memref<512x8xf32, #tpu.memory_space<vmem>>, %arg2: memref<8x128xf32, #tpu.memory_space<vmem>>, %arg3: memref<1x128xf32, #tpu.memory_space<vmem>>, %arg4: memref<1x128xf32, #tpu.memory_space<vmem>>, %arg5: memref<1x128xf32, #tpu.memory_space<vmem>>, %arg6: memref<128x128xf32, #tpu.memory_space<vmem>>, %arg7: memref<1x128xf32, #tpu.memory_space<vmem>>, %arg8: memref<1x128xf32, #tpu.memory_space<vmem>>, %arg9: memref<1x128xf32, #tpu.memory_space<vmem>>) attributes {dimension_semantics = [#tpu.dimension_semantics<arbitrary>], iteration_bounds = array<i64: 2>, scalar_prefetch = 0 : i64, scratch_operands = 0 : i64, tpu.core_type = #tpu.core_type<tc>, window_params = [{transform_indices = @transform_0, window_bounds = array<i64: 512, 8>}, {pipeline_mode = #tpu.pipeline_mode<synchronous>, transform_indices = @transform_1, window_bounds = array<i64: 8, 128>}, {pipeline_mode = #tpu.pipeline_mode<synchronous>, transform_indices = @transform_2, window_bounds = array<i64: 1, 128>}, {pipeline_mode = #tpu.pipeline_mode<synchronous>, transform_indices = @transform_3, window_bounds = array<i64: 1, 128>}, {pipeline_mode = #tpu.pipeline_mode<synchronous>, transform_indices = @transform_4, window_bounds = array<i64: 1, 128>}, {pipeline_mode = #tpu.pipeline_mode<synchronous>, transform_indices = @transform_5, window_bounds = array<i64: 128, 128>}, {pipeline_mode = #tpu.pipeline_mode<synchronous>, transform_indices = @transform_6, window_bounds = array<i64: 1, 128>}, {pipeline_mode = #tpu.pipeline_mode<synchronous>, transform_indices = @transform_7, window_bounds = array<i64: 1, 128>}, {pipeline_mode = #tpu.pipeline_mode<synchronous>, transform_indices = @transform_8, window_bounds = array<i64: 1, 128>}]} {
    %c0_i32 = arith.constant 0 : i32
    %0 = arith.cmpi eq, %arg0, %c0_i32 : i32
    %1 = arith.extui %0 : i1 to i32
    %c0_i32_0 = arith.constant 0 : i32
    %2 = arith.cmpi ne, %1, %c0_i32_0 : i32
    scf.if %2 {
      %cst_26 = arith.constant 0.000000e+00 : f32
      %33 = vector.broadcast %cst_26 : f32 to vector<1x128xf32>
      %c0_27 = arith.constant 0 : index
      %c0_28 = arith.constant 0 : index
      %34 = vector.load %arg8[%c0_27, %c0_28] : memref<1x128xf32, #tpu.memory_space<vmem>>, vector<1x128xf32>
      tpu.vector_store %arg8[%c0_27, %c0_28], %33 {strides = array<i32>} : memref<1x128xf32, #tpu.memory_space<vmem>>, vector<1x128xf32>,
      %cst_29 = arith.constant 0.000000e+00 : f32
      %35 = vector.broadcast %cst_29 : f32 to vector<1x128xf32>
      %c0_30 = arith.constant 0 : index
      %c0_31 = arith.constant 0 : index
      %36 = vector.load %arg9[%c0_30, %c0_31] : memref<1x128xf32, #tpu.memory_space<vmem>>, vector<1x128xf32>
      tpu.vector_store %arg9[%c0_30, %c0_31], %35 {strides = array<i32>} : memref<1x128xf32, #tpu.memory_space<vmem>>, vector<1x128xf32>,
    } else {
    }
    %c0 = arith.constant 0 : index
    %c0_1 = arith.constant 0 : index
    %3 = vector.load %arg1[%c0, %c0_1] : memref<512x8xf32, #tpu.memory_space<vmem>>, vector<512x8xf32>
    %c0_2 = arith.constant 0 : index
    %c0_3 = arith.constant 0 : index
    %4 = vector.load %arg2[%c0_2, %c0_3] : memref<8x128xf32, #tpu.memory_space<vmem>>, vector<8x128xf32>
    %cst = arith.constant dense<0.000000e+00> : vector<512x128xf32>
    %5 = tpu.matmul %3, %4, %cst {dimension_numbers = #tpu.dot_dimension_numbers<[1], [0], [0], [1], [0, 0, 1, 1], [], []>} : vector<512x8xf32>, vector<8x128xf32>, vector<512x128xf32> -> vector<512x128xf32>
    %c0_4 = arith.constant 0 : index
    %c0_5 = arith.constant 0 : index
    %6 = vector.load %arg3[%c0_4, %c0_5] : memref<1x128xf32, #tpu.memory_space<vmem>>, vector<1x128xf32>
    %7 = vector.broadcast %6 : vector<1x128xf32> to vector<512x128xf32>
    %8 = arith.addf %5, %7 : vector<512x128xf32>
    %c0_6 = arith.constant 0 : index
    %c0_7 = arith.constant 0 : index
    %9 = vector.load %arg4[%c0_6, %c0_7] : memref<1x128xf32, #tpu.memory_space<vmem>>, vector<1x128xf32>
    %10 = vector.broadcast %9 : vector<1x128xf32> to vector<512x128xf32>
    %11 = arith.mulf %8, %10 : vector<512x128xf32>
    %c0_8 = arith.constant 0 : index
    %c0_9 = arith.constant 0 : index
    %12 = vector.load %arg5[%c0_8, %c0_9] : memref<1x128xf32, #tpu.memory_space<vmem>>, vector<1x128xf32>
    %13 = vector.broadcast %12 : vector<1x128xf32> to vector<512x128xf32>
    %14 = arith.addf %11, %13 : vector<512x128xf32>
    %cst_10 = arith.constant 0.000000e+00 : f32
    %15 = vector.broadcast %cst_10 : f32 to vector<512x128xf32>
    %16 = arith.maximumf %14, %15 : vector<512x128xf32>
    %c0_11 = arith.constant 0 : index
    %c0_12 = arith.constant 0 : index
    %17 = vector.load %arg6[%c0_11, %c0_12] : memref<128x128xf32, #tpu.memory_space<vmem>>, vector<128x128xf32>
    %cst_13 = arith.constant dense<0.000000e+00> : vector<512x128xf32>
    %18 = tpu.matmul %16, %17, %cst_13 {dimension_numbers = #tpu.dot_dimension_numbers<[1], [0], [0], [1], [0, 0, 1, 1], [], []>} : vector<512x128xf32>, vector<128x128xf32>, vector<512x128xf32> -> vector<512x128xf32>
    %c0_14 = arith.constant 0 : index
    %c0_15 = arith.constant 0 : index
    %19 = vector.load %arg7[%c0_14, %c0_15] : memref<1x128xf32, #tpu.memory_space<vmem>>, vector<1x128xf32>
    %20 = vector.broadcast %19 : vector<1x128xf32> to vector<512x128xf32>
    %21 = arith.addf %18, %20 : vector<512x128xf32>
    %cst_16 = arith.constant dense<0.000000e+00> : vector<128xf32>
    %22 = vector.multi_reduction <add>, %21, %cst_16 [0] : vector<512x128xf32> to vector<128xf32>
    %23 = vector.shape_cast %22 : vector<128xf32> to vector<1x128xf32>
    %24 = arith.mulf %21, %21 : vector<512x128xf32>
    %cst_17 = arith.constant dense<0.000000e+00> : vector<128xf32>
    %25 = vector.multi_reduction <add>, %24, %cst_17 [0] : vector<512x128xf32> to vector<128xf32>
    %26 = vector.shape_cast %25 : vector<128xf32> to vector<1x128xf32>
    %c0_18 = arith.constant 0 : index
    %c0_19 = arith.constant 0 : index
    %27 = vector.load %arg8[%c0_18, %c0_19] : memref<1x128xf32, #tpu.memory_space<vmem>>, vector<1x128xf32>
    %28 = arith.addf %27, %23 : vector<1x128xf32>
    %c0_20 = arith.constant 0 : index
    %c0_21 = arith.constant 0 : index
    %29 = vector.load %arg8[%c0_20, %c0_21] : memref<1x128xf32, #tpu.memory_space<vmem>>, vector<1x128xf32>
    tpu.vector_store %arg8[%c0_20, %c0_21], %28 {strides = array<i32>} : memref<1x128xf32, #tpu.memory_space<vmem>>, vector<1x128xf32>,
    %c0_22 = arith.constant 0 : index
    %c0_23 = arith.constant 0 : index
    %30 = vector.load %arg9[%c0_22, %c0_23] : memref<1x128xf32, #tpu.memory_space<vmem>>, vector<1x128xf32>
    %31 = arith.addf %30, %26 : vector<1x128xf32>
    %c0_24 = arith.constant 0 : index
    %c0_25 = arith.constant 0 : index
    %32 = vector.load %arg9[%c0_24, %c0_25] : memref<1x128xf32, #tpu.memory_space<vmem>>, vector<1x128xf32>
    tpu.vector_store %arg9[%c0_24, %c0_25], %31 {strides = array<i32>} : memref<1x128xf32, #tpu.memory_space<vmem>>, vector<1x128xf32>,
    return
  }
  func.func @transform_0(%arg0: i32) -> (i32, i32) {
    %c0_i32 = arith.constant 0 : i32
    %c0_i32_0 = arith.constant 0 : i32
    return %arg0, %c0_i32 : i32, i32
  }
  func.func @transform_1(%arg0: i32) -> (i32, i32) {
    %c0_i32 = arith.constant 0 : i32
    %c0_i32_0 = arith.constant 0 : i32
    %c0_i32_1 = arith.constant 0 : i32
    return %c0_i32, %c0_i32_0 : i32, i32
  }
  func.func @transform_2(%arg0: i32) -> (i32, i32) {
    %c0_i32 = arith.constant 0 : i32
    %c0_i32_0 = arith.constant 0 : i32
    %c0_i32_1 = arith.constant 0 : i32
    return %c0_i32, %c0_i32_0 : i32, i32
  }
  func.func @transform_3(%arg0: i32) -> (i32, i32) {
    %c0_i32 = arith.constant 0 : i32
    %c0_i32_0 = arith.constant 0 : i32
    %c0_i32_1 = arith.constant 0 : i32
    return %c0_i32, %c0_i32_0 : i32, i32
  }
  func.func @transform_4(%arg0: i32) -> (i32, i32) {
    %c0_i32 = arith.constant 0 : i32
    %c0_i32_0 = arith.constant 0 : i32
    %c0_i32_1 = arith.constant 0 : i32
    return %c0_i32, %c0_i32_0 : i32, i32
  }
  func.func @transform_5(%arg0: i32) -> (i32, i32) {
    %c0_i32 = arith.constant 0 : i32
    %c0_i32_0 = arith.constant 0 : i32
    %c0_i32_1 = arith.constant 0 : i32
    return %c0_i32, %c0_i32_0 : i32, i32
  }
  func.func @transform_6(%arg0: i32) -> (i32, i32) {
    %c0_i32 = arith.constant 0 : i32
    %c0_i32_0 = arith.constant 0 : i32
    %c0_i32_1 = arith.constant 0 : i32
    return %c0_i32, %c0_i32_0 : i32, i32
  }
  func.func @transform_7(%arg0: i32) -> (i32, i32) {
    %c0_i32 = arith.constant 0 : i32
    %c0_i32_0 = arith.constant 0 : i32
    %c0_i32_1 = arith.constant 0 : i32
    return %c0_i32, %c0_i32_0 : i32, i32
  }
  func.func @transform_8(%arg0: i32) -> (i32, i32) {
    %c0_i32 = arith.constant 0 : i32
    %c0_i32_0 = arith.constant 0 : i32
    %c0_i32_1 = arith.constant 0 : i32
    return %c0_i32, %c0_i32_0 : i32, i32
  }
}

module attributes {stable_mosaic.version = 11 : i64} {
  func.func @final_kernel(%arg0: i32, %arg1: memref<512x8xf32, #tpu.memory_space<vmem>>, %arg2: memref<8x128xf32, #tpu.memory_space<vmem>>, %arg3: memref<1x128xf32, #tpu.memory_space<vmem>>, %arg4: memref<1x128xf32, #tpu.memory_space<vmem>>, %arg5: memref<1x128xf32, #tpu.memory_space<vmem>>, %arg6: memref<128x128xf32, #tpu.memory_space<vmem>>, %arg7: memref<1x128xf32, #tpu.memory_space<vmem>>, %arg8: memref<1x128xf32, #tpu.memory_space<vmem>>, %arg9: memref<1x128xf32, #tpu.memory_space<vmem>>, %arg10: memref<512x128xf32, #tpu.memory_space<vmem>>) attributes {dimension_semantics = [#tpu.dimension_semantics<parallel>], iteration_bounds = array<i64: 2>, scalar_prefetch = 0 : i64, scratch_operands = 0 : i64, tpu.core_type = #tpu.core_type<tc>, window_params = [{transform_indices = @transform_0, window_bounds = array<i64: 512, 8>}, {pipeline_mode = #tpu.pipeline_mode<synchronous>, transform_indices = @transform_1, window_bounds = array<i64: 8, 128>}, {pipeline_mode = #tpu.pipeline_mode<synchronous>, transform_indices = @transform_2, window_bounds = array<i64: 1, 128>}, {pipeline_mode = #tpu.pipeline_mode<synchronous>, transform_indices = @transform_3, window_bounds = array<i64: 1, 128>}, {pipeline_mode = #tpu.pipeline_mode<synchronous>, transform_indices = @transform_4, window_bounds = array<i64: 1, 128>}, {pipeline_mode = #tpu.pipeline_mode<synchronous>, transform_indices = @transform_5, window_bounds = array<i64: 128, 128>}, {pipeline_mode = #tpu.pipeline_mode<synchronous>, transform_indices = @transform_6, window_bounds = array<i64: 1, 128>}, {pipeline_mode = #tpu.pipeline_mode<synchronous>, transform_indices = @transform_7, window_bounds = array<i64: 1, 128>}, {pipeline_mode = #tpu.pipeline_mode<synchronous>, transform_indices = @transform_8, window_bounds = array<i64: 1, 128>}, {transform_indices = @transform_9, window_bounds = array<i64: 512, 128>}]} {
    %c0 = arith.constant 0 : index
    %c0_0 = arith.constant 0 : index
    %0 = vector.load %arg1[%c0, %c0_0] : memref<512x8xf32, #tpu.memory_space<vmem>>, vector<512x8xf32>
    %c0_1 = arith.constant 0 : index
    %c0_2 = arith.constant 0 : index
    %1 = vector.load %arg2[%c0_1, %c0_2] : memref<8x128xf32, #tpu.memory_space<vmem>>, vector<8x128xf32>
    %cst = arith.constant dense<0.000000e+00> : vector<512x128xf32>
    %2 = tpu.matmul %0, %1, %cst {dimension_numbers = #tpu.dot_dimension_numbers<[1], [0], [0], [1], [0, 0, 1, 1], [], []>} : vector<512x8xf32>, vector<8x128xf32>, vector<512x128xf32> -> vector<512x128xf32>
    %c0_3 = arith.constant 0 : index
    %c0_4 = arith.constant 0 : index
    %3 = vector.load %arg3[%c0_3, %c0_4] : memref<1x128xf32, #tpu.memory_space<vmem>>, vector<1x128xf32>
    %4 = vector.broadcast %3 : vector<1x128xf32> to vector<512x128xf32>
    %5 = arith.addf %2, %4 : vector<512x128xf32>
    %c0_5 = arith.constant 0 : index
    %c0_6 = arith.constant 0 : index
    %6 = vector.load %arg4[%c0_5, %c0_6] : memref<1x128xf32, #tpu.memory_space<vmem>>, vector<1x128xf32>
    %7 = vector.broadcast %6 : vector<1x128xf32> to vector<512x128xf32>
    %8 = arith.mulf %5, %7 : vector<512x128xf32>
    %c0_7 = arith.constant 0 : index
    %c0_8 = arith.constant 0 : index
    %9 = vector.load %arg5[%c0_7, %c0_8] : memref<1x128xf32, #tpu.memory_space<vmem>>, vector<1x128xf32>
    %10 = vector.broadcast %9 : vector<1x128xf32> to vector<512x128xf32>
    %11 = arith.addf %8, %10 : vector<512x128xf32>
    %cst_9 = arith.constant 0.000000e+00 : f32
    %12 = vector.broadcast %cst_9 : f32 to vector<512x128xf32>
    %13 = arith.maximumf %11, %12 : vector<512x128xf32>
    %c0_10 = arith.constant 0 : index
    %c0_11 = arith.constant 0 : index
    %14 = vector.load %arg6[%c0_10, %c0_11] : memref<128x128xf32, #tpu.memory_space<vmem>>, vector<128x128xf32>
    %cst_12 = arith.constant dense<0.000000e+00> : vector<512x128xf32>
    %15 = tpu.matmul %13, %14, %cst_12 {dimension_numbers = #tpu.dot_dimension_numbers<[1], [0], [0], [1], [0, 0, 1, 1], [], []>} : vector<512x128xf32>, vector<128x128xf32>, vector<512x128xf32> -> vector<512x128xf32>
    %c0_13 = arith.constant 0 : index
    %c0_14 = arith.constant 0 : index
    %16 = vector.load %arg7[%c0_13, %c0_14] : memref<1x128xf32, #tpu.memory_space<vmem>>, vector<1x128xf32>
    %17 = vector.broadcast %16 : vector<1x128xf32> to vector<512x128xf32>
    %18 = arith.addf %15, %17 : vector<512x128xf32>
    %c0_15 = arith.constant 0 : index
    %c0_16 = arith.constant 0 : index
    %19 = vector.load %arg8[%c0_15, %c0_16] : memref<1x128xf32, #tpu.memory_space<vmem>>, vector<1x128xf32>
    %20 = vector.broadcast %19 : vector<1x128xf32> to vector<512x128xf32>
    %21 = arith.mulf %18, %20 : vector<512x128xf32>
    %c0_17 = arith.constant 0 : index
    %c0_18 = arith.constant 0 : index
    %22 = vector.load %arg9[%c0_17, %c0_18] : memref<1x128xf32, #tpu.memory_space<vmem>>, vector<1x128xf32>
    %23 = vector.broadcast %22 : vector<1x128xf32> to vector<512x128xf32>
    %24 = arith.addf %21, %23 : vector<512x128xf32>
    %cst_19 = arith.constant 0.000000e+00 : f32
    %25 = vector.broadcast %cst_19 : f32 to vector<512x128xf32>
    %26 = arith.maximumf %24, %25 : vector<512x128xf32>
    %c0_20 = arith.constant 0 : index
    %c0_21 = arith.constant 0 : index
    %27 = vector.load %arg10[%c0_20, %c0_21] : memref<512x128xf32, #tpu.memory_space<vmem>>, vector<512x128xf32>
    tpu.vector_store %arg10[%c0_20, %c0_21], %26 {strides = array<i32>} : memref<512x128xf32, #tpu.memory_space<vmem>>, vector<512x128xf32>,
    return
  }
  func.func @transform_0(%arg0: i32) -> (i32, i32) {
    %c0_i32 = arith.constant 0 : i32
    %c0_i32_0 = arith.constant 0 : i32
    return %arg0, %c0_i32 : i32, i32
  }
  func.func @transform_1(%arg0: i32) -> (i32, i32) {
    %c0_i32 = arith.constant 0 : i32
    %c0_i32_0 = arith.constant 0 : i32
    %c0_i32_1 = arith.constant 0 : i32
    return %c0_i32, %c0_i32_0 : i32, i32
  }
  func.func @transform_2(%arg0: i32) -> (i32, i32) {
    %c0_i32 = arith.constant 0 : i32
    %c0_i32_0 = arith.constant 0 : i32
    %c0_i32_1 = arith.constant 0 : i32
    return %c0_i32, %c0_i32_0 : i32, i32
  }
  func.func @transform_3(%arg0: i32) -> (i32, i32) {
    %c0_i32 = arith.constant 0 : i32
    %c0_i32_0 = arith.constant 0 : i32
    %c0_i32_1 = arith.constant 0 : i32
    return %c0_i32, %c0_i32_0 : i32, i32
  }
  func.func @transform_4(%arg0: i32) -> (i32, i32) {
    %c0_i32 = arith.constant 0 : i32
    %c0_i32_0 = arith.constant 0 : i32
    %c0_i32_1 = arith.constant 0 : i32
    return %c0_i32, %c0_i32_0 : i32, i32
  }
  func.func @transform_5(%arg0: i32) -> (i32, i32) {
    %c0_i32 = arith.constant 0 : i32
    %c0_i32_0 = arith.constant 0 : i32
    %c0_i32_1 = arith.constant 0 : i32
    return %c0_i32, %c0_i32_0 : i32, i32
  }
  func.func @transform_6(%arg0: i32) -> (i32, i32) {
    %c0_i32 = arith.constant 0 : i32
    %c0_i32_0 = arith.constant 0 : i32
    %c0_i32_1 = arith.constant 0 : i32
    return %c0_i32, %c0_i32_0 : i32, i32
  }
  func.func @transform_7(%arg0: i32) -> (i32, i32) {
    %c0_i32 = arith.constant 0 : i32
    %c0_i32_0 = arith.constant 0 : i32
    %c0_i32_1 = arith.constant 0 : i32
    return %c0_i32, %c0_i32_0 : i32, i32
  }
  func.func @transform_8(%arg0: i32) -> (i32, i32) {
    %c0_i32 = arith.constant 0 : i32
    %c0_i32_0 = arith.constant 0 : i32
    %c0_i32_1 = arith.constant 0 : i32
    return %c0_i32, %c0_i32_0 : i32, i32
  }
  func.func @transform_9(%arg0: i32) -> (i32, i32) {
    %c0_i32 = arith.constant 0 : i32
    %c0_i32_0 = arith.constant 0 : i32
    return %arg0, %c0_i32 : i32, i32
  }
}

</mosaic_0001>

<llo_original>
// kernel: tile.33
$region0: #{tile.33}
  #allocation0 [shape = 's32[1]{0}', space=sflag, size = 0x4, scoped, tag = 'scoped memory for tile.33']
  %s0 = inlined_call_operand.vmem [shape: f32[16], index: 0, kind: input, shape index: {}]
  %s1 = inlined_call_operand.vmem [shape: f32[8,16], index: 1, kind: output, shape index: {}]
  // Predicated region
  $region2: #{tile.33} parent=0 // pred_check
    _
  $region3: #{tile.33} parent=0 // pred_check_branch
    %3 = sbr.rel (0) target = $region5
  $region4: #{tile.33} parent=0 // pred_region
    _
  $region5: #{tile.33} parent=0 // pred_fallthru
    _
  %v4 = vld [vmem:[%s0] ss:$0 sm:$0xff]
  %5 = vst [vmem:[%s1] sm:$0xff] %v4

// kernel: tile.34
$region0: #{tile.34}
  %s0 = inlined_call_operand.vmem [shape: f32[8,16], index: 0, kind: input, shape index: {}]
  %s1 = inlined_call_operand.vmem [shape: f32[1,128], index: 1, kind: output, shape index: {}]
  $region1: #{tile.34} parent=0
    #allocation0 [shape = 'u8[4096]{0}', space=vmem, size = 0x1000, scoped, tag = 'scoped mem for output reshape']
    %v2 = vld [vmem:[%s0] sm:$0x1]
    %vm3 = vcmask 130048
    %4 = vst.msk [vmem:[#allocation0] sm:$0x1] %vm3, %v2
    %s5 = scalar_lea.vmem %s0, 7
    %v6 = vld [vmem:[%s5] sm:$0x1]
    %7 = vrot.lane.b32.xlu0 %v6, 112
    %v8 = vpop.permute.xlu0 %7
    %vm9 = vcmask 1048448
    %10 = vst.msk [vmem:[#allocation0] sm:$0x1] %vm9, %v8
    %s11 = scalar_lea.vmem %s0, 6
    %v12 = vld [vmem:[%s11] sm:$0x1]
    %13 = vrot.lane.b32.xlu0 %v12, 96
    %v14 = vpop.permute.xlu0 %13
    %vm15 = vcmask 917248
    %16 = vst.msk [vmem:[#allocation0] sm:$0x1] %vm15, %v14
    %s17 = scalar_lea.vmem %s0, 5
    %v18 = vld [vmem:[%s17] sm:$0x1]
    %19 = vrot.lane.b32.xlu0 %v18, 80
    %v20 = vpop.permute.xlu0 %19
    %vm21 = vcmask 786048
    %22 = vst.msk [vmem:[#allocation0] sm:$0x1] %vm21, %v20
    %s23 = scalar_lea.vmem %s0, 4
    %v24 = vld [vmem:[%s23] sm:$0x1]
    %25 = vrot.lane.b32.xlu0 %v24, 64
    %v26 = vpop.permute.xlu0 %25
    %vm27 = vcmask 654848
    %28 = vst.msk [vmem:[#allocation0] sm:$0x1] %vm27, %v26
    %s29 = scalar_lea.vmem %s0, 3
    %v30 = vld [vmem:[%s29] sm:$0x1]
    %31 = vrot.lane.b32.xlu0 %v30, 48
    %v32 = vpop.permute.xlu0 %31
    %vm33 = vcmask 523648
    %34 = vst.msk [vmem:[#allocation0] sm:$0x1] %vm33, %v32
    %s35 = scalar_lea.vmem %s0, 2
    %v36 = vld [vmem:[%s35] sm:$0x1]
    %37 = vrot.lane.b32.xlu0 %v36, 32
    %v38 = vpop.permute.xlu0 %37
    %vm39 = vcmask 392448
    %40 = vst.msk [vmem:[#allocation0] sm:$0x1] %vm39, %v38
    %s41 = scalar_lea.vmem %s0, 1
    %v42 = vld [vmem:[%s41] sm:$0x1]
    %43 = vrot.lane.b32.xlu0 %v42, 16
    %v44 = vpop.permute.xlu0 %43
    %vm45 = vcmask 261248
    %46 = vst.msk [vmem:[#allocation0] sm:$0x1] %vm45, %v44
    %s48 = sshllo.u32 0, 1
    %v50 = vld [vmem:[#allocation0] sm:%s48]
    %s51 = sshllo.u32 0, 1
    %52 = vst [vmem:[%s1] sm:%s51] %v50

// kernel: tile.38
$region0: #{tile.38}
  #allocation2 [shape = 's32[1]{0}', space=sflag, size = 0x4, scoped, tag = 'scoped memory for tile.38']
  %s0 = inlined_call_operand.hbm [shape: f32[16], index: 0, kind: input, shape index: {}]
  %s1 = inlined_call_operand.vmem [shape: f32[8,16], index: 1, kind: output, shape index: {}]
  $region1: #{tile.38} parent=0
    #allocation0 [shape = 'u8[512]{0}', space=vmem, size = 0x400, scoped, tag = 'operand span for operand 0']
    #allocation1 [shape = 's32[1]{0}', space=sflag, size = 0x4, scoped, tag = 'scoped memory for tile.38']
    %2 = vsyncpa [#allocation1], 0
    // Predicated region
    $region2: #{tile.38} parent=1 // pred_check
      _
    $region3: #{tile.38} parent=1 // pred_check_branch
      %4 = sbr.rel (0) target = $region5
    $region4: #{tile.38} parent=1 // pred_region
      %s6 = ssub.s32 16, 16
      %7 = vsyncadd [#allocation1], %s6
      %s9 = sshll.u32 [#allocation0], 4
      %s10 = int_to_ptr.vmem [resolvable:$true] %s9
      %12 = dma.hbm_to_vmem [thread:$0]  %s0, 16, %s10, [#allocation1]
    $region5: #{tile.38} parent=1 // pred_fallthru
      _
    // Predicated region
    $region6: #{tile.38} parent=1 // pred_check
      _
    $region7: #{tile.38} parent=1 // pred_check_branch
      %14 = sbr.rel (0) target = $region9
    $region8: #{tile.38} parent=1 // pred_region
      %15 = dma.done [#allocation1], 16
    $region9: #{tile.38} parent=1 // pred_fallthru
      _
    %v16 = vld [vmem:[#allocation0] ss:$0 sm:$0xff]
    %17 = vst [vmem:[%s1] sm:$0xff] %v16
    %18 = vsyncpa [#allocation1], 1

// kernel: decoder_forward.3
$region0: #{decoder_forward.3}
  #allocation0 [shape = 'u32[]', space=smem, size = 0x4, offset = 0x4, fixed_abs, tag = 'smem constant byte address 0x4 - core index']
  #allocation1 [shape = 'u32[144,128]{1,0:T(1,128)}', space=vmem, size = 0x12000, scoped, tag = 'internal scratch']
  %s0 = inlined_call_operand.vmem [shape: f32[1024,8], index: 0, kind: input, shape index: {}]
  %s1 = inlined_call_operand.vmem [shape: f32[8,128], index: 1, kind: input, shape index: {}]
  %s2 = inlined_call_operand.vmem [shape: f32[1,128], index: 2, kind: input, shape index: {}]
  %s3 = inlined_call_operand.vmem [shape: f32[1,128], index: 3, kind: output, shape index: {0}]
  %s4 = inlined_call_operand.vmem [shape: f32[1,128], index: 4, kind: output, shape index: {1}]
  %5 = xla_tuple %s3, %s4
  %s6 = sld [smem:[#allocation0]]
  $region57: #{decoder_forward.3} parent=0
    _
  %s8 = ssub.s32 1, %s6
  %s9 = scalar_select 0, %s8, %s6
  loop: start=0, step=1, limit=4
  $region2: #{decoder_forward.3} parent=0 // loop_pre_header
    _
  $region3: #{decoder_forward.3} parent=0 // loop_header
    %s11 = sphi 0, %s15
    %p12 = scmp.ge.s32.totalorder %s11, 4
    %s21 = sphi 0, %s23
    %s24 = sphi 0, %s21
    %s25 = sphi 0, %s24
    %s41 = sphi 0, %s25
    %s45 = sphi 0, %s45
    %s47 = sphi 0, %s45
    %s48 = sphi 0, %s47
    %s62 = sphi 0, %s48
    %s66 = sphi 0, %s66
    %s68 = sphi 0, %s66
    %s69 = sphi 0, %s68
    %s83 = sphi 0, %s69
    %s87 = sphi 0, %s87
    %s89 = sphi 0, %s87
    %s90 = sphi 0, %s89
    %s104 = sphi 0, %s90
    %s108 = sphi 0, %s108
    %s110 = sphi 0, %s108
    %s111 = sphi 0, %s110
    %s125 = sphi 0, %s111
  $region4: #{decoder_forward.3} parent=0 // loop_header_branch
    %14 = sbr.rel (%p12) target = $region8
  $region5: #{decoder_forward.3} parent=0 // loop_body
    %s16 = ssub.s32 %s11, 1
    %s17 = ssub.s32 %s11, 2
    %s18 = sadd.s32 %s11, 1
    %s19 = ssub.s32 %s11, %s18
    %p20 = scmp.eq.s32.totalorder %s19, 0
    %s22 = sadd.s32 %s21, 1
    %s23 = scalar_select %p20, %s21, %s22
    %p26 = pneg %p20
    %p27 = scmp.eq.s32.totalorder %s11, 1
    %p28 = por %p26, %p27
    %p29 = scmp.ne.s32.totalorder %s21, %s24
    %p30 = scmp.eq.s32.totalorder %s11, 0
    %p31 = por %p29, %p30
    %p32 = scmp.ne.s32.totalorder %s21, %s24
    %p33 = scmp.eq.s32.totalorder %s16, 1
    %p34 = por %p32, %p33
    %p35 = scmp.ne.s32.totalorder %s24, %s25
    %p36 = scmp.eq.s32.totalorder %s16, 0
    %p37 = por %p35, %p36
    %p38 = scmp.ne.s32.totalorder %s24, %s25
    %p39 = scmp.eq.s32.totalorder %s17, 1
    %p40 = por %p38, %p39
    %p42 = scmp.ne.s32.totalorder %s25, %s41
    %p43 = scmp.eq.s32.totalorder %s17, 0
    %p44 = por %p42, %p43
    %s46 = sadd.s32 %s45, 1
    %p49 = scmp.eq.s32.totalorder %s11, 1
    %p50 = scmp.ne.s32.totalorder %s45, %s47
    %p51 = scmp.eq.s32.totalorder %s11, 0
    %p52 = por %p50, %p51
    %p53 = scmp.ne.s32.totalorder %s45, %s47
    %p54 = scmp.eq.s32.totalorder %s16, 1
    %p55 = por %p53, %p54
    %p56 = scmp.ne.s32.totalorder %s47, %s48
    %p57 = scmp.eq.s32.totalorder %s16, 0
    %p58 = por %p56, %p57
    %p59 = scmp.ne.s32.totalorder %s47, %s48
    %p60 = scmp.eq.s32.totalorder %s17, 1
    %p61 = por %p59, %p60
    %p63 = scmp.ne.s32.totalorder %s48, %s62
    %p64 = scmp.eq.s32.totalorder %s17, 0
    %p65 = por %p63, %p64
    %s67 = sadd.s32 %s66, 1
    %p70 = scmp.eq.s32.totalorder %s11, 1
    %p71 = scmp.ne.s32.totalorder %s66, %s68
    %p72 = scmp.eq.s32.totalorder %s11, 0
    %p73 = por %p71, %p72
    %p74 = scmp.ne.s32.totalorder %s66, %s68
    %p75 = scmp.eq.s32.totalorder %s16, 1
    %p76 = por %p74, %p75
    %p77 = scmp.ne.s32.totalorder %s68, %s69
    %p78 = scmp.eq.s32.totalorder %s16, 0
    %p79 = por %p77, %p78
    %p80 = scmp.ne.s32.totalorder %s68, %s69
    %p81 = scmp.eq.s32.totalorder %s17, 1
    %p82 = por %p80, %p81
    %p84 = scmp.ne.s32.totalorder %s69, %s83
    %p85 = scmp.eq.s32.totalorder %s17, 0
    %p86 = por %p84, %p85
    %s88 = sadd.s32 %s87, 1
    %p91 = scmp.eq.s32.totalorder %s11, 1
    %p92 = scmp.ne.s32.totalorder %s87, %s89
    %p93 = scmp.eq.s32.totalorder %s11, 0
    %p94 = por %p92, %p93
    %p95 = scmp.ne.s32.totalorder %s87, %s89
    %p96 = scmp.eq.s32.totalorder %s16, 1
    %p97 = por %p95, %p96
    %p98 = scmp.ne.s32.totalorder %s89, %s90
    %p99 = scmp.eq.s32.totalorder %s16, 0
    %p100 = por %p98, %p99
    %p101 = scmp.ne.s32.totalorder %s89, %s90
    %p102 = scmp.eq.s32.totalorder %s17, 1
    %p103 = por %p101, %p102
    %p105 = scmp.ne.s32.totalorder %s90, %s104
    %p106 = scmp.eq.s32.totalorder %s17, 0
    %p107 = por %p105, %p106
    %s109 = sadd.s32 %s108, 1
    %p112 = scmp.eq.s32.totalorder %s11, 1
    %p113 = scmp.ne.s32.totalorder %s108, %s110
    %p114 = scmp.eq.s32.totalorder %s11, 0
    %p115 = por %p113, %p114
    %p116 = scmp.ne.s32.totalorder %s108, %s110
    %p117 = scmp.eq.s32.totalorder %s16, 1
    %p118 = por %p116, %p117
    %p119 = scmp.ne.s32.totalorder %s110, %s111
    %p120 = scmp.eq.s32.totalorder %s16, 0
    %p121 = por %p119, %p120
    %p122 = scmp.ne.s32.totalorder %s110, %s111
    %p123 = scmp.eq.s32.totalorder %s17, 1
    %p124 = por %p122, %p123
    %p126 = scmp.ne.s32.totalorder %s111, %s125
    %p127 = scmp.eq.s32.totalorder %s17, 0
    %p128 = por %p126, %p127
    %p129 = scmp.le.s32.totalorder 1, %s11
    %p130 = scmp.lt.s32.totalorder %s11, 3
    %p131 = pnand %p129, %p130
    %p132 = pneg %p131
    // Predicated region
    $region9: #{decoder_forward.3} parent=5 // pred_check
      _
    $region10: #{decoder_forward.3} parent=5 // pred_check_branch
      %134 = sbr.rel (%p131) target = $region12
    $region11: #{decoder_forward.3} parent=5 // pred_region
      %s135 = ssub.s32 %s11, 1
      // Predicated region
      $region13: #{decoder_forward.3} parent=11 // pred_check
        %p136 = pneg %p58
      $region14: #{decoder_forward.3} parent=11 // pred_check_branch
        %138 = sbr.rel (%p136) target = $region16
      $region15: #{decoder_forward.3} parent=11 // pred_region
        _
      $region16: #{decoder_forward.3} parent=11 // pred_fallthru
        _
      // Predicated region
      $region17: #{decoder_forward.3} parent=11 // pred_check
        %p139 = pneg %p79
      $region18: #{decoder_forward.3} parent=11 // pred_check_branch
        %141 = sbr.rel (%p139) target = $region20
      $region19: #{decoder_forward.3} parent=11 // pred_region
        _
      $region20: #{decoder_forward.3} parent=11 // pred_fallthru
        _
    $region12: #{decoder_forward.3} parent=5 // pred_fallthru
      _
    %p142 = scmp.lt.s32.totalorder %s11, 2
    // Predicated region
    $region21: #{decoder_forward.3} parent=5 // pred_check
      %p143 = pneg %p142
    $region22: #{decoder_forward.3} parent=5 // pred_check_branch
      %145 = sbr.rel (%p143) target = $region24
    $region23: #{decoder_forward.3} parent=5 // pred_region
      // Predicated region
      $region25: #{decoder_forward.3} parent=23 // pred_check
        %p146 = pneg %p31
      $region26: #{decoder_forward.3} parent=23 // pred_check_branch
        %148 = sbr.rel (%p146) target = $region28
      $region27: #{decoder_forward.3} parent=23 // pred_region
        %s149 = smul.u32 64, %s11
        %p150 = scmp.lt.s32.totalorder %s149, 127
        %s151 = scalar_select %p150, %s149, 127
        %s152 = smul.addr %s151, 8
        %s153 = scalar_lea.vmem %s0, %s152
        %s154 = smul.u32 64, %s11
      $region28: #{decoder_forward.3} parent=23 // pred_fallthru
        _
    $region24: #{decoder_forward.3} parent=5 // pred_fallthru
      _
    %p155 = scmp.le.s32.totalorder 1, %s11
    %p156 = scmp.lt.s32.totalorder %s11, 3
    %p157 = pnand %p155, %p156
    %p158 = pneg %p157
    // Predicated region
    $region29: #{decoder_forward.3} parent=5 // pred_check
      _
    $region30: #{decoder_forward.3} parent=5 // pred_check_branch
      %160 = sbr.rel (%p157) target = $region32
    $region31: #{decoder_forward.3} parent=5 // pred_region
      %s161 = ssub.s32 %s11, 1
      %s162 = smul.u32 64, %s16
      %p163 = scmp.lt.s32.totalorder %s162, 127
      %s164 = scalar_select %p163, %s162, 127
      %s165 = smul.addr %s164, 8
      %s166 = scalar_lea.vmem %s0, %s165
      %p167 = pneg %p37
      %p168 = pneg %p34
      %p169 = pneg %p58
      %p170 = pneg %p55
      %p171 = pneg %p79
      %p172 = pneg %p76
      %p173 = pneg %p100
      %p174 = pneg %p97
      %p175 = pneg %p121
      %p176 = pneg %p118
      %s177 = smul.u32 64, %s16
      %p178 = scmp.lt.s32.totalorder %s177, 127
      %s179 = scalar_select %p178, %s177, 127
      %s180 = smul.addr %s179, 8
      %s181 = scalar_lea.vmem %s0, %s180
      %s182 = smul.u32 64, %s16
      %p183 = scmp.eq.s32.totalorder %s16, 0
      // Predicated region
      $region33: #{decoder_forward.3} parent=31 // pred_check
        %p184 = pneg %p183
      $region34: #{decoder_forward.3} parent=31 // pred_check_branch
        %186 = sbr.rel (%p184) target = $region36
      $region35: #{decoder_forward.3} parent=31 // pred_region
        %187 = vst [vmem:[%s3] sm:$0x1] 0.0
        %188 = vst [vmem:[%s4] sm:$0x1] 0.0
      $region36: #{decoder_forward.3} parent=31 // pred_fallthru
        _
      %v189 = vld [vmem:[%s181] sm:$0xff]
      %v190 = vld [vmem:[%s181 + $0x8] sm:$0xff]
      %v191 = vld [vmem:[%s181 + $0x10] sm:$0xff]
      %v192 = vld [vmem:[%s181 + $0x18] sm:$0xff]
      %v193 = vld [vmem:[%s181 + $0x20] sm:$0xff]
      %v194 = vld [vmem:[%s181 + $0x28] sm:$0xff]
      %v195 = vld [vmem:[%s181 + $0x30] sm:$0xff]
      %v196 = vld [vmem:[%s181 + $0x38] sm:$0xff]
      %v197 = vld [vmem:[%s181 + $0x40] sm:$0xff]
      %v198 = vld [vmem:[%s181 + $0x48] sm:$0xff]
      %v199 = vld [vmem:[%s181 + $0x50] sm:$0xff]
      %v200 = vld [vmem:[%s181 + $0x58] sm:$0xff]
      %v201 = vld [vmem:[%s181 + $0x60] sm:$0xff]
      %v202 = vld [vmem:[%s181 + $0x68] sm:$0xff]
      %v203 = vld [vmem:[%s181 + $0x70] sm:$0xff]
      %v204 = vld [vmem:[%s181 + $0x78] sm:$0xff]
      %v205 = vld [vmem:[%s181 + $0x80] sm:$0xff]
      %v206 = vld [vmem:[%s181 + $0x88] sm:$0xff]
      %v207 = vld [vmem:[%s181 + $0x90] sm:$0xff]
      %v208 = vld [vmem:[%s181 + $0x98] sm:$0xff]
      %v209 = vld [vmem:[%s181 + $0xa0] sm:$0xff]
      %v210 = vld [vmem:[%s181 + $0xa8] sm:$0xff]
      %v211 = vld [vmem:[%s181 + $0xb0] sm:$0xff]
      %v212 = vld [vmem:[%s181 + $0xb8] sm:$0xff]
      %v213 = vld [vmem:[%s181 + $0xc0] sm:$0xff]
      %v214 = vld [vmem:[%s181 + $0xc8] sm:$0xff]
      %v215 = vld [vmem:[%s181 + $0xd0] sm:$0xff]
      %v216 = vld [vmem:[%s181 + $0xd8] sm:$0xff]
      %v217 = vld [vmem:[%s181 + $0xe0] sm:$0xff]
      %v218 = vld [vmem:[%s181 + $0xe8] sm:$0xff]
      %v219 = vld [vmem:[%s181 + $0xf0] sm:$0xff]
      %v220 = vld [vmem:[%s181 + $0xf8] sm:$0xff]
      %v221 = vld [vmem:[%s181 + $0x100] sm:$0xff]
      %v222 = vld [vmem:[%s181 + $0x108] sm:$0xff]
      %v223 = vld [vmem:[%s181 + $0x110] sm:$0xff]
      %v224 = vld [vmem:[%s181 + $0x118] sm:$0xff]
      %v225 = vld [vmem:[%s181 + $0x120] sm:$0xff]
      %v226 = vld [vmem:[%s181 + $0x128] sm:$0xff]
      %v227 = vld [vmem:[%s181 + $0x130] sm:$0xff]
      %v228 = vld [vmem:[%s181 + $0x138] sm:$0xff]
      %v229 = vld [vmem:[%s181 + $0x140] sm:$0xff]
      %v230 = vld [vmem:[%s181 + $0x148] sm:$0xff]
      %v231 = vld [vmem:[%s181 + $0x150] sm:$0xff]
      %v232 = vld [vmem:[%s181 + $0x158] sm:$0xff]
      %v233 = vld [vmem:[%s181 + $0x160] sm:$0xff]
      %v234 = vld [vmem:[%s181 + $0x168] sm:$0xff]
      %v235 = vld [vmem:[%s181 + $0x170] sm:$0xff]
      %v236 = vld [vmem:[%s181 + $0x178] sm:$0xff]
      %v237 = vld [vmem:[%s181 + $0x180] sm:$0xff]
      %v238 = vld [vmem:[%s181 + $0x188] sm:$0xff]
      %v239 = vld [vmem:[%s181 + $0x190] sm:$0xff]
      %v240 = vld [vmem:[%s181 + $0x198] sm:$0xff]
      %v241 = vld [vmem:[%s181 + $0x1a0] sm:$0xff]
      %v242 = vld [vmem:[%s181 + $0x1a8] sm:$0xff]
      %v243 = vld [vmem:[%s181 + $0x1b0] sm:$0xff]
      %v244 = vld [vmem:[%s181 + $0x1b8] sm:$0xff]
      %v245 = vld [vmem:[%s181 + $0x1c0] sm:$0xff]
      %v246 = vld [vmem:[%s181 + $0x1c8] sm:$0xff]
      %v247 = vld [vmem:[%s181 + $0x1d0] sm:$0xff]
      %v248 = vld [vmem:[%s181 + $0x1d8] sm:$0xff]
      %v249 = vld [vmem:[%s181 + $0x1e0] sm:$0xff]
      %v250 = vld [vmem:[%s181 + $0x1e8] sm:$0xff]
      %v251 = vld [vmem:[%s181 + $0x1f0] sm:$0xff]
      %v252 = vld [vmem:[%s181 + $0x1f8] sm:$0xff]
      %v253 = vld [vmem:[%s1] sm:$0xff]
      %v254 = vld [vmem:[%s2] sm:$0x1]
      %v256 = vlaneseq
      %v257 = vshrl.u32 %v256, 7
      %v258 = vsub.s32 0, %v257
      %v259 = vrot.slane %v254, %v258
      %vm261 = vcmask 64512
      %v263 = vsel %vm261, %v189, 0
      %v266 = vsel %vm261, %v190, 0
      %v269 = vsel %vm261, %v191, 0
      %v272 = vsel %vm261, %v192, 0
      %v275 = vsel %vm261, %v193, 0
      %v278 = vsel %vm261, %v194, 0
      %v281 = vsel %vm261, %v195, 0
      %v284 = vsel %vm261, %v196, 0
      %v287 = vsel %vm261, %v197, 0
      %v290 = vsel %vm261, %v198, 0
      %v293 = vsel %vm261, %v199, 0
      %v296 = vsel %vm261, %v200, 0
      %v299 = vsel %vm261, %v201, 0
      %v302 = vsel %vm261, %v202, 0
      %v305 = vsel %vm261, %v203, 0
      %v308 = vsel %vm261, %v204, 0
      %v311 = vsel %vm261, %v205, 0
      %v314 = vsel %vm261, %v206, 0
      %v317 = vsel %vm261, %v207, 0
      %v320 = vsel %vm261, %v208, 0
      %v323 = vsel %vm261, %v209, 0
      %v326 = vsel %vm261, %v210, 0
      %v329 = vsel %vm261, %v211, 0
      %v332 = vsel %vm261, %v212, 0
      %v335 = vsel %vm261, %v213, 0
      %v338 = vsel %vm261, %v214, 0
      %v341 = vsel %vm261, %v215, 0
      %v344 = vsel %vm261, %v216, 0
      %v347 = vsel %vm261, %v217, 0
      %v350 = vsel %vm261, %v218, 0
      %v353 = vsel %vm261, %v219, 0
      %v356 = vsel %vm261, %v220, 0
      %v359 = vsel %vm261, %v221, 0
      %v362 = vsel %vm261, %v222, 0
      %v365 = vsel %vm261, %v223, 0
      %v368 = vsel %vm261, %v224, 0
      %v371 = vsel %vm261, %v225, 0
      %v374 = vsel %vm261, %v226, 0
      %v377 = vsel %vm261, %v227, 0
      %v380 = vsel %vm261, %v228, 0
      %v383 = vsel %vm261, %v229, 0
      %v386 = vsel %vm261, %v230, 0
      %v389 = vsel %vm261, %v231, 0
      %v392 = vsel %vm261, %v232, 0
      %v395 = vsel %vm261, %v233, 0
      %v398 = vsel %vm261, %v234, 0
      %v401 = vsel %vm261, %v235, 0
      %v404 = vsel %vm261, %v236, 0
      %v407 = vsel %vm261, %v237, 0
      %v410 = vsel %vm261, %v238, 0
      %v413 = vsel %vm261, %v239, 0
      %v416 = vsel %vm261, %v240, 0
      %v419 = vsel %vm261, %v241, 0
      %v422 = vsel %vm261, %v242, 0
      %v425 = vsel %vm261, %v243, 0
      %v428 = vsel %vm261, %v244, 0
      %v431 = vsel %vm261, %v245, 0
      %v434 = vsel %vm261, %v246, 0
      %v437 = vsel %vm261, %v247, 0
      %v440 = vsel %vm261, %v248, 0
      %v443 = vsel %vm261, %v249, 0
      %v446 = vsel %vm261, %v250, 0
      %v449 = vsel %vm261, %v251, 0
      %v452 = vsel %vm261, %v252, 0
      %454 = vmatprep.subr.mxu0 0.0
      %455 = vmatpush1.msra.mxu0 %v253
      %456 = vmatprep.subr.mxu0 0.0
      %457 = vmatpush1.msra.mxu0 0.0
      %458 = vmatprep.subr.mxu0 0.0
      %459 = vmatpush1.msra.mxu0 0.0
      %460 = vmatprep.subr.mxu0 0.0
      %461 = vmatpush1.msra.mxu0 0.0
      %462 = vmatprep.subr.mxu0 0.0
      %463 = vmatpush1.msra.mxu0 0.0
      %464 = vmatprep.subr.mxu0 0.0
      %465 = vmatpush1.msra.mxu0 0.0
      %466 = vmatprep.subr.mxu0 0.0
      %467 = vmatpush1.msra.mxu0 0.0
      %468 = vmatprep.subr.mxu0 0.0
      %469 = vmatpush1.msra.mxu0 0.0
      %470 = vmatprep.subr.mxu0 0.0
      %471 = vmatpush1.msra.mxu0 0.0
      %472 = vmatprep.subr.mxu0 0.0
      %473 = vmatpush1.msra.mxu0 0.0
      %474 = vmatprep.subr.mxu0 0.0
      %475 = vmatpush1.msra.mxu0 0.0
      %476 = vmatprep.subr.mxu0 0.0
      %477 = vmatpush1.msra.mxu0 0.0
      %478 = vmatprep.subr.mxu0 0.0
      %479 = vmatpush1.msra.mxu0 0.0
      %480 = vmatprep.subr.mxu0 0.0
      %481 = vmatpush1.msra.mxu0 0.0
      %482 = vmatprep.subr.mxu0 0.0
      %483 = vmatpush1.msra.mxu0 0.0
      %484 = vmatprep.subr.mxu0 0.0
      %485 = vmatpush1.msra.mxu0 0.0
      %486 = vmatprep.subr.mxu0 0.0
      %487 = vmatpush1.msra.mxu0 0.0
      %488 = vmatprep.subr.mxu0 0.0
      %489 = vmatpush1.msra.mxu0 0.0
      %490 = vmatprep.subr.mxu0 0.0
      %491 = vmatpush1.msra.mxu0 0.0
      %492 = vmatprep.subr.mxu0 0.0
      %493 = vmatpush1.msra.mxu0 0.0
      %494 = vmatprep.subr.mxu0 0.0
      %495 = vmatpush1.msra.mxu0 0.0
      %496 = vmatprep.subr.mxu0 0.0
      %497 = vmatpush1.msra.mxu0 0.0
      %498 = vmatprep.subr.mxu0 0.0
      %499 = vmatpush1.msra.mxu0 0.0
      %500 = vmatprep.subr.mxu0 0.0
      %501 = vmatpush1.msra.mxu0 0.0
      %502 = vmatprep.subr.mxu0 0.0
      %503 = vmatpush1.msra.mxu0 0.0
      %504 = vmatprep.subr.mxu0 0.0
      %505 = vmatpush1.msra.mxu0 0.0
      %506 = vmatprep.subr.mxu0 0.0
      %507 = vmatpush1.msra.mxu0 0.0
      %508 = vmatprep.subr.mxu0 0.0
      %509 = vmatpush1.msra.mxu0 0.0
      %510 = vmatprep.subr.mxu0 0.0
      %511 = vmatpush1.msra.mxu0 0.0
      %512 = vmatprep.subr.mxu0 0.0
      %513 = vmatpush1.msra.mxu0 0.0
      %514 = vmatprep.subr.mxu0 0.0
      %515 = vmatpush1.msra.mxu0 0.0
      %516 = vmatprep.subr.mxu0 0.0
      %517 = vmatpush1.msra.mxu0 0.0
      %518 = vmatprep.mubr.f32.mxu0 0.0
      %519 = vmatmul.mubr.f32.gmra.mrb[0].mxu0 %v263
      %v520 = vpop.f32.mrb[0].mxu0
      %v521 = vadd.f32 %v259, %v520
      %v522 = vpop.f32.mrb[0].mxu0
      %523 = vmatprep.mubr.f32.mxu0 0.0
      %524 = vmatmul.mubr.f32.gmra.mrb[0].mxu0 %v266
      %v525 = vpop.f32.mrb[0].mxu0
      %v526 = vadd.f32 %v259, %v525
      %v527 = vpop.f32.mrb[0].mxu0
      %528 = vmatprep.mubr.f32.mxu0 0.0
      %529 = vmatmul.mubr.f32.gmra.mrb[0].mxu0 %v269
      %v530 = vpop.f32.mrb[0].mxu0
      %v531 = vadd.f32 %v259, %v530
      %v532 = vpop.f32.mrb[0].mxu0
      %533 = vmatprep.mubr.f32.mxu0 0.0
      %534 = vmatmul.mubr.f32.gmra.mrb[0].mxu0 %v272
      %v535 = vpop.f32.mrb[0].mxu0
      %v536 = vadd.f32 %v259, %v535
      %v537 = vpop.f32.mrb[0].mxu0
      %538 = vmatprep.mubr.f32.mxu0 0.0
      %539 = vmatmul.mubr.f32.gmra.mrb[0].mxu0 %v275
      %v540 = vpop.f32.mrb[0].mxu0
      %v541 = vadd.f32 %v259, %v540
      %v542 = vpop.f32.mrb[0].mxu0
      %543 = vmatprep.mubr.f32.mxu0 0.0
      %544 = vmatmul.mubr.f32.gmra.mrb[0].mxu0 %v278
      %v545 = vpop.f32.mrb[0].mxu0
      %v546 = vadd.f32 %v259, %v545
      %v547 = vpop.f32.mrb[0].mxu0
      %548 = vmatprep.mubr.f32.mxu0 0.0
      %549 = vmatmul.mubr.f32.gmra.mrb[0].mxu0 %v281
      %v550 = vpop.f32.mrb[0].mxu0
      %v551 = vadd.f32 %v259, %v550
      %v552 = vpop.f32.mrb[0].mxu0
      %553 = vmatprep.mubr.f32.mxu0 0.0
      %554 = vmatmul.mubr.f32.gmra.mrb[0].mxu0 %v284
      %v555 = vpop.f32.mrb[0].mxu0
      %v556 = vadd.f32 %v259, %v555
      %v557 = vpop.f32.mrb[0].mxu0
      %558 = vmatprep.mubr.f32.mxu0 0.0
      %559 = vmatmul.mubr.f32.gmra.mrb[0].mxu0 %v287
      %v560 = vpop.f32.mrb[0].mxu0
      %v561 = vadd.f32 %v259, %v560
      %v562 = vpop.f32.mrb[0].mxu0
      %563 = vmatprep.mubr.f32.mxu0 0.0
      %564 = vmatmul.mubr.f32.gmra.mrb[0].mxu0 %v290
      %v565 = vpop.f32.mrb[0].mxu0
      %v566 = vadd.f32 %v259, %v565
      %v567 = vpop.f32.mrb[0].mxu0
      %568 = vmatprep.mubr.f32.mxu0 0.0
      %569 = vmatmul.mubr.f32.gmra.mrb[0].mxu0 %v293
      %v570 = vpop.f32.mrb[0].mxu0
      %v571 = vadd.f32 %v259, %v570
      %v572 = vpop.f32.mrb[0].mxu0
      %573 = vmatprep.mubr.f32.mxu0 0.0
      %574 = vmatmul.mubr.f32.gmra.mrb[0].mxu0 %v296
      %v575 = vpop.f32.mrb[0].mxu0
      %v576 = vadd.f32 %v259, %v575
      %v577 = vpop.f32.mrb[0].mxu0
      %578 = vmatprep.mubr.f32.mxu0 0.0
      %579 = vmatmul.mubr.f32.gmra.mrb[0].mxu0 %v299
      %v580 = vpop.f32.mrb[0].mxu0
      %v581 = vadd.f32 %v259, %v580
      %v582 = vpop.f32.mrb[0].mxu0
      %583 = vmatprep.mubr.f32.mxu0 0.0
      %584 = vmatmul.mubr.f32.gmra.mrb[0].mxu0 %v302
      %v585 = vpop.f32.mrb[0].mxu0
      %v586 = vadd.f32 %v259, %v585
      %v587 = vpop.f32.mrb[0].mxu0
      %588 = vmatprep.mubr.f32.mxu0 0.0
      %589 = vmatmul.mubr.f32.gmra.mrb[0].mxu0 %v305
      %v590 = vpop.f32.mrb[0].mxu0
      %v591 = vadd.f32 %v259, %v590
      %v592 = vpop.f32.mrb[0].mxu0
      %593 = vmatprep.mubr.f32.mxu0 0.0
      %594 = vmatmul.mubr.f32.gmra.mrb[0].mxu0 %v308
      %v595 = vpop.f32.mrb[0].mxu0
      %v596 = vadd.f32 %v259, %v595
      %v597 = vpop.f32.mrb[0].mxu0
      %598 = vmatprep.mubr.f32.mxu0 0.0
      %599 = vmatmul.mubr.f32.gmra.mrb[0].mxu0 %v311
      %v600 = vpop.f32.mrb[0].mxu0
      %v601 = vadd.f32 %v259, %v600
      %v602 = vpop.f32.mrb[0].mxu0
      %603 = vmatprep.mubr.f32.mxu0 0.0
      %604 = vmatmul.mubr.f32.gmra.mrb[0].mxu0 %v314
      %v605 = vpop.f32.mrb[0].mxu0
      %v606 = vadd.f32 %v259, %v605
      %v607 = vpop.f32.mrb[0].mxu0
      %608 = vmatprep.mubr.f32.mxu0 0.0
      %609 = vmatmul.mubr.f32.gmra.mrb[0].mxu0 %v317
      %v610 = vpop.f32.mrb[0].mxu0
      %v611 = vadd.f32 %v259, %v610
      %v612 = vpop.f32.mrb[0].mxu0
      %613 = vmatprep.mubr.f32.mxu0 0.0
      %614 = vmatmul.mubr.f32.gmra.mrb[0].mxu0 %v320
      %v615 = vpop.f32.mrb[0].mxu0
      %v616 = vadd.f32 %v259, %v615
      %v617 = vpop.f32.mrb[0].mxu0
      %618 = vmatprep.mubr.f32.mxu0 0.0
      %619 = vmatmul.mubr.f32.gmra.mrb[0].mxu0 %v323
      %v620 = vpop.f32.mrb[0].mxu0
      %v621 = vadd.f32 %v259, %v620
      %v622 = vpop.f32.mrb[0].mxu0
      %623 = vmatprep.mubr.f32.mxu0 0.0
      %624 = vmatmul.mubr.f32.gmra.mrb[0].mxu0 %v326
      %v625 = vpop.f32.mrb[0].mxu0
      %v626 = vadd.f32 %v259, %v625
      %v627 = vpop.f32.mrb[0].mxu0
      %628 = vmatprep.mubr.f32.mxu0 0.0
      %629 = vmatmul.mubr.f32.gmra.mrb[0].mxu0 %v329
      %v630 = vpop.f32.mrb[0].mxu0
      %v631 = vadd.f32 %v259, %v630
      %v632 = vpop.f32.mrb[0].mxu0
      %633 = vmatprep.mubr.f32.mxu0 0.0
      %634 = vmatmul.mubr.f32.gmra.mrb[0].mxu0 %v332
      %v635 = vpop.f32.mrb[0].mxu0
      %v636 = vadd.f32 %v259, %v635
      %v637 = vpop.f32.mrb[0].mxu0
      %638 = vmatprep.mubr.f32.mxu0 0.0
      %639 = vmatmul.mubr.f32.gmra.mrb[0].mxu0 %v335
      %v640 = vpop.f32.mrb[0].mxu0
      %v641 = vadd.f32 %v259, %v640
      %v642 = vpop.f32.mrb[0].mxu0
      %643 = vmatprep.mubr.f32.mxu0 0.0
      %644 = vmatmul.mubr.f32.gmra.mrb[0].mxu0 %v338
      %v645 = vpop.f32.mrb[0].mxu0
      %v646 = vadd.f32 %v259, %v645
      %v647 = vpop.f32.mrb[0].mxu0
      %648 = vmatprep.mubr.f32.mxu0 0.0
      %649 = vmatmul.mubr.f32.gmra.mrb[0].mxu0 %v341
      %v650 = vpop.f32.mrb[0].mxu0
      %v651 = vadd.f32 %v259, %v650
      %v652 = vpop.f32.mrb[0].mxu0
      %653 = vmatprep.mubr.f32.mxu0 0.0
      %654 = vmatmul.mubr.f32.gmra.mrb[0].mxu0 %v344
      %v655 = vpop.f32.mrb[0].mxu0
      %v656 = vadd.f32 %v259, %v655
      %v657 = vpop.f32.mrb[0].mxu0
      %658 = vmatprep.mubr.f32.mxu0 0.0
      %659 = vmatmul.mubr.f32.gmra.mrb[0].mxu0 %v347
      %v660 = vpop.f32.mrb[0].mxu0
      %v661 = vadd.f32 %v259, %v660
      %v662 = vpop.f32.mrb[0].mxu0
      %663 = vmatprep.mubr.f32.mxu0 0.0
      %664 = vmatmul.mubr.f32.gmra.mrb[0].mxu0 %v350
      %v665 = vpop.f32.mrb[0].mxu0
      %v666 = vadd.f32 %v259, %v665
      %v667 = vpop.f32.mrb[0].mxu0
      %668 = vmatprep.mubr.f32.mxu0 0.0
      %669 = vmatmul.mubr.f32.gmra.mrb[0].mxu0 %v353
      %v670 = vpop.f32.mrb[0].mxu0
      %v671 = vadd.f32 %v259, %v670
      %v672 = vpop.f32.mrb[0].mxu0
      %673 = vmatprep.mubr.f32.mxu0 0.0
      %674 = vmatmul.mubr.f32.gmra.mrb[0].mxu0 %v356
      %v675 = vpop.f32.mrb[0].mxu0
      %v676 = vadd.f32 %v259, %v675
      %v677 = vpop.f32.mrb[0].mxu0
      %678 = vmatprep.mubr.f32.mxu0 0.0
      %679 = vmatmul.mubr.f32.gmra.mrb[0].mxu0 %v359
      %v680 = vpop.f32.mrb[0].mxu0
      %v681 = vadd.f32 %v259, %v680
      %v682 = vpop.f32.mrb[0].mxu0
      %683 = vmatprep.mubr.f32.mxu0 0.0
      %684 = vmatmul.mubr.f32.gmra.mrb[0].mxu0 %v362
      %v685 = vpop.f32.mrb[0].mxu0
      %v686 = vadd.f32 %v259, %v685
      %v687 = vpop.f32.mrb[0].mxu0
      %688 = vmatprep.mubr.f32.mxu0 0.0
      %689 = vmatmul.mubr.f32.gmra.mrb[0].mxu0 %v365
      %v690 = vpop.f32.mrb[0].mxu0
      %v691 = vadd.f32 %v259, %v690
      %v692 = vpop.f32.mrb[0].mxu0
      %693 = vmatprep.mubr.f32.mxu0 0.0
      %694 = vmatmul.mubr.f32.gmra.mrb[0].mxu0 %v368
      %v695 = vpop.f32.mrb[0].mxu0
      %v696 = vadd.f32 %v259, %v695
      %v697 = vpop.f32.mrb[0].mxu0
      %698 = vmatprep.mubr.f32.mxu0 0.0
      %699 = vmatmul.mubr.f32.gmra.mrb[0].mxu0 %v371
      %v700 = vpop.f32.mrb[0].mxu0
      %v701 = vadd.f32 %v259, %v700
      %v702 = vpop.f32.mrb[0].mxu0
      %703 = vmatprep.mubr.f32.mxu0 0.0
      %704 = vmatmul.mubr.f32.gmra.mrb[0].mxu0 %v374
      %v705 = vpop.f32.mrb[0].mxu0
      %v706 = vadd.f32 %v259, %v705
      %v707 = vpop.f32.mrb[0].mxu0
      %708 = vmatprep.mubr.f32.mxu0 0.0
      %709 = vmatmul.mubr.f32.gmra.mrb[0].mxu0 %v377
      %v710 = vpop.f32.mrb[0].mxu0
      %v711 = vadd.f32 %v259, %v710
      %v712 = vpop.f32.mrb[0].mxu0
      %713 = vmatprep.mubr.f32.mxu0 0.0
      %714 = vmatmul.mubr.f32.gmra.mrb[0].mxu0 %v380
      %v715 = vpop.f32.mrb[0].mxu0
      %v716 = vadd.f32 %v259, %v715
      %v717 = vpop.f32.mrb[0].mxu0
      %718 = vmatprep.mubr.f32.mxu0 0.0
      %719 = vmatmul.mubr.f32.gmra.mrb[0].mxu0 %v383
      %v720 = vpop.f32.mrb[0].mxu0
      %v721 = vadd.f32 %v259, %v720
      %v722 = vpop.f32.mrb[0].mxu0
      %723 = vmatprep.mubr.f32.mxu0 0.0
      %724 = vmatmul.mubr.f32.gmra.mrb[0].mxu0 %v386
      %v725 = vpop.f32.mrb[0].mxu0
      %v726 = vadd.f32 %v259, %v725
      %v727 = vpop.f32.mrb[0].mxu0
      %728 = vmatprep.mubr.f32.mxu0 0.0
      %729 = vmatmul.mubr.f32.gmra.mrb[0].mxu0 %v389
      %v730 = vpop.f32.mrb[0].mxu0
      %v731 = vadd.f32 %v259, %v730
      %v732 = vpop.f32.mrb[0].mxu0
      %733 = vmatprep.mubr.f32.mxu0 0.0
      %734 = vmatmul.mubr.f32.gmra.mrb[0].mxu0 %v392
      %v735 = vpop.f32.mrb[0].mxu0
      %v736 = vadd.f32 %v259, %v735
      %v737 = vpop.f32.mrb[0].mxu0
      %738 = vmatprep.mubr.f32.mxu0 0.0
      %739 = vmatmul.mubr.f32.gmra.mrb[0].mxu0 %v395
      %v740 = vpop.f32.mrb[0].mxu0
      %v741 = vadd.f32 %v259, %v740
      %v742 = vpop.f32.mrb[0].mxu0
      %743 = vmatprep.mubr.f32.mxu0 0.0
      %744 = vmatmul.mubr.f32.gmra.mrb[0].mxu0 %v398
      %v745 = vpop.f32.mrb[0].mxu0
      %v746 = vadd.f32 %v259, %v745
      %v747 = vpop.f32.mrb[0].mxu0
      %748 = vmatprep.mubr.f32.mxu0 0.0
      %749 = vmatmul.mubr.f32.gmra.mrb[0].mxu0 %v401
      %v750 = vpop.f32.mrb[0].mxu0
      %v751 = vadd.f32 %v259, %v750
      %v752 = vpop.f32.mrb[0].mxu0
      %753 = vmatprep.mubr.f32.mxu0 0.0
      %754 = vmatmul.mubr.f32.gmra.mrb[0].mxu0 %v404
      %v755 = vpop.f32.mrb[0].mxu0
      %v756 = vadd.f32 %v259, %v755
      %v757 = vpop.f32.mrb[0].mxu0
      %758 = vmatprep.mubr.f32.mxu0 0.0
      %759 = vmatmul.mubr.f32.gmra.mrb[0].mxu0 %v407
      %v760 = vpop.f32.mrb[0].mxu0
      %v761 = vadd.f32 %v259, %v760
      %v762 = vpop.f32.mrb[0].mxu0
      %763 = vmatprep.mubr.f32.mxu0 0.0
      %764 = vmatmul.mubr.f32.gmra.mrb[0].mxu0 %v410
      %v765 = vpop.f32.mrb[0].mxu0
      %v766 = vadd.f32 %v259, %v765
      %v767 = vpop.f32.mrb[0].mxu0
      %768 = vmatprep.mubr.f32.mxu0 0.0
      %769 = vmatmul.mubr.f32.gmra.mrb[0].mxu0 %v413
      %v770 = vpop.f32.mrb[0].mxu0
      %v771 = vadd.f32 %v259, %v770
      %v772 = vpop.f32.mrb[0].mxu0
      %773 = vmatprep.mubr.f32.mxu0 0.0
      %774 = vmatmul.mubr.f32.gmra.mrb[0].mxu0 %v416
      %v775 = vpop.f32.mrb[0].mxu0
      %v776 = vadd.f32 %v259, %v775
      %v777 = vpop.f32.mrb[0].mxu0
      %778 = vmatprep.mubr.f32.mxu0 0.0
      %779 = vmatmul.mubr.f32.gmra.mrb[0].mxu0 %v419
      %v780 = vpop.f32.mrb[0].mxu0
      %v781 = vadd.f32 %v259, %v780
      %v782 = vpop.f32.mrb[0].mxu0
      %783 = vmatprep.mubr.f32.mxu0 0.0
      %784 = vmatmul.mubr.f32.gmra.mrb[0].mxu0 %v422
      %v785 = vpop.f32.mrb[0].mxu0
      %v786 = vadd.f32 %v259, %v785
      %v787 = vpop.f32.mrb[0].mxu0
      %788 = vmatprep.mubr.f32.mxu0 0.0
      %789 = vmatmul.mubr.f32.gmra.mrb[0].mxu0 %v425
      %v790 = vpop.f32.mrb[0].mxu0
      %v791 = vadd.f32 %v259, %v790
      %v792 = vpop.f32.mrb[0].mxu0
      %793 = vmatprep.mubr.f32.mxu0 0.0
      %794 = vmatmul.mubr.f32.gmra.mrb[0].mxu0 %v428
      %v795 = vpop.f32.mrb[0].mxu0
      %v796 = vadd.f32 %v259, %v795
      %v797 = vpop.f32.mrb[0].mxu0
      %798 = vmatprep.mubr.f32.mxu0 0.0
      %799 = vmatmul.mubr.f32.gmra.mrb[0].mxu0 %v431
      %v800 = vpop.f32.mrb[0].mxu0
      %v801 = vadd.f32 %v259, %v800
      %v802 = vpop.f32.mrb[0].mxu0
      %803 = vmatprep.mubr.f32.mxu0 0.0
      %804 = vmatmul.mubr.f32.gmra.mrb[0].mxu0 %v434
      %v805 = vpop.f32.mrb[0].mxu0
      %v806 = vadd.f32 %v259, %v805
      %v807 = vpop.f32.mrb[0].mxu0
      %808 = vmatprep.mubr.f32.mxu0 0.0
      %809 = vmatmul.mubr.f32.gmra.mrb[0].mxu0 %v437
      %v810 = vpop.f32.mrb[0].mxu0
      %v811 = vadd.f32 %v259, %v810
      %v812 = vpop.f32.mrb[0].mxu0
      %813 = vmatprep.mubr.f32.mxu0 0.0
      %814 = vmatmul.mubr.f32.gmra.mrb[0].mxu0 %v440
      %v815 = vpop.f32.mrb[0].mxu0
      %v816 = vadd.f32 %v259, %v815
      %v817 = vpop.f32.mrb[0].mxu0
      %818 = vmatprep.mubr.f32.mxu0 0.0
      %819 = vmatmul.mubr.f32.gmra.mrb[0].mxu0 %v443
      %v820 = vpop.f32.mrb[0].mxu0
      %v821 = vadd.f32 %v259, %v820
      %v822 = vpop.f32.mrb[0].mxu0
      %823 = vmatprep.mubr.f32.mxu0 0.0
      %824 = vmatmul.mubr.f32.gmra.mrb[0].mxu0 %v446
      %v825 = vpop.f32.mrb[0].mxu0
      %v826 = vadd.f32 %v259, %v825
      %v827 = vpop.f32.mrb[0].mxu0
      %828 = vmatprep.mubr.f32.mxu0 0.0
      %829 = vmatmul.mubr.f32.gmra.mrb[0].mxu0 %v449
      %v830 = vpop.f32.mrb[0].mxu0
      %v831 = vadd.f32 %v259, %v830
      %v832 = vpop.f32.mrb[0].mxu0
      %833 = vmatprep.mubr.f32.mxu0 0.0
      %834 = vmatmul.mubr.f32.gmra.mrb[0].mxu0 %v452
      %v835 = vpop.f32.mrb[0].mxu0
      %v836 = vadd.f32 %v259, %v835
      %v837 = vpop.f32.mrb[0].mxu0
      %838 = vdwg.mxu0
      %v839 = vadd.f32 %v521, %v526
      %v840 = vadd.f32 %v839, %v531
      %v841 = vadd.f32 %v840, %v536
      %v842 = vadd.f32 %v841, %v541
      %v843 = vadd.f32 %v842, %v546
      %v844 = vadd.f32 %v843, %v551
      %v845 = vadd.f32 %v844, %v556
      %v846 = vadd.f32 %v845, %v561
      %v847 = vadd.f32 %v846, %v566
      %v848 = vadd.f32 %v847, %v571
      %v849 = vadd.f32 %v848, %v576
      %v850 = vadd.f32 %v849, %v581
      %v851 = vadd.f32 %v850, %v586
      %v852 = vadd.f32 %v851, %v591
      %v853 = vadd.f32 %v852, %v596
      %v854 = vadd.f32 %v853, %v601
      %v855 = vadd.f32 %v854, %v606
      %v856 = vadd.f32 %v855, %v611
      %v857 = vadd.f32 %v856, %v616
      %v858 = vadd.f32 %v857, %v621
      %v859 = vadd.f32 %v858, %v626
      %v860 = vadd.f32 %v859, %v631
      %v861 = vadd.f32 %v860, %v636
      %v862 = vadd.f32 %v861, %v641
      %v863 = vadd.f32 %v862, %v646
      %v864 = vadd.f32 %v863, %v651
      %v865 = vadd.f32 %v864, %v656
      %v866 = vadd.f32 %v865, %v661
      %v867 = vadd.f32 %v866, %v666
      %v868 = vadd.f32 %v867, %v671
      %v869 = vadd.f32 %v868, %v676
      %v870 = vadd.f32 %v869, %v681
      %v871 = vadd.f32 %v870, %v686
      %v872 = vadd.f32 %v871, %v691
      %v873 = vadd.f32 %v872, %v696
      %v874 = vadd.f32 %v873, %v701
      %v875 = vadd.f32 %v874, %v706
      %v876 = vadd.f32 %v875, %v711
      %v877 = vadd.f32 %v876, %v716
      %v878 = vadd.f32 %v877, %v721
      %v879 = vadd.f32 %v878, %v726
      %v880 = vadd.f32 %v879, %v731
      %v881 = vadd.f32 %v880, %v736
      %v882 = vadd.f32 %v881, %v741
      %v883 = vadd.f32 %v882, %v746
      %v884 = vadd.f32 %v883, %v751
      %v885 = vadd.f32 %v884, %v756
      %v886 = vadd.f32 %v885, %v761
      %v887 = vadd.f32 %v886, %v766
      %v888 = vadd.f32 %v887, %v771
      %v889 = vadd.f32 %v888, %v776
      %v890 = vadd.f32 %v889, %v781
      %v891 = vadd.f32 %v890, %v786
      %v892 = vadd.f32 %v891, %v791
      %v893 = vadd.f32 %v892, %v796
      %v894 = vadd.f32 %v893, %v801
      %v895 = vadd.f32 %v894, %v806
      %v896 = vadd.f32 %v895, %v811
      %v897 = vadd.f32 %v896, %v816
      %v898 = vadd.f32 %v897, %v821
      %v899 = vadd.f32 %v898, %v826
      %v900 = vadd.f32 %v899, %v831
      %v901 = vadd.f32 %v900, %v836
      %v902 = vrot.slane %v901, 4
      %v903 = vadd.f32 %v901, %v902
      %v904 = vrot.slane %v903, 2
      %v905 = vadd.f32 %v903, %v904
      %v906 = vrot.slane %v905, 1
      %v907 = vadd.f32 %v905, %v906
      %v908 = vmul.f32 %v521, %v521
      %v909 = vmul.f32 %v526, %v526
      %v910 = vmul.f32 %v531, %v531
      %v911 = vmul.f32 %v536, %v536
      %v912 = vmul.f32 %v541, %v541
      %v913 = vmul.f32 %v546, %v546
      %v914 = vmul.f32 %v551, %v551
      %v915 = vmul.f32 %v556, %v556
      %v916 = vmul.f32 %v561, %v561
      %v917 = vmul.f32 %v566, %v566
      %v918 = vmul.f32 %v571, %v571
      %v919 = vmul.f32 %v576, %v576
      %v920 = vmul.f32 %v581, %v581
      %v921 = vmul.f32 %v586, %v586
      %v922 = vmul.f32 %v591, %v591
      %v923 = vmul.f32 %v596, %v596
      %v924 = vmul.f32 %v601, %v601
      %v925 = vmul.f32 %v606, %v606
      %v926 = vmul.f32 %v611, %v611
      %v927 = vmul.f32 %v616, %v616
      %v928 = vmul.f32 %v621, %v621
      %v929 = vmul.f32 %v626, %v626
      %v930 = vmul.f32 %v631, %v631
      %v931 = vmul.f32 %v636, %v636
      %v932 = vmul.f32 %v641, %v641
      %v933 = vmul.f32 %v646, %v646
      %v934 = vmul.f32 %v651, %v651
      %v935 = vmul.f32 %v656, %v656
      %v936 = vmul.f32 %v661, %v661
      %v937 = vmul.f32 %v666, %v666
      %v938 = vmul.f32 %v671, %v671
      %v939 = vmul.f32 %v676, %v676
      %v940 = vmul.f32 %v681, %v681
      %v941 = vmul.f32 %v686, %v686
      %v942 = vmul.f32 %v691, %v691
      %v943 = vmul.f32 %v696, %v696
      %v944 = vmul.f32 %v701, %v701
      %v945 = vmul.f32 %v706, %v706
      %v946 = vmul.f32 %v711, %v711
      %v947 = vmul.f32 %v716, %v716
      %v948 = vmul.f32 %v721, %v721
      %v949 = vmul.f32 %v726, %v726
      %v950 = vmul.f32 %v731, %v731
      %v951 = vmul.f32 %v736, %v736
      %v952 = vmul.f32 %v741, %v741
      %v953 = vmul.f32 %v746, %v746
      %v954 = vmul.f32 %v751, %v751
      %v955 = vmul.f32 %v756, %v756
      %v956 = vmul.f32 %v761, %v761
      %v957 = vmul.f32 %v766, %v766
      %v958 = vmul.f32 %v771, %v771
      %v959 = vmul.f32 %v776, %v776
      %v960 = vmul.f32 %v781, %v781
      %v961 = vmul.f32 %v786, %v786
      %v962 = vmul.f32 %v791, %v791
      %v963 = vmul.f32 %v796, %v796
      %v964 = vmul.f32 %v801, %v801
      %v965 = vmul.f32 %v806, %v806
      %v966 = vmul.f32 %v811, %v811
      %v967 = vmul.f32 %v816, %v816
      %v968 = vmul.f32 %v821, %v821
      %v969 = vmul.f32 %v826, %v826
      %v970 = vmul.f32 %v831, %v831
      %v971 = vmul.f32 %v836, %v836
      %v972 = vadd.f32 %v908, %v909
      %v973 = vadd.f32 %v972, %v910
      %v974 = vadd.f32 %v973, %v911
      %v975 = vadd.f32 %v974, %v912
      %v976 = vadd.f32 %v975, %v913
      %v977 = vadd.f32 %v976, %v914
      %v978 = vadd.f32 %v977, %v915
      %v979 = vadd.f32 %v978, %v916
      %v980 = vadd.f32 %v979, %v917
      %v981 = vadd.f32 %v980, %v918
      %v982 = vadd.f32 %v981, %v919
      %v983 = vadd.f32 %v982, %v920
      %v984 = vadd.f32 %v983, %v921
      %v985 = vadd.f32 %v984, %v922
      %v986 = vadd.f32 %v985, %v923
      %v987 = vadd.f32 %v986, %v924
      %v988 = vadd.f32 %v987, %v925
      %v989 = vadd.f32 %v988, %v926
      %v990 = vadd.f32 %v989, %v927
      %v991 = vadd.f32 %v990, %v928
      %v992 = vadd.f32 %v991, %v929
      %v993 = vadd.f32 %v992, %v930
      %v994 = vadd.f32 %v993, %v931
      %v995 = vadd.f32 %v994, %v932
      %v996 = vadd.f32 %v995, %v933
      %v997 = vadd.f32 %v996, %v934
      %v998 = vadd.f32 %v997, %v935
      %v999 = vadd.f32 %v998, %v936
      %v1000 = vadd.f32 %v999, %v937
      %v1001 = vadd.f32 %v1000, %v938
      %v1002 = vadd.f32 %v1001, %v939
      %v1003 = vadd.f32 %v1002, %v940
      %v1004 = vadd.f32 %v1003, %v941
      %v1005 = vadd.f32 %v1004, %v942
      %v1006 = vadd.f32 %v1005, %v943
      %v1007 = vadd.f32 %v1006, %v944
      %v1008 = vadd.f32 %v1007, %v945
      %v1009 = vadd.f32 %v1008, %v946
      %v1010 = vadd.f32 %v1009, %v947
      %v1011 = vadd.f32 %v1010, %v948
      %v1012 = vadd.f32 %v1011, %v949
      %v1013 = vadd.f32 %v1012, %v950
      %v1014 = vadd.f32 %v1013, %v951
      %v1015 = vadd.f32 %v1014, %v952
      %v1016 = vadd.f32 %v1015, %v953
      %v1017 = vadd.f32 %v1016, %v954
      %v1018 = vadd.f32 %v1017, %v955
      %v1019 = vadd.f32 %v1018, %v956
      %v1020 = vadd.f32 %v1019, %v957
      %v1021 = vadd.f32 %v1020, %v958
      %v1022 = vadd.f32 %v1021, %v959
      %v1023 = vadd.f32 %v1022, %v960
      %v1024 = vadd.f32 %v1023, %v961
      %v1025 = vadd.f32 %v1024, %v962
      %v1026 = vadd.f32 %v1025, %v963
      %v1027 = vadd.f32 %v1026, %v964
      %v1028 = vadd.f32 %v1027, %v965
      %v1029 = vadd.f32 %v1028, %v966
      %v1030 = vadd.f32 %v1029, %v967
      %v1031 = vadd.f32 %v1030, %v968
      %v1032 = vadd.f32 %v1031, %v969
      %v1033 = vadd.f32 %v1032, %v970
      %v1034 = vadd.f32 %v1033, %v971
      %v1035 = vrot.slane %v1034, 4
      %v1036 = vadd.f32 %v1034, %v1035
      %v1037 = vrot.slane %v1036, 2
      %v1038 = vadd.f32 %v1036, %v1037
      %v1039 = vrot.slane %v1038, 1
      %v1040 = vadd.f32 %v1038, %v1039
      %v1041 = vld [vmem:[%s3] sm:$0x1]
      %v1042 = vadd.f32 %v1041, %v907
      %1043 = vst [vmem:[%s3] sm:$0x1] %v1042
      %v1044 = vld [vmem:[%s4] sm:$0x1]
      %v1045 = vadd.f32 %v1044, %v1040
      %1046 = vst [vmem:[%s4] sm:$0x1] %v1045
      // Predicated region
      $region37: #{decoder_forward.3} parent=31 // pred_check
        %p1047 = pneg %p97
      $region38: #{decoder_forward.3} parent=31 // pred_check_branch
        %1049 = sbr.rel (%p1047) target = $region40
      $region39: #{decoder_forward.3} parent=31 // pred_region
        _
      $region40: #{decoder_forward.3} parent=31 // pred_fallthru
        _
      // Predicated region
      $region41: #{decoder_forward.3} parent=31 // pred_check
        %p1050 = pneg %p118
      $region42: #{decoder_forward.3} parent=31 // pred_check_branch
        %1052 = sbr.rel (%p1050) target = $region44
      $region43: #{decoder_forward.3} parent=31 // pred_region
        _
      $region44: #{decoder_forward.3} parent=31 // pred_fallthru
        _
      // Predicated region
      $region45: #{decoder_forward.3} parent=31 // pred_check
        %p1053 = pneg %p97
      $region46: #{decoder_forward.3} parent=31 // pred_check_branch
        %1055 = sbr.rel (%p1053) target = $region48
      $region47: #{decoder_forward.3} parent=31 // pred_region
        _
      $region48: #{decoder_forward.3} parent=31 // pred_fallthru
        _
      // Predicated region
      $region49: #{decoder_forward.3} parent=31 // pred_check
        %p1056 = pneg %p118
      $region50: #{decoder_forward.3} parent=31 // pred_check_branch
        %1058 = sbr.rel (%p1056) target = $region52
      $region51: #{decoder_forward.3} parent=31 // pred_region
        _
      $region52: #{decoder_forward.3} parent=31 // pred_fallthru
        _
    $region32: #{decoder_forward.3} parent=5 // pred_fallthru
      _
    %p1059 = scmp.le.s32.totalorder 2, %s11
    // Predicated region
    $region53: #{decoder_forward.3} parent=5 // pred_check
      %p1060 = pneg %p1059
    $region54: #{decoder_forward.3} parent=5 // pred_check_branch
      %1062 = sbr.rel (%p1060) target = $region56
    $region55: #{decoder_forward.3} parent=5 // pred_region
      %s1063 = ssub.s32 %s11, 2
    $region56: #{decoder_forward.3} parent=5 // pred_fallthru
      _
  $region6: #{decoder_forward.3} parent=0 // loop_footer
    %s15 = sadd.s32 1, %s11
  $region7: #{decoder_forward.3} parent=0 // loop_footer_branch
    %10 = sbr.rel target = $region3
  $region8: #{decoder_forward.3} parent=0 // loop_exit
    _

// kernel: decoder_forward.4
$region0: #{decoder_forward.4}
  #allocation0 [shape = 'u32[]', space=smem, size = 0x4, offset = 0x4, fixed_abs, tag = 'smem constant byte address 0x4 - core index']
  #allocation1 [shape = 'u32[144,128]{1,0:T(1,128)}', space=vmem, size = 0x12000, scoped, tag = 'internal scratch']
  %s0 = inlined_call_operand.vmem [shape: f32[1024,8], index: 0, kind: input, shape index: {}]
  %s1 = inlined_call_operand.vmem [shape: f32[8,128], index: 1, kind: input, shape index: {}]
  %s2 = inlined_call_operand.vmem [shape: f32[1,128], index: 2, kind: input, shape index: {}]
  %s3 = inlined_call_operand.vmem [shape: f32[1,128], index: 3, kind: input, shape index: {}]
  %s4 = inlined_call_operand.vmem [shape: f32[1,128], index: 4, kind: input, shape index: {}]
  %s5 = inlined_call_operand.vmem [shape: f32[128,128], index: 5, kind: input, shape index: {}]
  %s6 = inlined_call_operand.vmem [shape: f32[1,128], index: 6, kind: input, shape index: {}]
  %s7 = inlined_call_operand.vmem [shape: f32[1,128], index: 7, kind: output, shape index: {0}]
  %s8 = inlined_call_operand.vmem [shape: f32[1,128], index: 8, kind: output, shape index: {1}]
  %9 = xla_tuple %s7, %s8
  %s10 = sld [smem:[#allocation0]]
  $region73: #{decoder_forward.4} parent=0
    _
  %s12 = ssub.s32 1, %s10
  %s13 = scalar_select 0, %s12, %s10
  loop: start=0, step=1, limit=4
  $region2: #{decoder_forward.4} parent=0 // loop_pre_header
    _
  $region3: #{decoder_forward.4} parent=0 // loop_header
    %s15 = sphi 0, %s19
    %p16 = scmp.ge.s32.totalorder %s15, 4
    %s25 = sphi 0, %s27
    %s28 = sphi 0, %s25
    %s29 = sphi 0, %s28
    %s45 = sphi 0, %s29
    %s49 = sphi 0, %s49
    %s51 = sphi 0, %s49
    %s52 = sphi 0, %s51
    %s66 = sphi 0, %s52
    %s70 = sphi 0, %s70
    %s72 = sphi 0, %s70
    %s73 = sphi 0, %s72
    %s87 = sphi 0, %s73
    %s91 = sphi 0, %s91
    %s93 = sphi 0, %s91
    %s94 = sphi 0, %s93
    %s108 = sphi 0, %s94
    %s112 = sphi 0, %s112
    %s114 = sphi 0, %s112
    %s115 = sphi 0, %s114
    %s129 = sphi 0, %s115
    %s133 = sphi 0, %s133
    %s135 = sphi 0, %s133
    %s136 = sphi 0, %s135
    %s150 = sphi 0, %s136
    %s154 = sphi 0, %s154
    %s156 = sphi 0, %s154
    %s157 = sphi 0, %s156
    %s171 = sphi 0, %s157
    %s175 = sphi 0, %s175
    %s177 = sphi 0, %s175
    %s178 = sphi 0, %s177
    %s192 = sphi 0, %s178
    %s196 = sphi 0, %s196
    %s198 = sphi 0, %s196
    %s199 = sphi 0, %s198
    %s213 = sphi 0, %s199
  $region4: #{decoder_forward.4} parent=0 // loop_header_branch
    %18 = sbr.rel (%p16) target = $region8
  $region5: #{decoder_forward.4} parent=0 // loop_body
    %s20 = ssub.s32 %s15, 1
    %s21 = ssub.s32 %s15, 2
    %s22 = sadd.s32 %s15, 1
    %s23 = ssub.s32 %s15, %s22
    %p24 = scmp.eq.s32.totalorder %s23, 0
    %s26 = sadd.s32 %s25, 1
    %s27 = scalar_select %p24, %s25, %s26
    %p30 = pneg %p24
    %p31 = scmp.eq.s32.totalorder %s15, 1
    %p32 = por %p30, %p31
    %p33 = scmp.ne.s32.totalorder %s25, %s28
    %p34 = scmp.eq.s32.totalorder %s15, 0
    %p35 = por %p33, %p34
    %p36 = scmp.ne.s32.totalorder %s25, %s28
    %p37 = scmp.eq.s32.totalorder %s20, 1
    %p38 = por %p36, %p37
    %p39 = scmp.ne.s32.totalorder %s28, %s29
    %p40 = scmp.eq.s32.totalorder %s20, 0
    %p41 = por %p39, %p40
    %p42 = scmp.ne.s32.totalorder %s28, %s29
    %p43 = scmp.eq.s32.totalorder %s21, 1
    %p44 = por %p42, %p43
    %p46 = scmp.ne.s32.totalorder %s29, %s45
    %p47 = scmp.eq.s32.totalorder %s21, 0
    %p48 = por %p46, %p47
    %s50 = sadd.s32 %s49, 1
    %p53 = scmp.eq.s32.totalorder %s15, 1
    %p54 = scmp.ne.s32.totalorder %s49, %s51
    %p55 = scmp.eq.s32.totalorder %s15, 0
    %p56 = por %p54, %p55
    %p57 = scmp.ne.s32.totalorder %s49, %s51
    %p58 = scmp.eq.s32.totalorder %s20, 1
    %p59 = por %p57, %p58
    %p60 = scmp.ne.s32.totalorder %s51, %s52
    %p61 = scmp.eq.s32.totalorder %s20, 0
    %p62 = por %p60, %p61
    %p63 = scmp.ne.s32.totalorder %s51, %s52
    %p64 = scmp.eq.s32.totalorder %s21, 1
    %p65 = por %p63, %p64
    %p67 = scmp.ne.s32.totalorder %s52, %s66
    %p68 = scmp.eq.s32.totalorder %s21, 0
    %p69 = por %p67, %p68
    %s71 = sadd.s32 %s70, 1
    %p74 = scmp.eq.s32.totalorder %s15, 1
    %p75 = scmp.ne.s32.totalorder %s70, %s72
    %p76 = scmp.eq.s32.totalorder %s15, 0
    %p77 = por %p75, %p76
    %p78 = scmp.ne.s32.totalorder %s70, %s72
    %p79 = scmp.eq.s32.totalorder %s20, 1
    %p80 = por %p78, %p79
    %p81 = scmp.ne.s32.totalorder %s72, %s73
    %p82 = scmp.eq.s32.totalorder %s20, 0
    %p83 = por %p81, %p82
    %p84 = scmp.ne.s32.totalorder %s72, %s73
    %p85 = scmp.eq.s32.totalorder %s21, 1
    %p86 = por %p84, %p85
    %p88 = scmp.ne.s32.totalorder %s73, %s87
    %p89 = scmp.eq.s32.totalorder %s21, 0
    %p90 = por %p88, %p89
    %s92 = sadd.s32 %s91, 1
    %p95 = scmp.eq.s32.totalorder %s15, 1
    %p96 = scmp.ne.s32.totalorder %s91, %s93
    %p97 = scmp.eq.s32.totalorder %s15, 0
    %p98 = por %p96, %p97
    %p99 = scmp.ne.s32.totalorder %s91, %s93
    %p100 = scmp.eq.s32.totalorder %s20, 1
    %p101 = por %p99, %p100
    %p102 = scmp.ne.s32.totalorder %s93, %s94
    %p103 = scmp.eq.s32.totalorder %s20, 0
    %p104 = por %p102, %p103
    %p105 = scmp.ne.s32.totalorder %s93, %s94
    %p106 = scmp.eq.s32.totalorder %s21, 1
    %p107 = por %p105, %p106
    %p109 = scmp.ne.s32.totalorder %s94, %s108
    %p110 = scmp.eq.s32.totalorder %s21, 0
    %p111 = por %p109, %p110
    %s113 = sadd.s32 %s112, 1
    %p116 = scmp.eq.s32.totalorder %s15, 1
    %p117 = scmp.ne.s32.totalorder %s112, %s114
    %p118 = scmp.eq.s32.totalorder %s15, 0
    %p119 = por %p117, %p118
    %p120 = scmp.ne.s32.totalorder %s112, %s114
    %p121 = scmp.eq.s32.totalorder %s20, 1
    %p122 = por %p120, %p121
    %p123 = scmp.ne.s32.totalorder %s114, %s115
    %p124 = scmp.eq.s32.totalorder %s20, 0
    %p125 = por %p123, %p124
    %p126 = scmp.ne.s32.totalorder %s114, %s115
    %p127 = scmp.eq.s32.totalorder %s21, 1
    %p128 = por %p126, %p127
    %p130 = scmp.ne.s32.totalorder %s115, %s129
    %p131 = scmp.eq.s32.totalorder %s21, 0
    %p132 = por %p130, %p131
    %s134 = sadd.s32 %s133, 1
    %p137 = scmp.eq.s32.totalorder %s15, 1
    %p138 = scmp.ne.s32.totalorder %s133, %s135
    %p139 = scmp.eq.s32.totalorder %s15, 0
    %p140 = por %p138, %p139
    %p141 = scmp.ne.s32.totalorder %s133, %s135
    %p142 = scmp.eq.s32.totalorder %s20, 1
    %p143 = por %p141, %p142
    %p144 = scmp.ne.s32.totalorder %s135, %s136
    %p145 = scmp.eq.s32.totalorder %s20, 0
    %p146 = por %p144, %p145
    %p147 = scmp.ne.s32.totalorder %s135, %s136
    %p148 = scmp.eq.s32.totalorder %s21, 1
    %p149 = por %p147, %p148
    %p151 = scmp.ne.s32.totalorder %s136, %s150
    %p152 = scmp.eq.s32.totalorder %s21, 0
    %p153 = por %p151, %p152
    %s155 = sadd.s32 %s154, 1
    %p158 = scmp.eq.s32.totalorder %s15, 1
    %p159 = scmp.ne.s32.totalorder %s154, %s156
    %p160 = scmp.eq.s32.totalorder %s15, 0
    %p161 = por %p159, %p160
    %p162 = scmp.ne.s32.totalorder %s154, %s156
    %p163 = scmp.eq.s32.totalorder %s20, 1
    %p164 = por %p162, %p163
    %p165 = scmp.ne.s32.totalorder %s156, %s157
    %p166 = scmp.eq.s32.totalorder %s20, 0
    %p167 = por %p165, %p166
    %p168 = scmp.ne.s32.totalorder %s156, %s157
    %p169 = scmp.eq.s32.totalorder %s21, 1
    %p170 = por %p168, %p169
    %p172 = scmp.ne.s32.totalorder %s157, %s171
    %p173 = scmp.eq.s32.totalorder %s21, 0
    %p174 = por %p172, %p173
    %s176 = sadd.s32 %s175, 1
    %p179 = scmp.eq.s32.totalorder %s15, 1
    %p180 = scmp.ne.s32.totalorder %s175, %s177
    %p181 = scmp.eq.s32.totalorder %s15, 0
    %p182 = por %p180, %p181
    %p183 = scmp.ne.s32.totalorder %s175, %s177
    %p184 = scmp.eq.s32.totalorder %s20, 1
    %p185 = por %p183, %p184
    %p186 = scmp.ne.s32.totalorder %s177, %s178
    %p187 = scmp.eq.s32.totalorder %s20, 0
    %p188 = por %p186, %p187
    %p189 = scmp.ne.s32.totalorder %s177, %s178
    %p190 = scmp.eq.s32.totalorder %s21, 1
    %p191 = por %p189, %p190
    %p193 = scmp.ne.s32.totalorder %s178, %s192
    %p194 = scmp.eq.s32.totalorder %s21, 0
    %p195 = por %p193, %p194
    %s197 = sadd.s32 %s196, 1
    %p200 = scmp.eq.s32.totalorder %s15, 1
    %p201 = scmp.ne.s32.totalorder %s196, %s198
    %p202 = scmp.eq.s32.totalorder %s15, 0
    %p203 = por %p201, %p202
    %p204 = scmp.ne.s32.totalorder %s196, %s198
    %p205 = scmp.eq.s32.totalorder %s20, 1
    %p206 = por %p204, %p205
    %p207 = scmp.ne.s32.totalorder %s198, %s199
    %p208 = scmp.eq.s32.totalorder %s20, 0
    %p209 = por %p207, %p208
    %p210 = scmp.ne.s32.totalorder %s198, %s199
    %p211 = scmp.eq.s32.totalorder %s21, 1
    %p212 = por %p210, %p211
    %p214 = scmp.ne.s32.totalorder %s199, %s213
    %p215 = scmp.eq.s32.totalorder %s21, 0
    %p216 = por %p214, %p215
    %p217 = scmp.le.s32.totalorder 1, %s15
    %p218 = scmp.lt.s32.totalorder %s15, 3
    %p219 = pnand %p217, %p218
    %p220 = pneg %p219
    // Predicated region
    $region9: #{decoder_forward.4} parent=5 // pred_check
      _
    $region10: #{decoder_forward.4} parent=5 // pred_check_branch
      %222 = sbr.rel (%p219) target = $region12
    $region11: #{decoder_forward.4} parent=5 // pred_region
      %s223 = ssub.s32 %s15, 1
      // Predicated region
      $region13: #{decoder_forward.4} parent=11 // pred_check
        %p224 = pneg %p62
      $region14: #{decoder_forward.4} parent=11 // pred_check_branch
        %226 = sbr.rel (%p224) target = $region16
      $region15: #{decoder_forward.4} parent=11 // pred_region
        _
      $region16: #{decoder_forward.4} parent=11 // pred_fallthru
        _
      // Predicated region
      $region17: #{decoder_forward.4} parent=11 // pred_check
        %p227 = pneg %p83
      $region18: #{decoder_forward.4} parent=11 // pred_check_branch
        %229 = sbr.rel (%p227) target = $region20
      $region19: #{decoder_forward.4} parent=11 // pred_region
        _
      $region20: #{decoder_forward.4} parent=11 // pred_fallthru
        _
      // Predicated region
      $region21: #{decoder_forward.4} parent=11 // pred_check
        %p230 = pneg %p104
      $region22: #{decoder_forward.4} parent=11 // pred_check_branch
        %232 = sbr.rel (%p230) target = $region24
      $region23: #{decoder_forward.4} parent=11 // pred_region
        _
      $region24: #{decoder_forward.4} parent=11 // pred_fallthru
        _
      // Predicated region
      $region25: #{decoder_forward.4} parent=11 // pred_check
        %p233 = pneg %p125
      $region26: #{decoder_forward.4} parent=11 // pred_check_branch
        %235 = sbr.rel (%p233) target = $region28
      $region27: #{decoder_forward.4} parent=11 // pred_region
        _
      $region28: #{decoder_forward.4} parent=11 // pred_fallthru
        _
      // Predicated region
      $region29: #{decoder_forward.4} parent=11 // pred_check
        %p236 = pneg %p146
      $region30: #{decoder_forward.4} parent=11 // pred_check_branch
        %238 = sbr.rel (%p236) target = $region32
      $region31: #{decoder_forward.4} parent=11 // pred_region
        _
      $region32: #{decoder_forward.4} parent=11 // pred_fallthru
        _
      // Predicated region
      $region33: #{decoder_forward.4} parent=11 // pred_check
        %p239 = pneg %p167
      $region34: #{decoder_forward.4} parent=11 // pred_check_branch
        %241 = sbr.rel (%p239) target = $region36
      $region35: #{decoder_forward.4} parent=11 // pred_region
        _
      $region36: #{decoder_forward.4} parent=11 // pred_fallthru
        _
    $region12: #{decoder_forward.4} parent=5 // pred_fallthru
      _
    %p242 = scmp.lt.s32.totalorder %s15, 2
    // Predicated region
    $region37: #{decoder_forward.4} parent=5 // pred_check
      %p243 = pneg %p242
    $region38: #{decoder_forward.4} parent=5 // pred_check_branch
      %245 = sbr.rel (%p243) target = $region40
    $region39: #{decoder_forward.4} parent=5 // pred_region
      // Predicated region
      $region41: #{decoder_forward.4} parent=39 // pred_check
        %p246 = pneg %p35
      $region42: #{decoder_forward.4} parent=39 // pred_check_branch
        %248 = sbr.rel (%p246) target = $region44
      $region43: #{decoder_forward.4} parent=39 // pred_region
        %s249 = smul.u32 64, %s15
        %p250 = scmp.lt.s32.totalorder %s249, 127
        %s251 = scalar_select %p250, %s249, 127
        %s252 = smul.addr %s251, 8
        %s253 = scalar_lea.vmem %s0, %s252
        %s254 = smul.u32 64, %s15
      $region44: #{decoder_forward.4} parent=39 // pred_fallthru
        _
    $region40: #{decoder_forward.4} parent=5 // pred_fallthru
      _
    %p255 = scmp.le.s32.totalorder 1, %s15
    %p256 = scmp.lt.s32.totalorder %s15, 3
    %p257 = pnand %p255, %p256
    %p258 = pneg %p257
    // Predicated region
    $region45: #{decoder_forward.4} parent=5 // pred_check
      _
    $region46: #{decoder_forward.4} parent=5 // pred_check_branch
      %260 = sbr.rel (%p257) target = $region48
    $region47: #{decoder_forward.4} parent=5 // pred_region
      %s261 = ssub.s32 %s15, 1
      %s262 = smul.u32 64, %s20
      %p263 = scmp.lt.s32.totalorder %s262, 127
      %s264 = scalar_select %p263, %s262, 127
      %s265 = smul.addr %s264, 8
      %s266 = scalar_lea.vmem %s0, %s265
      %p267 = pneg %p41
      %p268 = pneg %p38
      %p269 = pneg %p62
      %p270 = pneg %p59
      %p271 = pneg %p83
      %p272 = pneg %p80
      %p273 = pneg %p104
      %p274 = pneg %p101
      %p275 = pneg %p125
      %p276 = pneg %p122
      %p277 = pneg %p146
      %p278 = pneg %p143
      %p279 = pneg %p167
      %p280 = pneg %p164
      %p281 = pneg %p188
      %p282 = pneg %p185
      %p283 = pneg %p209
      %p284 = pneg %p206
      %s285 = smul.u32 64, %s20
      %p286 = scmp.lt.s32.totalorder %s285, 127
      %s287 = scalar_select %p286, %s285, 127
      %s288 = smul.addr %s287, 8
      %s289 = scalar_lea.vmem %s0, %s288
      %s290 = smul.u32 64, %s20
      %p291 = scmp.eq.s32.totalorder %s20, 0
      // Predicated region
      $region49: #{decoder_forward.4} parent=47 // pred_check
        %p292 = pneg %p291
      $region50: #{decoder_forward.4} parent=47 // pred_check_branch
        %294 = sbr.rel (%p292) target = $region52
      $region51: #{decoder_forward.4} parent=47 // pred_region
        %295 = vst [vmem:[%s7] sm:$0x1] 0.0
        %296 = vst [vmem:[%s8] sm:$0x1] 0.0
      $region52: #{decoder_forward.4} parent=47 // pred_fallthru
        _
      %v297 = vld [vmem:[%s289] sm:$0xff]
      %v298 = vld [vmem:[%s289 + $0x8] sm:$0xff]
      %v299 = vld [vmem:[%s289 + $0x10] sm:$0xff]
      %v300 = vld [vmem:[%s289 + $0x18] sm:$0xff]
      %v301 = vld [vmem:[%s289 + $0x20] sm:$0xff]
      %v302 = vld [vmem:[%s289 + $0x28] sm:$0xff]
      %v303 = vld [vmem:[%s289 + $0x30] sm:$0xff]
      %v304 = vld [vmem:[%s289 + $0x38] sm:$0xff]
      %v305 = vld [vmem:[%s289 + $0x40] sm:$0xff]
      %v306 = vld [vmem:[%s289 + $0x48] sm:$0xff]
      %v307 = vld [vmem:[%s289 + $0x50] sm:$0xff]
      %v308 = vld [vmem:[%s289 + $0x58] sm:$0xff]
      %v309 = vld [vmem:[%s289 + $0x60] sm:$0xff]
      %v310 = vld [vmem:[%s289 + $0x68] sm:$0xff]
      %v311 = vld [vmem:[%s289 + $0x70] sm:$0xff]
      %v312 = vld [vmem:[%s289 + $0x78] sm:$0xff]
      %v313 = vld [vmem:[%s289 + $0x80] sm:$0xff]
      %v314 = vld [vmem:[%s289 + $0x88] sm:$0xff]
      %v315 = vld [vmem:[%s289 + $0x90] sm:$0xff]
      %v316 = vld [vmem:[%s289 + $0x98] sm:$0xff]
      %v317 = vld [vmem:[%s289 + $0xa0] sm:$0xff]
      %v318 = vld [vmem:[%s289 + $0xa8] sm:$0xff]
      %v319 = vld [vmem:[%s289 + $0xb0] sm:$0xff]
      %v320 = vld [vmem:[%s289 + $0xb8] sm:$0xff]
      %v321 = vld [vmem:[%s289 + $0xc0] sm:$0xff]
      %v322 = vld [vmem:[%s289 + $0xc8] sm:$0xff]
      %v323 = vld [vmem:[%s289 + $0xd0] sm:$0xff]
      %v324 = vld [vmem:[%s289 + $0xd8] sm:$0xff]
      %v325 = vld [vmem:[%s289 + $0xe0] sm:$0xff]
      %v326 = vld [vmem:[%s289 + $0xe8] sm:$0xff]
      %v327 = vld [vmem:[%s289 + $0xf0] sm:$0xff]
      %v328 = vld [vmem:[%s289 + $0xf8] sm:$0xff]
      %v329 = vld [vmem:[%s289 + $0x100] sm:$0xff]
      %v330 = vld [vmem:[%s289 + $0x108] sm:$0xff]
      %v331 = vld [vmem:[%s289 + $0x110] sm:$0xff]
      %v332 = vld [vmem:[%s289 + $0x118] sm:$0xff]
      %v333 = vld [vmem:[%s289 + $0x120] sm:$0xff]
      %v334 = vld [vmem:[%s289 + $0x128] sm:$0xff]
      %v335 = vld [vmem:[%s289 + $0x130] sm:$0xff]
      %v336 = vld [vmem:[%s289 + $0x138] sm:$0xff]
      %v337 = vld [vmem:[%s289 + $0x140] sm:$0xff]
      %v338 = vld [vmem:[%s289 + $0x148] sm:$0xff]
      %v339 = vld [vmem:[%s289 + $0x150] sm:$0xff]
      %v340 = vld [vmem:[%s289 + $0x158] sm:$0xff]
      %v341 = vld [vmem:[%s289 + $0x160] sm:$0xff]
      %v342 = vld [vmem:[%s289 + $0x168] sm:$0xff]
      %v343 = vld [vmem:[%s289 + $0x170] sm:$0xff]
      %v344 = vld [vmem:[%s289 + $0x178] sm:$0xff]
      %v345 = vld [vmem:[%s289 + $0x180] sm:$0xff]
      %v346 = vld [vmem:[%s289 + $0x188] sm:$0xff]
      %v347 = vld [vmem:[%s289 + $0x190] sm:$0xff]
      %v348 = vld [vmem:[%s289 + $0x198] sm:$0xff]
      %v349 = vld [vmem:[%s289 + $0x1a0] sm:$0xff]
      %v350 = vld [vmem:[%s289 + $0x1a8] sm:$0xff]
      %v351 = vld [vmem:[%s289 + $0x1b0] sm:$0xff]
      %v352 = vld [vmem:[%s289 + $0x1b8] sm:$0xff]
      %v353 = vld [vmem:[%s289 + $0x1c0] sm:$0xff]
      %v354 = vld [vmem:[%s289 + $0x1c8] sm:$0xff]
      %v355 = vld [vmem:[%s289 + $0x1d0] sm:$0xff]
      %v356 = vld [vmem:[%s289 + $0x1d8] sm:$0xff]
      %v357 = vld [vmem:[%s289 + $0x1e0] sm:$0xff]
      %v358 = vld [vmem:[%s289 + $0x1e8] sm:$0xff]
      %v359 = vld [vmem:[%s289 + $0x1f0] sm:$0xff]
      %v360 = vld [vmem:[%s289 + $0x1f8] sm:$0xff]
      %v361 = vld [vmem:[%s1] sm:$0xff]
      %v362 = vld [vmem:[%s2] sm:$0x1]
      %v364 = vlaneseq
      %v365 = vshrl.u32 %v364, 7
      %v366 = vsub.s32 0, %v365
      %v367 = vrot.slane %v362, %v366
      %vm369 = vcmask 64512
      %v371 = vsel %vm369, %v297, 0
      %v374 = vsel %vm369, %v298, 0
      %v377 = vsel %vm369, %v299, 0
      %v380 = vsel %vm369, %v300, 0
      %v383 = vsel %vm369, %v301, 0
      %v386 = vsel %vm369, %v302, 0
      %v389 = vsel %vm369, %v303, 0
      %v392 = vsel %vm369, %v304, 0
      %v395 = vsel %vm369, %v305, 0
      %v398 = vsel %vm369, %v306, 0
      %v401 = vsel %vm369, %v307, 0
      %v404 = vsel %vm369, %v308, 0
      %v407 = vsel %vm369, %v309, 0
      %v410 = vsel %vm369, %v310, 0
      %v413 = vsel %vm369, %v311, 0
      %v416 = vsel %vm369, %v312, 0
      %v419 = vsel %vm369, %v313, 0
      %v422 = vsel %vm369, %v314, 0
      %v425 = vsel %vm369, %v315, 0
      %v428 = vsel %vm369, %v316, 0
      %v431 = vsel %vm369, %v317, 0
      %v434 = vsel %vm369, %v318, 0
      %v437 = vsel %vm369, %v319, 0
      %v440 = vsel %vm369, %v320, 0
      %v443 = vsel %vm369, %v321, 0
      %v446 = vsel %vm369, %v322, 0
      %v449 = vsel %vm369, %v323, 0
      %v452 = vsel %vm369, %v324, 0
      %v455 = vsel %vm369, %v325, 0
      %v458 = vsel %vm369, %v326, 0
      %v461 = vsel %vm369, %v327, 0
      %v464 = vsel %vm369, %v328, 0
      %v467 = vsel %vm369, %v329, 0
      %v470 = vsel %vm369, %v330, 0
      %v473 = vsel %vm369, %v331, 0
      %v476 = vsel %vm369, %v332, 0
      %v479 = vsel %vm369, %v333, 0
      %v482 = vsel %vm369, %v334, 0
      %v485 = vsel %vm369, %v335, 0
      %v488 = vsel %vm369, %v336, 0
      %v491 = vsel %vm369, %v337, 0
      %v494 = vsel %vm369, %v338, 0
      %v497 = vsel %vm369, %v339, 0
      %v500 = vsel %vm369, %v340, 0
      %v503 = vsel %vm369, %v341, 0
      %v506 = vsel %vm369, %v342, 0
      %v509 = vsel %vm369, %v343, 0
      %v512 = vsel %vm369, %v344, 0
      %v515 = vsel %vm369, %v345, 0
      %v518 = vsel %vm369, %v346, 0
      %v521 = vsel %vm369, %v347, 0
      %v524 = vsel %vm369, %v348, 0
      %v527 = vsel %vm369, %v349, 0
      %v530 = vsel %vm369, %v350, 0
      %v533 = vsel %vm369, %v351, 0
      %v536 = vsel %vm369, %v352, 0
      %v539 = vsel %vm369, %v353, 0
      %v542 = vsel %vm369, %v354, 0
      %v545 = vsel %vm369, %v355, 0
      %v548 = vsel %vm369, %v356, 0
      %v551 = vsel %vm369, %v357, 0
      %v554 = vsel %vm369, %v358, 0
      %v557 = vsel %vm369, %v359, 0
      %v560 = vsel %vm369, %v360, 0
      %562 = vmatprep.subr.mxu0 0.0
      %563 = vmatpush1.msra.mxu0 %v361
      %564 = vmatprep.subr.mxu0 0.0
      %565 = vmatpush1.msra.mxu0 0.0
      %566 = vmatprep.subr.mxu0 0.0
      %567 = vmatpush1.msra.mxu0 0.0
      %568 = vmatprep.subr.mxu0 0.0
      %569 = vmatpush1.msra.mxu0 0.0
      %570 = vmatprep.subr.mxu0 0.0
      %571 = vmatpush1.msra.mxu0 0.0
      %572 = vmatprep.subr.mxu0 0.0
      %573 = vmatpush1.msra.mxu0 0.0
      %574 = vmatprep.subr.mxu0 0.0
      %575 = vmatpush1.msra.mxu0 0.0
      %576 = vmatprep.subr.mxu0 0.0
      %577 = vmatpush1.msra.mxu0 0.0
      %578 = vmatprep.subr.mxu0 0.0
      %579 = vmatpush1.msra.mxu0 0.0
      %580 = vmatprep.subr.mxu0 0.0
      %581 = vmatpush1.msra.mxu0 0.0
      %582 = vmatprep.subr.mxu0 0.0
      %583 = vmatpush1.msra.mxu0 0.0
      %584 = vmatprep.subr.mxu0 0.0
      %585 = vmatpush1.msra.mxu0 0.0
      %586 = vmatprep.subr.mxu0 0.0
      %587 = vmatpush1.msra.mxu0 0.0
      %588 = vmatprep.subr.mxu0 0.0
      %589 = vmatpush1.msra.mxu0 0.0
      %590 = vmatprep.subr.mxu0 0.0
      %591 = vmatpush1.msra.mxu0 0.0
      %592 = vmatprep.subr.mxu0 0.0
      %593 = vmatpush1.msra.mxu0 0.0
      %594 = vmatprep.subr.mxu0 0.0
      %595 = vmatpush1.msra.mxu0 0.0
      %596 = vmatprep.subr.mxu0 0.0
      %597 = vmatpush1.msra.mxu0 0.0
      %598 = vmatprep.subr.mxu0 0.0
      %599 = vmatpush1.msra.mxu0 0.0
      %600 = vmatprep.subr.mxu0 0.0
      %601 = vmatpush1.msra.mxu0 0.0
      %602 = vmatprep.subr.mxu0 0.0
      %603 = vmatpush1.msra.mxu0 0.0
      %604 = vmatprep.subr.mxu0 0.0
      %605 = vmatpush1.msra.mxu0 0.0
      %606 = vmatprep.subr.mxu0 0.0
      %607 = vmatpush1.msra.mxu0 0.0
      %608 = vmatprep.subr.mxu0 0.0
      %609 = vmatpush1.msra.mxu0 0.0
      %610 = vmatprep.subr.mxu0 0.0
      %611 = vmatpush1.msra.mxu0 0.0
      %612 = vmatprep.subr.mxu0 0.0
      %613 = vmatpush1.msra.mxu0 0.0
      %614 = vmatprep.subr.mxu0 0.0
      %615 = vmatpush1.msra.mxu0 0.0
      %616 = vmatprep.subr.mxu0 0.0
      %617 = vmatpush1.msra.mxu0 0.0
      %618 = vmatprep.subr.mxu0 0.0
      %619 = vmatpush1.msra.mxu0 0.0
      %620 = vmatprep.subr.mxu0 0.0
      %621 = vmatpush1.msra.mxu0 0.0
      %622 = vmatprep.subr.mxu0 0.0
      %623 = vmatpush1.msra.mxu0 0.0
      %624 = vmatprep.subr.mxu0 0.0
      %625 = vmatpush1.msra.mxu0 0.0
      %626 = vmatprep.mubr.f32.mxu0 0.0
      %627 = vmatmul.mubr.f32.gmra.mrb[0].mxu0 %v371
      %v628 = vpop.f32.mrb[0].mxu0
      %v629 = vadd.f32 %v367, %v628
      %v630 = vpop.f32.mrb[0].mxu0
      %631 = vmatprep.mubr.f32.mxu0 0.0
      %632 = vmatmul.mubr.f32.gmra.mrb[0].mxu0 %v374
      %v633 = vpop.f32.mrb[0].mxu0
      %v634 = vadd.f32 %v367, %v633
      %v635 = vpop.f32.mrb[0].mxu0
      %636 = vmatprep.mubr.f32.mxu0 0.0
      %637 = vmatmul.mubr.f32.gmra.mrb[0].mxu0 %v377
      %v638 = vpop.f32.mrb[0].mxu0
      %v639 = vadd.f32 %v367, %v638
      %v640 = vpop.f32.mrb[0].mxu0
      %641 = vmatprep.mubr.f32.mxu0 0.0
      %642 = vmatmul.mubr.f32.gmra.mrb[0].mxu0 %v380
      %v643 = vpop.f32.mrb[0].mxu0
      %v644 = vadd.f32 %v367, %v643
      %v645 = vpop.f32.mrb[0].mxu0
      %646 = vmatprep.mubr.f32.mxu0 0.0
      %647 = vmatmul.mubr.f32.gmra.mrb[0].mxu0 %v383
      %v648 = vpop.f32.mrb[0].mxu0
      %v649 = vadd.f32 %v367, %v648
      %v650 = vpop.f32.mrb[0].mxu0
      %651 = vmatprep.mubr.f32.mxu0 0.0
      %652 = vmatmul.mubr.f32.gmra.mrb[0].mxu0 %v386
      %v653 = vpop.f32.mrb[0].mxu0
      %v654 = vadd.f32 %v367, %v653
      %v655 = vpop.f32.mrb[0].mxu0
      %656 = vmatprep.mubr.f32.mxu0 0.0
      %657 = vmatmul.mubr.f32.gmra.mrb[0].mxu0 %v389
      %v658 = vpop.f32.mrb[0].mxu0
      %v659 = vadd.f32 %v367, %v658
      %v660 = vpop.f32.mrb[0].mxu0
      %661 = vmatprep.mubr.f32.mxu0 0.0
      %662 = vmatmul.mubr.f32.gmra.mrb[0].mxu0 %v392
      %v663 = vpop.f32.mrb[0].mxu0
      %v664 = vadd.f32 %v367, %v663
      %v665 = vpop.f32.mrb[0].mxu0
      %666 = vmatprep.mubr.f32.mxu0 0.0
      %667 = vmatmul.mubr.f32.gmra.mrb[0].mxu0 %v395
      %v668 = vpop.f32.mrb[0].mxu0
      %v669 = vadd.f32 %v367, %v668
      %v670 = vpop.f32.mrb[0].mxu0
      %671 = vmatprep.mubr.f32.mxu0 0.0
      %672 = vmatmul.mubr.f32.gmra.mrb[0].mxu0 %v398
      %v673 = vpop.f32.mrb[0].mxu0
      %v674 = vadd.f32 %v367, %v673
      %v675 = vpop.f32.mrb[0].mxu0
      %676 = vmatprep.mubr.f32.mxu0 0.0
      %677 = vmatmul.mubr.f32.gmra.mrb[0].mxu0 %v401
      %v678 = vpop.f32.mrb[0].mxu0
      %v679 = vadd.f32 %v367, %v678
      %v680 = vpop.f32.mrb[0].mxu0
      %681 = vmatprep.mubr.f32.mxu0 0.0
      %682 = vmatmul.mubr.f32.gmra.mrb[0].mxu0 %v404
      %v683 = vpop.f32.mrb[0].mxu0
      %v684 = vadd.f32 %v367, %v683
      %v685 = vpop.f32.mrb[0].mxu0
      %686 = vmatprep.mubr.f32.mxu0 0.0
      %687 = vmatmul.mubr.f32.gmra.mrb[0].mxu0 %v407
      %v688 = vpop.f32.mrb[0].mxu0
      %v689 = vadd.f32 %v367, %v688
      %v690 = vpop.f32.mrb[0].mxu0
      %691 = vmatprep.mubr.f32.mxu0 0.0
      %692 = vmatmul.mubr.f32.gmra.mrb[0].mxu0 %v410
      %v693 = vpop.f32.mrb[0].mxu0
      %v694 = vadd.f32 %v367, %v693
      %v695 = vpop.f32.mrb[0].mxu0
      %696 = vmatprep.mubr.f32.mxu0 0.0
      %697 = vmatmul.mubr.f32.gmra.mrb[0].mxu0 %v413
      %v698 = vpop.f32.mrb[0].mxu0
      %v699 = vadd.f32 %v367, %v698
      %v700 = vpop.f32.mrb[0].mxu0
      %701 = vmatprep.mubr.f32.mxu0 0.0
      %702 = vmatmul.mubr.f32.gmra.mrb[0].mxu0 %v416
      %v703 = vpop.f32.mrb[0].mxu0
      %v704 = vadd.f32 %v367, %v703
      %v705 = vpop.f32.mrb[0].mxu0
      %706 = vmatprep.mubr.f32.mxu0 0.0
      %707 = vmatmul.mubr.f32.gmra.mrb[0].mxu0 %v419
      %v708 = vpop.f32.mrb[0].mxu0
      %v709 = vadd.f32 %v367, %v708
      %v710 = vpop.f32.mrb[0].mxu0
      %711 = vmatprep.mubr.f32.mxu0 0.0
      %712 = vmatmul.mubr.f32.gmra.mrb[0].mxu0 %v422
      %v713 = vpop.f32.mrb[0].mxu0
      %v714 = vadd.f32 %v367, %v713
      %v715 = vpop.f32.mrb[0].mxu0
      %716 = vmatprep.mubr.f32.mxu0 0.0
      %717 = vmatmul.mubr.f32.gmra.mrb[0].mxu0 %v425
      %v718 = vpop.f32.mrb[0].mxu0
      %v719 = vadd.f32 %v367, %v718
      %v720 = vpop.f32.mrb[0].mxu0
      %721 = vmatprep.mubr.f32.mxu0 0.0
      %722 = vmatmul.mubr.f32.gmra.mrb[0].mxu0 %v428
      %v723 = vpop.f32.mrb[0].mxu0
      %v724 = vadd.f32 %v367, %v723
      %v725 = vpop.f32.mrb[0].mxu0
      %726 = vmatprep.mubr.f32.mxu0 0.0
      %727 = vmatmul.mubr.f32.gmra.mrb[0].mxu0 %v431
      %v728 = vpop.f32.mrb[0].mxu0
      %v729 = vadd.f32 %v367, %v728
      %v730 = vpop.f32.mrb[0].mxu0
      %731 = vmatprep.mubr.f32.mxu0 0.0
      %732 = vmatmul.mubr.f32.gmra.mrb[0].mxu0 %v434
      %v733 = vpop.f32.mrb[0].mxu0
      %v734 = vadd.f32 %v367, %v733
      %v735 = vpop.f32.mrb[0].mxu0
      %736 = vmatprep.mubr.f32.mxu0 0.0
      %737 = vmatmul.mubr.f32.gmra.mrb[0].mxu0 %v437
      %v738 = vpop.f32.mrb[0].mxu0
      %v739 = vadd.f32 %v367, %v738
      %v740 = vpop.f32.mrb[0].mxu0
      %741 = vmatprep.mubr.f32.mxu0 0.0
      %742 = vmatmul.mubr.f32.gmra.mrb[0].mxu0 %v440
      %v743 = vpop.f32.mrb[0].mxu0
      %v744 = vadd.f32 %v367, %v743
      %v745 = vpop.f32.mrb[0].mxu0
      %746 = vmatprep.mubr.f32.mxu0 0.0
      %747 = vmatmul.mubr.f32.gmra.mrb[0].mxu0 %v443
      %v748 = vpop.f32.mrb[0].mxu0
      %v749 = vadd.f32 %v367, %v748
      %v750 = vpop.f32.mrb[0].mxu0
      %751 = vmatprep.mubr.f32.mxu0 0.0
      %752 = vmatmul.mubr.f32.gmra.mrb[0].mxu0 %v446
      %v753 = vpop.f32.mrb[0].mxu0
      %v754 = vadd.f32 %v367, %v753
      %v755 = vpop.f32.mrb[0].mxu0
      %756 = vmatprep.mubr.f32.mxu0 0.0
      %757 = vmatmul.mubr.f32.gmra.mrb[0].mxu0 %v449
      %v758 = vpop.f32.mrb[0].mxu0
      %v759 = vadd.f32 %v367, %v758
      %v760 = vpop.f32.mrb[0].mxu0
      %761 = vmatprep.mubr.f32.mxu0 0.0
      %762 = vmatmul.mubr.f32.gmra.mrb[0].mxu0 %v452
      %v763 = vpop.f32.mrb[0].mxu0
      %v764 = vadd.f32 %v367, %v763
      %v765 = vpop.f32.mrb[0].mxu0
      %766 = vmatprep.mubr.f32.mxu0 0.0
      %767 = vmatmul.mubr.f32.gmra.mrb[0].mxu0 %v455
      %v768 = vpop.f32.mrb[0].mxu0
      %v769 = vadd.f32 %v367, %v768
      %v770 = vpop.f32.mrb[0].mxu0
      %771 = vmatprep.mubr.f32.mxu0 0.0
      %772 = vmatmul.mubr.f32.gmra.mrb[0].mxu0 %v458
      %v773 = vpop.f32.mrb[0].mxu0
      %v774 = vadd.f32 %v367, %v773
      %v775 = vpop.f32.mrb[0].mxu0
      %776 = vmatprep.mubr.f32.mxu0 0.0
      %777 = vmatmul.mubr.f32.gmra.mrb[0].mxu0 %v461
      %v778 = vpop.f32.mrb[0].mxu0
      %v779 = vadd.f32 %v367, %v778
      %v780 = vpop.f32.mrb[0].mxu0
      %781 = vmatprep.mubr.f32.mxu0 0.0
      %782 = vmatmul.mubr.f32.gmra.mrb[0].mxu0 %v464
      %v783 = vpop.f32.mrb[0].mxu0
      %v784 = vadd.f32 %v367, %v783
      %v785 = vpop.f32.mrb[0].mxu0
      %786 = vmatprep.mubr.f32.mxu0 0.0
      %787 = vmatmul.mubr.f32.gmra.mrb[0].mxu0 %v467
      %v788 = vpop.f32.mrb[0].mxu0
      %v789 = vadd.f32 %v367, %v788
      %v790 = vpop.f32.mrb[0].mxu0
      %791 = vmatprep.mubr.f32.mxu0 0.0
      %792 = vmatmul.mubr.f32.gmra.mrb[0].mxu0 %v470
      %v793 = vpop.f32.mrb[0].mxu0
      %v794 = vadd.f32 %v367, %v793
      %v795 = vpop.f32.mrb[0].mxu0
      %796 = vmatprep.mubr.f32.mxu0 0.0
      %797 = vmatmul.mubr.f32.gmra.mrb[0].mxu0 %v473
      %v798 = vpop.f32.mrb[0].mxu0
      %v799 = vadd.f32 %v367, %v798
      %v800 = vpop.f32.mrb[0].mxu0
      %801 = vmatprep.mubr.f32.mxu0 0.0
      %802 = vmatmul.mubr.f32.gmra.mrb[0].mxu0 %v476
      %v803 = vpop.f32.mrb[0].mxu0
      %v804 = vadd.f32 %v367, %v803
      %v805 = vpop.f32.mrb[0].mxu0
      %806 = vmatprep.mubr.f32.mxu0 0.0
      %807 = vmatmul.mubr.f32.gmra.mrb[0].mxu0 %v479
      %v808 = vpop.f32.mrb[0].mxu0
      %v809 = vadd.f32 %v367, %v808
      %v810 = vpop.f32.mrb[0].mxu0
      %811 = vmatprep.mubr.f32.mxu0 0.0
      %812 = vmatmul.mubr.f32.gmra.mrb[0].mxu0 %v482
      %v813 = vpop.f32.mrb[0].mxu0
      %v814 = vadd.f32 %v367, %v813
      %v815 = vpop.f32.mrb[0].mxu0
      %816 = vmatprep.mubr.f32.mxu0 0.0
      %817 = vmatmul.mubr.f32.gmra.mrb[0].mxu0 %v485
      %v818 = vpop.f32.mrb[0].mxu0
      %v819 = vadd.f32 %v367, %v818
      %v820 = vpop.f32.mrb[0].mxu0
      %821 = vmatprep.mubr.f32.mxu0 0.0
      %822 = vmatmul.mubr.f32.gmra.mrb[0].mxu0 %v488
      %v823 = vpop.f32.mrb[0].mxu0
      %v824 = vadd.f32 %v367, %v823
      %v825 = vpop.f32.mrb[0].mxu0
      %826 = vmatprep.mubr.f32.mxu0 0.0
      %827 = vmatmul.mubr.f32.gmra.mrb[0].mxu0 %v491
      %v828 = vpop.f32.mrb[0].mxu0
      %v829 = vadd.f32 %v367, %v828
      %v830 = vpop.f32.mrb[0].mxu0
      %831 = vmatprep.mubr.f32.mxu0 0.0
      %832 = vmatmul.mubr.f32.gmra.mrb[0].mxu0 %v494
      %v833 = vpop.f32.mrb[0].mxu0
      %v834 = vadd.f32 %v367, %v833
      %v835 = vpop.f32.mrb[0].mxu0
      %836 = vmatprep.mubr.f32.mxu0 0.0
      %837 = vmatmul.mubr.f32.gmra.mrb[0].mxu0 %v497
      %v838 = vpop.f32.mrb[0].mxu0
      %v839 = vadd.f32 %v367, %v838
      %v840 = vpop.f32.mrb[0].mxu0
      %841 = vmatprep.mubr.f32.mxu0 0.0
      %842 = vmatmul.mubr.f32.gmra.mrb[0].mxu0 %v500
      %v843 = vpop.f32.mrb[0].mxu0
      %v844 = vadd.f32 %v367, %v843
      %v845 = vpop.f32.mrb[0].mxu0
      %846 = vmatprep.mubr.f32.mxu0 0.0
      %847 = vmatmul.mubr.f32.gmra.mrb[0].mxu0 %v503
      %v848 = vpop.f32.mrb[0].mxu0
      %v849 = vadd.f32 %v367, %v848
      %v850 = vpop.f32.mrb[0].mxu0
      %851 = vmatprep.mubr.f32.mxu0 0.0
      %852 = vmatmul.mubr.f32.gmra.mrb[0].mxu0 %v506
      %v853 = vpop.f32.mrb[0].mxu0
      %v854 = vadd.f32 %v367, %v853
      %v855 = vpop.f32.mrb[0].mxu0
      %856 = vmatprep.mubr.f32.mxu0 0.0
      %857 = vmatmul.mubr.f32.gmra.mrb[0].mxu0 %v509
      %v858 = vpop.f32.mrb[0].mxu0
      %v859 = vadd.f32 %v367, %v858
      %v860 = vpop.f32.mrb[0].mxu0
      %861 = vmatprep.mubr.f32.mxu0 0.0
      %862 = vmatmul.mubr.f32.gmra.mrb[0].mxu0 %v512
      %v863 = vpop.f32.mrb[0].mxu0
      %v864 = vadd.f32 %v367, %v863
      %v865 = vpop.f32.mrb[0].mxu0
      %866 = vmatprep.mubr.f32.mxu0 0.0
      %867 = vmatmul.mubr.f32.gmra.mrb[0].mxu0 %v515
      %v868 = vpop.f32.mrb[0].mxu0
      %v869 = vadd.f32 %v367, %v868
      %v870 = vpop.f32.mrb[0].mxu0
      %871 = vmatprep.mubr.f32.mxu0 0.0
      %872 = vmatmul.mubr.f32.gmra.mrb[0].mxu0 %v518
      %v873 = vpop.f32.mrb[0].mxu0
      %v874 = vadd.f32 %v367, %v873
      %v875 = vpop.f32.mrb[0].mxu0
      %876 = vmatprep.mubr.f32.mxu0 0.0
      %877 = vmatmul.mubr.f32.gmra.mrb[0].mxu0 %v521
      %v878 = vpop.f32.mrb[0].mxu0
      %v879 = vadd.f32 %v367, %v878
      %v880 = vpop.f32.mrb[0].mxu0
      %881 = vmatprep.mubr.f32.mxu0 0.0
      %882 = vmatmul.mubr.f32.gmra.mrb[0].mxu0 %v524
      %v883 = vpop.f32.mrb[0].mxu0
      %v884 = vadd.f32 %v367, %v883
      %v885 = vpop.f32.mrb[0].mxu0
      %886 = vmatprep.mubr.f32.mxu0 0.0
      %887 = vmatmul.mubr.f32.gmra.mrb[0].mxu0 %v527
      %v888 = vpop.f32.mrb[0].mxu0
      %v889 = vadd.f32 %v367, %v888
      %v890 = vpop.f32.mrb[0].mxu0
      %891 = vmatprep.mubr.f32.mxu0 0.0
      %892 = vmatmul.mubr.f32.gmra.mrb[0].mxu0 %v530
      %v893 = vpop.f32.mrb[0].mxu0
      %v894 = vadd.f32 %v367, %v893
      %v895 = vpop.f32.mrb[0].mxu0
      %896 = vmatprep.mubr.f32.mxu0 0.0
      %897 = vmatmul.mubr.f32.gmra.mrb[0].mxu0 %v533
      %v898 = vpop.f32.mrb[0].mxu0
      %v899 = vadd.f32 %v367, %v898
      %v900 = vpop.f32.mrb[0].mxu0
      %901 = vmatprep.mubr.f32.mxu0 0.0
      %902 = vmatmul.mubr.f32.gmra.mrb[0].mxu0 %v536
      %v903 = vpop.f32.mrb[0].mxu0
      %v904 = vadd.f32 %v367, %v903
      %v905 = vpop.f32.mrb[0].mxu0
      %906 = vmatprep.mubr.f32.mxu0 0.0
      %907 = vmatmul.mubr.f32.gmra.mrb[0].mxu0 %v539
      %v908 = vpop.f32.mrb[0].mxu0
      %v909 = vadd.f32 %v367, %v908
      %v910 = vpop.f32.mrb[0].mxu0
      %911 = vmatprep.mubr.f32.mxu0 0.0
      %912 = vmatmul.mubr.f32.gmra.mrb[0].mxu0 %v542
      %v913 = vpop.f32.mrb[0].mxu0
      %v914 = vadd.f32 %v367, %v913
      %v915 = vpop.f32.mrb[0].mxu0
      %916 = vmatprep.mubr.f32.mxu0 0.0
      %917 = vmatmul.mubr.f32.gmra.mrb[0].mxu0 %v545
      %v918 = vpop.f32.mrb[0].mxu0
      %v919 = vadd.f32 %v367, %v918
      %v920 = vpop.f32.mrb[0].mxu0
      %921 = vmatprep.mubr.f32.mxu0 0.0
      %922 = vmatmul.mubr.f32.gmra.mrb[0].mxu0 %v548
      %v923 = vpop.f32.mrb[0].mxu0
      %v924 = vadd.f32 %v367, %v923
      %v925 = vpop.f32.mrb[0].mxu0
      %926 = vmatprep.mubr.f32.mxu0 0.0
      %927 = vmatmul.mubr.f32.gmra.mrb[0].mxu0 %v551
      %v928 = vpop.f32.mrb[0].mxu0
      %v929 = vadd.f32 %v367, %v928
      %v930 = vpop.f32.mrb[0].mxu0
      %931 = vmatprep.mubr.f32.mxu0 0.0
      %932 = vmatmul.mubr.f32.gmra.mrb[0].mxu0 %v554
      %v933 = vpop.f32.mrb[0].mxu0
      %v934 = vadd.f32 %v367, %v933
      %v935 = vpop.f32.mrb[0].mxu0
      %936 = vmatprep.mubr.f32.mxu0 0.0
      %937 = vmatmul.mubr.f32.gmra.mrb[0].mxu0 %v557
      %v938 = vpop.f32.mrb[0].mxu0
      %v939 = vadd.f32 %v367, %v938
      %v940 = vpop.f32.mrb[0].mxu0
      %941 = vmatprep.mubr.f32.mxu0 0.0
      %942 = vmatmul.mubr.f32.gmra.mrb[0].mxu0 %v560
      %v943 = vpop.f32.mrb[0].mxu0
      %v944 = vadd.f32 %v367, %v943
      %v945 = vpop.f32.mrb[0].mxu0
      %946 = vdwg.mxu0
      %v947 = vld [vmem:[%s3] sm:$0x1]
      %v949 = vlaneseq
      %v950 = vshrl.u32 %v949, 7
      %v951 = vsub.s32 0, %v950
      %v952 = vrot.slane %v947, %v951
      %v954 = vmul.f32 %v629, %v952
      %v955 = vmul.f32 %v634, %v952
      %v956 = vmul.f32 %v639, %v952
      %v957 = vmul.f32 %v644, %v952
      %v958 = vmul.f32 %v649, %v952
      %v959 = vmul.f32 %v654, %v952
      %v960 = vmul.f32 %v659, %v952
      %v961 = vmul.f32 %v664, %v952
      %v962 = vmul.f32 %v669, %v952
      %v963 = vmul.f32 %v674, %v952
      %v964 = vmul.f32 %v679, %v952
      %v965 = vmul.f32 %v684, %v952
      %v966 = vmul.f32 %v689, %v952
      %v967 = vmul.f32 %v694, %v952
      %v968 = vmul.f32 %v699, %v952
      %v969 = vmul.f32 %v704, %v952
      %v970 = vmul.f32 %v709, %v952
      %v971 = vmul.f32 %v714, %v952
      %v972 = vmul.f32 %v719, %v952
      %v973 = vmul.f32 %v724, %v952
      %v974 = vmul.f32 %v729, %v952
      %v975 = vmul.f32 %v734, %v952
      %v976 = vmul.f32 %v739, %v952
      %v977 = vmul.f32 %v744, %v952
      %v978 = vmul.f32 %v749, %v952
      %v979 = vmul.f32 %v754, %v952
      %v980 = vmul.f32 %v759, %v952
      %v981 = vmul.f32 %v764, %v952
      %v982 = vmul.f32 %v769, %v952
      %v983 = vmul.f32 %v774, %v952
      %v984 = vmul.f32 %v779, %v952
      %v985 = vmul.f32 %v784, %v952
      %v986 = vmul.f32 %v789, %v952
      %v987 = vmul.f32 %v794, %v952
      %v988 = vmul.f32 %v799, %v952
      %v989 = vmul.f32 %v804, %v952
      %v990 = vmul.f32 %v809, %v952
      %v991 = vmul.f32 %v814, %v952
      %v992 = vmul.f32 %v819, %v952
      %v993 = vmul.f32 %v824, %v952
      %v994 = vmul.f32 %v829, %v952
      %v995 = vmul.f32 %v834, %v952
      %v996 = vmul.f32 %v839, %v952
      %v997 = vmul.f32 %v844, %v952
      %v998 = vmul.f32 %v849, %v952
      %v999 = vmul.f32 %v854, %v952
      %v1000 = vmul.f32 %v859, %v952
      %v1001 = vmul.f32 %v864, %v952
      %v1002 = vmul.f32 %v869, %v952
      %v1003 = vmul.f32 %v874, %v952
      %v1004 = vmul.f32 %v879, %v952
      %v1005 = vmul.f32 %v884, %v952
      %v1006 = vmul.f32 %v889, %v952
      %v1007 = vmul.f32 %v894, %v952
      %v1008 = vmul.f32 %v899, %v952
      %v1009 = vmul.f32 %v904, %v952
      %v1010 = vmul.f32 %v909, %v952
      %v1011 = vmul.f32 %v914, %v952
      %v1012 = vmul.f32 %v919, %v952
      %v1013 = vmul.f32 %v924, %v952
      %v1014 = vmul.f32 %v929, %v952
      %v1015 = vmul.f32 %v934, %v952
      %v1016 = vmul.f32 %v939, %v952
      %v1017 = vmul.f32 %v944, %v952
      %v1018 = vld [vmem:[%s4] sm:$0x1]
      %v1020 = vlaneseq
      %v1021 = vshrl.u32 %v1020, 7
      %v1022 = vsub.s32 0, %v1021
      %v1023 = vrot.slane %v1018, %v1022
      %v1025 = vadd.f32 %v954, %v1023
      %v1026 = vadd.f32 %v955, %v1023
      %v1027 = vadd.f32 %v956, %v1023
      %v1028 = vadd.f32 %v957, %v1023
      %v1029 = vadd.f32 %v958, %v1023
      %v1030 = vadd.f32 %v959, %v1023
      %v1031 = vadd.f32 %v960, %v1023
      %v1032 = vadd.f32 %v961, %v1023
      %v1033 = vadd.f32 %v962, %v1023
      %v1034 = vadd.f32 %v963, %v1023
      %v1035 = vadd.f32 %v964, %v1023
      %v1036 = vadd.f32 %v965, %v1023
      %v1037 = vadd.f32 %v966, %v1023
      %v1038 = vadd.f32 %v967, %v1023
      %v1039 = vadd.f32 %v968, %v1023
      %v1040 = vadd.f32 %v969, %v1023
      %v1041 = vadd.f32 %v970, %v1023
      %v1042 = vadd.f32 %v971, %v1023
      %v1043 = vadd.f32 %v972, %v1023
      %v1044 = vadd.f32 %v973, %v1023
      %v1045 = vadd.f32 %v974, %v1023
      %v1046 = vadd.f32 %v975, %v1023
      %v1047 = vadd.f32 %v976, %v1023
      %v1048 = vadd.f32 %v977, %v1023
      %v1049 = vadd.f32 %v978, %v1023
      %v1050 = vadd.f32 %v979, %v1023
      %v1051 = vadd.f32 %v980, %v1023
      %v1052 = vadd.f32 %v981, %v1023
      %v1053 = vadd.f32 %v982, %v1023
      %v1054 = vadd.f32 %v983, %v1023
      %v1055 = vadd.f32 %v984, %v1023
      %v1056 = vadd.f32 %v985, %v1023
      %v1057 = vadd.f32 %v986, %v1023
      %v1058 = vadd.f32 %v987, %v1023
      %v1059 = vadd.f32 %v988, %v1023
      %v1060 = vadd.f32 %v989, %v1023
      %v1061 = vadd.f32 %v990, %v1023
      %v1062 = vadd.f32 %v991, %v1023
      %v1063 = vadd.f32 %v992, %v1023
      %v1064 = vadd.f32 %v993, %v1023
      %v1065 = vadd.f32 %v994, %v1023
      %v1066 = vadd.f32 %v995, %v1023
      %v1067 = vadd.f32 %v996, %v1023
      %v1068 = vadd.f32 %v997, %v1023
      %v1069 = vadd.f32 %v998, %v1023
      %v1070 = vadd.f32 %v999, %v1023
      %v1071 = vadd.f32 %v1000, %v1023
      %v1072 = vadd.f32 %v1001, %v1023
      %v1073 = vadd.f32 %v1002, %v1023
      %v1074 = vadd.f32 %v1003, %v1023
      %v1075 = vadd.f32 %v1004, %v1023
      %v1076 = vadd.f32 %v1005, %v1023
      %v1077 = vadd.f32 %v1006, %v1023
      %v1078 = vadd.f32 %v1007, %v1023
      %v1079 = vadd.f32 %v1008, %v1023
      %v1080 = vadd.f32 %v1009, %v1023
      %v1081 = vadd.f32 %v1010, %v1023
      %v1082 = vadd.f32 %v1011, %v1023
      %v1083 = vadd.f32 %v1012, %v1023
      %v1084 = vadd.f32 %v1013, %v1023
      %v1085 = vadd.f32 %v1014, %v1023
      %v1086 = vadd.f32 %v1015, %v1023
      %v1087 = vadd.f32 %v1016, %v1023
      %v1088 = vadd.f32 %v1017, %v1023
      %v1089 = vmax.f32 %v1025, 0.0
      %v1090 = vmax.f32 %v1026, 0.0
      %v1091 = vmax.f32 %v1027, 0.0
      %v1092 = vmax.f32 %v1028, 0.0
      %v1093 = vmax.f32 %v1029, 0.0
      %v1094 = vmax.f32 %v1030, 0.0
      %v1095 = vmax.f32 %v1031, 0.0
      %v1096 = vmax.f32 %v1032, 0.0
      %v1097 = vmax.f32 %v1033, 0.0
      %v1098 = vmax.f32 %v1034, 0.0
      %v1099 = vmax.f32 %v1035, 0.0
      %v1100 = vmax.f32 %v1036, 0.0
      %v1101 = vmax.f32 %v1037, 0.0
      %v1102 = vmax.f32 %v1038, 0.0
      %v1103 = vmax.f32 %v1039, 0.0
      %v1104 = vmax.f32 %v1040, 0.0
      %v1105 = vmax.f32 %v1041, 0.0
      %v1106 = vmax.f32 %v1042, 0.0
      %v1107 = vmax.f32 %v1043, 0.0
      %v1108 = vmax.f32 %v1044, 0.0
      %v1109 = vmax.f32 %v1045, 0.0
      %v1110 = vmax.f32 %v1046, 0.0
      %v1111 = vmax.f32 %v1047, 0.0
      %v1112 = vmax.f32 %v1048, 0.0
      %v1113 = vmax.f32 %v1049, 0.0
      %v1114 = vmax.f32 %v1050, 0.0
      %v1115 = vmax.f32 %v1051, 0.0
      %v1116 = vmax.f32 %v1052, 0.0
      %v1117 = vmax.f32 %v1053, 0.0
      %v1118 = vmax.f32 %v1054, 0.0
      %v1119 = vmax.f32 %v1055, 0.0
      %v1120 = vmax.f32 %v1056, 0.0
      %v1121 = vmax.f32 %v1057, 0.0
      %v1122 = vmax.f32 %v1058, 0.0
      %v1123 = vmax.f32 %v1059, 0.0
      %v1124 = vmax.f32 %v1060, 0.0
      %v1125 = vmax.f32 %v1061, 0.0
      %v1126 = vmax.f32 %v1062, 0.0
      %v1127 = vmax.f32 %v1063, 0.0
      %v1128 = vmax.f32 %v1064, 0.0
      %v1129 = vmax.f32 %v1065, 0.0
      %v1130 = vmax.f32 %v1066, 0.0
      %v1131 = vmax.f32 %v1067, 0.0
      %v1132 = vmax.f32 %v1068, 0.0
      %v1133 = vmax.f32 %v1069, 0.0
      %v1134 = vmax.f32 %v1070, 0.0
      %v1135 = vmax.f32 %v1071, 0.0
      %v1136 = vmax.f32 %v1072, 0.0
      %v1137 = vmax.f32 %v1073, 0.0
      %v1138 = vmax.f32 %v1074, 0.0
      %v1139 = vmax.f32 %v1075, 0.0
      %v1140 = vmax.f32 %v1076, 0.0
      %v1141 = vmax.f32 %v1077, 0.0
      %v1142 = vmax.f32 %v1078, 0.0
      %v1143 = vmax.f32 %v1079, 0.0
      %v1144 = vmax.f32 %v1080, 0.0
      %v1145 = vmax.f32 %v1081, 0.0
      %v1146 = vmax.f32 %v1082, 0.0
      %v1147 = vmax.f32 %v1083, 0.0
      %v1148 = vmax.f32 %v1084, 0.0
      %v1149 = vmax.f32 %v1085, 0.0
      %v1150 = vmax.f32 %v1086, 0.0
      %v1151 = vmax.f32 %v1087, 0.0
      %v1152 = vmax.f32 %v1088, 0.0
      %v1153 = vld [vmem:[%s5] sm:$0xff]
      %v1154 = vld [vmem:[%s5 + $0x8] sm:$0xff]
      %v1155 = vld [vmem:[%s5 + $0x10] sm:$0xff]
      %v1156 = vld [vmem:[%s5 + $0x18] sm:$0xff]
      %v1157 = vld [vmem:[%s5 + $0x20] sm:$0xff]
      %v1158 = vld [vmem:[%s5 + $0x28] sm:$0xff]
      %v1159 = vld [vmem:[%s5 + $0x30] sm:$0xff]
      %v1160 = vld [vmem:[%s5 + $0x38] sm:$0xff]
      %v1161 = vld [vmem:[%s5 + $0x40] sm:$0xff]
      %v1162 = vld [vmem:[%s5 + $0x48] sm:$0xff]
      %v1163 = vld [vmem:[%s5 + $0x50] sm:$0xff]
      %v1164 = vld [vmem:[%s5 + $0x58] sm:$0xff]
      %v1165 = vld [vmem:[%s5 + $0x60] sm:$0xff]
      %v1166 = vld [vmem:[%s5 + $0x68] sm:$0xff]
      %v1167 = vld [vmem:[%s5 + $0x70] sm:$0xff]
      %v1168 = vld [vmem:[%s5 + $0x78] sm:$0xff]
      %v1169 = vld [vmem:[%s6] sm:$0x1]
      %v1171 = vlaneseq
      %v1172 = vshrl.u32 %v1171, 7
      %v1173 = vsub.s32 0, %v1172
      %v1174 = vrot.slane %v1169, %v1173
      %1176 = vmatprep.subr.mxu0 0.0
      %1177 = vmatpush1.msra.mxu0 %v1153
      %1178 = vmatprep.subr.mxu0 0.0
      %1179 = vmatpush1.msra.mxu0 %v1154
      %1180 = vmatprep.subr.mxu0 0.0
      %1181 = vmatpush1.msra.mxu0 %v1155
      %1182 = vmatprep.subr.mxu0 0.0
      %1183 = vmatpush1.msra.mxu0 %v1156
      %1184 = vmatprep.subr.mxu0 0.0
      %1185 = vmatpush1.msra.mxu0 %v1157
      %1186 = vmatprep.subr.mxu0 0.0
      %1187 = vmatpush1.msra.mxu0 %v1158
      %1188 = vmatprep.subr.mxu0 0.0
      %1189 = vmatpush1.msra.mxu0 %v1159
      %1190 = vmatprep.subr.mxu0 0.0
      %1191 = vmatpush1.msra.mxu0 %v1160
      %1192 = vmatprep.subr.mxu0 0.0
      %1193 = vmatpush1.msra.mxu0 %v1161
      %1194 = vmatprep.subr.mxu0 0.0
      %1195 = vmatpush1.msra.mxu0 %v1162
      %1196 = vmatprep.subr.mxu0 0.0
      %1197 = vmatpush1.msra.mxu0 %v1163
      %1198 = vmatprep.subr.mxu0 0.0
      %1199 = vmatpush1.msra.mxu0 %v1164
      %1200 = vmatprep.subr.mxu0 0.0
      %1201 = vmatpush1.msra.mxu0 %v1165
      %1202 = vmatprep.subr.mxu0 0.0
      %1203 = vmatpush1.msra.mxu0 %v1166
      %1204 = vmatprep.subr.mxu0 0.0
      %1205 = vmatpush1.msra.mxu0 %v1167
      %1206 = vmatprep.subr.mxu0 0.0
      %1207 = vmatpush1.msra.mxu0 %v1168
      %1208 = vmatprep.subr.mxu0 0.0
      %1209 = vmatpush1.msra.mxu0 0.0
      %1210 = vmatprep.subr.mxu0 0.0
      %1211 = vmatpush1.msra.mxu0 0.0
      %1212 = vmatprep.subr.mxu0 0.0
      %1213 = vmatpush1.msra.mxu0 0.0
      %1214 = vmatprep.subr.mxu0 0.0
      %1215 = vmatpush1.msra.mxu0 0.0
      %1216 = vmatprep.subr.mxu0 0.0
      %1217 = vmatpush1.msra.mxu0 0.0
      %1218 = vmatprep.subr.mxu0 0.0
      %1219 = vmatpush1.msra.mxu0 0.0
      %1220 = vmatprep.subr.mxu0 0.0
      %1221 = vmatpush1.msra.mxu0 0.0
      %1222 = vmatprep.subr.mxu0 0.0
      %1223 = vmatpush1.msra.mxu0 0.0
      %1224 = vmatprep.subr.mxu0 0.0
      %1225 = vmatpush1.msra.mxu0 0.0
      %1226 = vmatprep.subr.mxu0 0.0
      %1227 = vmatpush1.msra.mxu0 0.0
      %1228 = vmatprep.subr.mxu0 0.0
      %1229 = vmatpush1.msra.mxu0 0.0
      %1230 = vmatprep.subr.mxu0 0.0
      %1231 = vmatpush1.msra.mxu0 0.0
      %1232 = vmatprep.subr.mxu0 0.0
      %1233 = vmatpush1.msra.mxu0 0.0
      %1234 = vmatprep.subr.mxu0 0.0
      %1235 = vmatpush1.msra.mxu0 0.0
      %1236 = vmatprep.subr.mxu0 0.0
      %1237 = vmatpush1.msra.mxu0 0.0
      %1238 = vmatprep.subr.mxu0 0.0
      %1239 = vmatpush1.msra.mxu0 0.0
      %1240 = vmatprep.mubr.f32.mxu0 0.0
      %1241 = vmatmul.mubr.f32.gmra.mrb[0].mxu0 %v1089
      %v1242 = vpop.f32.mrb[0].mxu0
      %v1243 = vadd.f32 %v1174, %v1242
      %v1244 = vpop.f32.mrb[0].mxu0
      %1245 = vmatprep.mubr.f32.mxu0 0.0
      %1246 = vmatmul.mubr.f32.gmra.mrb[0].mxu0 %v1090
      %v1247 = vpop.f32.mrb[0].mxu0
      %v1248 = vadd.f32 %v1174, %v1247
      %v1249 = vpop.f32.mrb[0].mxu0
      %1250 = vmatprep.mubr.f32.mxu0 0.0
      %1251 = vmatmul.mubr.f32.gmra.mrb[0].mxu0 %v1091
      %v1252 = vpop.f32.mrb[0].mxu0
      %v1253 = vadd.f32 %v1174, %v1252
      %v1254 = vpop.f32.mrb[0].mxu0
      %1255 = vmatprep.mubr.f32.mxu0 0.0
      %1256 = vmatmul.mubr.f32.gmra.mrb[0].mxu0 %v1092
      %v1257 = vpop.f32.mrb[0].mxu0
      %v1258 = vadd.f32 %v1174, %v1257
      %v1259 = vpop.f32.mrb[0].mxu0
      %1260 = vmatprep.mubr.f32.mxu0 0.0
      %1261 = vmatmul.mubr.f32.gmra.mrb[0].mxu0 %v1093
      %v1262 = vpop.f32.mrb[0].mxu0
      %v1263 = vadd.f32 %v1174, %v1262
      %v1264 = vpop.f32.mrb[0].mxu0
      %1265 = vmatprep.mubr.f32.mxu0 0.0
      %1266 = vmatmul.mubr.f32.gmra.mrb[0].mxu0 %v1094
      %v1267 = vpop.f32.mrb[0].mxu0
      %v1268 = vadd.f32 %v1174, %v1267
      %v1269 = vpop.f32.mrb[0].mxu0
      %1270 = vmatprep.mubr.f32.mxu0 0.0
      %1271 = vmatmul.mubr.f32.gmra.mrb[0].mxu0 %v1095
      %v1272 = vpop.f32.mrb[0].mxu0
      %v1273 = vadd.f32 %v1174, %v1272
      %v1274 = vpop.f32.mrb[0].mxu0
      %1275 = vmatprep.mubr.f32.mxu0 0.0
      %1276 = vmatmul.mubr.f32.gmra.mrb[0].mxu0 %v1096
      %v1277 = vpop.f32.mrb[0].mxu0
      %v1278 = vadd.f32 %v1174, %v1277
      %v1279 = vpop.f32.mrb[0].mxu0
      %1280 = vmatprep.mubr.f32.mxu0 0.0
      %1281 = vmatmul.mubr.f32.gmra.mrb[0].mxu0 %v1097
      %v1282 = vpop.f32.mrb[0].mxu0
      %v1283 = vadd.f32 %v1174, %v1282
      %v1284 = vpop.f32.mrb[0].mxu0
      %1285 = vmatprep.mubr.f32.mxu0 0.0
      %1286 = vmatmul.mubr.f32.gmra.mrb[0].mxu0 %v1098
      %v1287 = vpop.f32.mrb[0].mxu0
      %v1288 = vadd.f32 %v1174, %v1287
      %v1289 = vpop.f32.mrb[0].mxu0
      %1290 = vmatprep.mubr.f32.mxu0 0.0
      %1291 = vmatmul.mubr.f32.gmra.mrb[0].mxu0 %v1099
      %v1292 = vpop.f32.mrb[0].mxu0
      %v1293 = vadd.f32 %v1174, %v1292
      %v1294 = vpop.f32.mrb[0].mxu0
      %1295 = vmatprep.mubr.f32.mxu0 0.0
      %1296 = vmatmul.mubr.f32.gmra.mrb[0].mxu0 %v1100
      %v1297 = vpop.f32.mrb[0].mxu0
      %v1298 = vadd.f32 %v1174, %v1297
      %v1299 = vpop.f32.mrb[0].mxu0
      %1300 = vmatprep.mubr.f32.mxu0 0.0
      %1301 = vmatmul.mubr.f32.gmra.mrb[0].mxu0 %v1101
      %v1302 = vpop.f32.mrb[0].mxu0
      %v1303 = vadd.f32 %v1174, %v1302
      %v1304 = vpop.f32.mrb[0].mxu0
      %1305 = vmatprep.mubr.f32.mxu0 0.0
      %1306 = vmatmul.mubr.f32.gmra.mrb[0].mxu0 %v1102
      %v1307 = vpop.f32.mrb[0].mxu0
      %v1308 = vadd.f32 %v1174, %v1307
      %v1309 = vpop.f32.mrb[0].mxu0
      %1310 = vmatprep.mubr.f32.mxu0 0.0
      %1311 = vmatmul.mubr.f32.gmra.mrb[0].mxu0 %v1103
      %v1312 = vpop.f32.mrb[0].mxu0
      %v1313 = vadd.f32 %v1174, %v1312
      %v1314 = vpop.f32.mrb[0].mxu0
      %1315 = vmatprep.mubr.f32.mxu0 0.0
      %1316 = vmatmul.mubr.f32.gmra.mrb[0].mxu0 %v1104
      %v1317 = vpop.f32.mrb[0].mxu0
      %v1318 = vadd.f32 %v1174, %v1317
      %v1319 = vpop.f32.mrb[0].mxu0
      %1320 = vmatprep.mubr.f32.mxu0 0.0
      %1321 = vmatmul.mubr.f32.gmra.mrb[0].mxu0 %v1105
      %v1322 = vpop.f32.mrb[0].mxu0
      %v1323 = vadd.f32 %v1174, %v1322
      %v1324 = vpop.f32.mrb[0].mxu0
      %1325 = vmatprep.mubr.f32.mxu0 0.0
      %1326 = vmatmul.mubr.f32.gmra.mrb[0].mxu0 %v1106
      %v1327 = vpop.f32.mrb[0].mxu0
      %v1328 = vadd.f32 %v1174, %v1327
      %v1329 = vpop.f32.mrb[0].mxu0
      %1330 = vmatprep.mubr.f32.mxu0 0.0
      %1331 = vmatmul.mubr.f32.gmra.mrb[0].mxu0 %v1107
      %v1332 = vpop.f32.mrb[0].mxu0
      %v1333 = vadd.f32 %v1174, %v1332
      %v1334 = vpop.f32.mrb[0].mxu0
      %1335 = vmatprep.mubr.f32.mxu0 0.0
      %1336 = vmatmul.mubr.f32.gmra.mrb[0].mxu0 %v1108
      %v1337 = vpop.f32.mrb[0].mxu0
      %v1338 = vadd.f32 %v1174, %v1337
      %v1339 = vpop.f32.mrb[0].mxu0
      %1340 = vmatprep.mubr.f32.mxu0 0.0
      %1341 = vmatmul.mubr.f32.gmra.mrb[0].mxu0 %v1109
      %v1342 = vpop.f32.mrb[0].mxu0
      %v1343 = vadd.f32 %v1174, %v1342
      %v1344 = vpop.f32.mrb[0].mxu0
      %1345 = vmatprep.mubr.f32.mxu0 0.0
      %1346 = vmatmul.mubr.f32.gmra.mrb[0].mxu0 %v1110
      %v1347 = vpop.f32.mrb[0].mxu0
      %v1348 = vadd.f32 %v1174, %v1347
      %v1349 = vpop.f32.mrb[0].mxu0
      %1350 = vmatprep.mubr.f32.mxu0 0.0
      %1351 = vmatmul.mubr.f32.gmra.mrb[0].mxu0 %v1111
      %v1352 = vpop.f32.mrb[0].mxu0
      %v1353 = vadd.f32 %v1174, %v1352
      %v1354 = vpop.f32.mrb[0].mxu0
      %1355 = vmatprep.mubr.f32.mxu0 0.0
      %1356 = vmatmul.mubr.f32.gmra.mrb[0].mxu0 %v1112
      %v1357 = vpop.f32.mrb[0].mxu0
      %v1358 = vadd.f32 %v1174, %v1357
      %v1359 = vpop.f32.mrb[0].mxu0
      %1360 = vmatprep.mubr.f32.mxu0 0.0
      %1361 = vmatmul.mubr.f32.gmra.mrb[0].mxu0 %v1113
      %v1362 = vpop.f32.mrb[0].mxu0
      %v1363 = vadd.f32 %v1174, %v1362
      %v1364 = vpop.f32.mrb[0].mxu0
      %1365 = vmatprep.mubr.f32.mxu0 0.0
      %1366 = vmatmul.mubr.f32.gmra.mrb[0].mxu0 %v1114
      %v1367 = vpop.f32.mrb[0].mxu0
      %v1368 = vadd.f32 %v1174, %v1367
      %v1369 = vpop.f32.mrb[0].mxu0
      %1370 = vmatprep.mubr.f32.mxu0 0.0
      %1371 = vmatmul.mubr.f32.gmra.mrb[0].mxu0 %v1115
      %v1372 = vpop.f32.mrb[0].mxu0
      %v1373 = vadd.f32 %v1174, %v1372
      %v1374 = vpop.f32.mrb[0].mxu0
      %1375 = vmatprep.mubr.f32.mxu0 0.0
      %1376 = vmatmul.mubr.f32.gmra.mrb[0].mxu0 %v1116
      %v1377 = vpop.f32.mrb[0].mxu0
      %v1378 = vadd.f32 %v1174, %v1377
      %v1379 = vpop.f32.mrb[0].mxu0
      %1380 = vmatprep.mubr.f32.mxu0 0.0
      %1381 = vmatmul.mubr.f32.gmra.mrb[0].mxu0 %v1117
      %v1382 = vpop.f32.mrb[0].mxu0
      %v1383 = vadd.f32 %v1174, %v1382
      %v1384 = vpop.f32.mrb[0].mxu0
      %1385 = vmatprep.mubr.f32.mxu0 0.0
      %1386 = vmatmul.mubr.f32.gmra.mrb[0].mxu0 %v1118
      %v1387 = vpop.f32.mrb[0].mxu0
      %v1388 = vadd.f32 %v1174, %v1387
      %v1389 = vpop.f32.mrb[0].mxu0
      %1390 = vmatprep.mubr.f32.mxu0 0.0
      %1391 = vmatmul.mubr.f32.gmra.mrb[0].mxu0 %v1119
      %v1392 = vpop.f32.mrb[0].mxu0
      %v1393 = vadd.f32 %v1174, %v1392
      %v1394 = vpop.f32.mrb[0].mxu0
      %1395 = vmatprep.mubr.f32.mxu0 0.0
      %1396 = vmatmul.mubr.f32.gmra.mrb[0].mxu0 %v1120
      %v1397 = vpop.f32.mrb[0].mxu0
      %v1398 = vadd.f32 %v1174, %v1397
      %v1399 = vpop.f32.mrb[0].mxu0
      %1400 = vmatprep.mubr.f32.mxu0 0.0
      %1401 = vmatmul.mubr.f32.gmra.mrb[0].mxu0 %v1121
      %v1402 = vpop.f32.mrb[0].mxu0
      %v1403 = vadd.f32 %v1174, %v1402
      %v1404 = vpop.f32.mrb[0].mxu0
      %1405 = vmatprep.mubr.f32.mxu0 0.0
      %1406 = vmatmul.mubr.f32.gmra.mrb[0].mxu0 %v1122
      %v1407 = vpop.f32.mrb[0].mxu0
      %v1408 = vadd.f32 %v1174, %v1407
      %v1409 = vpop.f32.mrb[0].mxu0
      %1410 = vmatprep.mubr.f32.mxu0 0.0
      %1411 = vmatmul.mubr.f32.gmra.mrb[0].mxu0 %v1123
      %v1412 = vpop.f32.mrb[0].mxu0
      %v1413 = vadd.f32 %v1174, %v1412
      %v1414 = vpop.f32.mrb[0].mxu0
      %1415 = vmatprep.mubr.f32.mxu0 0.0
      %1416 = vmatmul.mubr.f32.gmra.mrb[0].mxu0 %v1124
      %v1417 = vpop.f32.mrb[0].mxu0
      %v1418 = vadd.f32 %v1174, %v1417
      %v1419 = vpop.f32.mrb[0].mxu0
      %1420 = vmatprep.mubr.f32.mxu0 0.0
      %1421 = vmatmul.mubr.f32.gmra.mrb[0].mxu0 %v1125
      %v1422 = vpop.f32.mrb[0].mxu0
      %v1423 = vadd.f32 %v1174, %v1422
      %v1424 = vpop.f32.mrb[0].mxu0
      %1425 = vmatprep.mubr.f32.mxu0 0.0
      %1426 = vmatmul.mubr.f32.gmra.mrb[0].mxu0 %v1126
      %v1427 = vpop.f32.mrb[0].mxu0
      %v1428 = vadd.f32 %v1174, %v1427
      %v1429 = vpop.f32.mrb[0].mxu0
      %1430 = vmatprep.mubr.f32.mxu0 0.0
      %1431 = vmatmul.mubr.f32.gmra.mrb[0].mxu0 %v1127
      %v1432 = vpop.f32.mrb[0].mxu0
      %v1433 = vadd.f32 %v1174, %v1432
      %v1434 = vpop.f32.mrb[0].mxu0
      %1435 = vmatprep.mubr.f32.mxu0 0.0
      %1436 = vmatmul.mubr.f32.gmra.mrb[0].mxu0 %v1128
      %v1437 = vpop.f32.mrb[0].mxu0
      %v1438 = vadd.f32 %v1174, %v1437
      %v1439 = vpop.f32.mrb[0].mxu0
      %1440 = vmatprep.mubr.f32.mxu0 0.0
      %1441 = vmatmul.mubr.f32.gmra.mrb[0].mxu0 %v1129
      %v1442 = vpop.f32.mrb[0].mxu0
      %v1443 = vadd.f32 %v1174, %v1442
      %v1444 = vpop.f32.mrb[0].mxu0
      %1445 = vmatprep.mubr.f32.mxu0 0.0
      %1446 = vmatmul.mubr.f32.gmra.mrb[0].mxu0 %v1130
      %v1447 = vpop.f32.mrb[0].mxu0
      %v1448 = vadd.f32 %v1174, %v1447
      %v1449 = vpop.f32.mrb[0].mxu0
      %1450 = vmatprep.mubr.f32.mxu0 0.0
      %1451 = vmatmul.mubr.f32.gmra.mrb[0].mxu0 %v1131
      %v1452 = vpop.f32.mrb[0].mxu0
      %v1453 = vadd.f32 %v1174, %v1452
      %v1454 = vpop.f32.mrb[0].mxu0
      %1455 = vmatprep.mubr.f32.mxu0 0.0
      %1456 = vmatmul.mubr.f32.gmra.mrb[0].mxu0 %v1132
      %v1457 = vpop.f32.mrb[0].mxu0
      %v1458 = vadd.f32 %v1174, %v1457
      %v1459 = vpop.f32.mrb[0].mxu0
      %1460 = vmatprep.mubr.f32.mxu0 0.0
      %1461 = vmatmul.mubr.f32.gmra.mrb[0].mxu0 %v1133
      %v1462 = vpop.f32.mrb[0].mxu0
      %v1463 = vadd.f32 %v1174, %v1462
      %v1464 = vpop.f32.mrb[0].mxu0
      %1465 = vmatprep.mubr.f32.mxu0 0.0
      %1466 = vmatmul.mubr.f32.gmra.mrb[0].mxu0 %v1134
      %v1467 = vpop.f32.mrb[0].mxu0
      %v1468 = vadd.f32 %v1174, %v1467
      %v1469 = vpop.f32.mrb[0].mxu0
      %1470 = vmatprep.mubr.f32.mxu0 0.0
      %1471 = vmatmul.mubr.f32.gmra.mrb[0].mxu0 %v1135
      %v1472 = vpop.f32.mrb[0].mxu0
      %v1473 = vadd.f32 %v1174, %v1472
      %v1474 = vpop.f32.mrb[0].mxu0
      %1475 = vmatprep.mubr.f32.mxu0 0.0
      %1476 = vmatmul.mubr.f32.gmra.mrb[0].mxu0 %v1136
      %v1477 = vpop.f32.mrb[0].mxu0
      %v1478 = vadd.f32 %v1174, %v1477
      %v1479 = vpop.f32.mrb[0].mxu0
      %1480 = vmatprep.mubr.f32.mxu0 0.0
      %1481 = vmatmul.mubr.f32.gmra.mrb[0].mxu0 %v1137
      %v1482 = vpop.f32.mrb[0].mxu0
      %v1483 = vadd.f32 %v1174, %v1482
      %v1484 = vpop.f32.mrb[0].mxu0
      %1485 = vmatprep.mubr.f32.mxu0 0.0
      %1486 = vmatmul.mubr.f32.gmra.mrb[0].mxu0 %v1138
      %v1487 = vpop.f32.mrb[0].mxu0
      %v1488 = vadd.f32 %v1174, %v1487
      %v1489 = vpop.f32.mrb[0].mxu0
      %1490 = vmatprep.mubr.f32.mxu0 0.0
      %1491 = vmatmul.mubr.f32.gmra.mrb[0].mxu0 %v1139
      %v1492 = vpop.f32.mrb[0].mxu0
      %v1493 = vadd.f32 %v1174, %v1492
      %v1494 = vpop.f32.mrb[0].mxu0
      %1495 = vmatprep.mubr.f32.mxu0 0.0
      %1496 = vmatmul.mubr.f32.gmra.mrb[0].mxu0 %v1140
      %v1497 = vpop.f32.mrb[0].mxu0
      %v1498 = vadd.f32 %v1174, %v1497
      %v1499 = vpop.f32.mrb[0].mxu0
      %1500 = vmatprep.mubr.f32.mxu0 0.0
      %1501 = vmatmul.mubr.f32.gmra.mrb[0].mxu0 %v1141
      %v1502 = vpop.f32.mrb[0].mxu0
      %v1503 = vadd.f32 %v1174, %v1502
      %v1504 = vpop.f32.mrb[0].mxu0
      %1505 = vmatprep.mubr.f32.mxu0 0.0
      %1506 = vmatmul.mubr.f32.gmra.mrb[0].mxu0 %v1142
      %v1507 = vpop.f32.mrb[0].mxu0
      %v1508 = vadd.f32 %v1174, %v1507
      %v1509 = vpop.f32.mrb[0].mxu0
      %1510 = vmatprep.mubr.f32.mxu0 0.0
      %1511 = vmatmul.mubr.f32.gmra.mrb[0].mxu0 %v1143
      %v1512 = vpop.f32.mrb[0].mxu0
      %v1513 = vadd.f32 %v1174, %v1512
      %v1514 = vpop.f32.mrb[0].mxu0
      %1515 = vmatprep.mubr.f32.mxu0 0.0
      %1516 = vmatmul.mubr.f32.gmra.mrb[0].mxu0 %v1144
      %v1517 = vpop.f32.mrb[0].mxu0
      %v1518 = vadd.f32 %v1174, %v1517
      %v1519 = vpop.f32.mrb[0].mxu0
      %1520 = vmatprep.mubr.f32.mxu0 0.0
      %1521 = vmatmul.mubr.f32.gmra.mrb[0].mxu0 %v1145
      %v1522 = vpop.f32.mrb[0].mxu0
      %v1523 = vadd.f32 %v1174, %v1522
      %v1524 = vpop.f32.mrb[0].mxu0
      %1525 = vmatprep.mubr.f32.mxu0 0.0
      %1526 = vmatmul.mubr.f32.gmra.mrb[0].mxu0 %v1146
      %v1527 = vpop.f32.mrb[0].mxu0
      %v1528 = vadd.f32 %v1174, %v1527
      %v1529 = vpop.f32.mrb[0].mxu0
      %1530 = vmatprep.mubr.f32.mxu0 0.0
      %1531 = vmatmul.mubr.f32.gmra.mrb[0].mxu0 %v1147
      %v1532 = vpop.f32.mrb[0].mxu0
      %v1533 = vadd.f32 %v1174, %v1532
      %v1534 = vpop.f32.mrb[0].mxu0
      %1535 = vmatprep.mubr.f32.mxu0 0.0
      %1536 = vmatmul.mubr.f32.gmra.mrb[0].mxu0 %v1148
      %v1537 = vpop.f32.mrb[0].mxu0
      %v1538 = vadd.f32 %v1174, %v1537
      %v1539 = vpop.f32.mrb[0].mxu0
      %1540 = vmatprep.mubr.f32.mxu0 0.0
      %1541 = vmatmul.mubr.f32.gmra.mrb[0].mxu0 %v1149
      %v1542 = vpop.f32.mrb[0].mxu0
      %v1543 = vadd.f32 %v1174, %v1542
      %v1544 = vpop.f32.mrb[0].mxu0
      %1545 = vmatprep.mubr.f32.mxu0 0.0
      %1546 = vmatmul.mubr.f32.gmra.mrb[0].mxu0 %v1150
      %v1547 = vpop.f32.mrb[0].mxu0
      %v1548 = vadd.f32 %v1174, %v1547
      %v1549 = vpop.f32.mrb[0].mxu0
      %1550 = vmatprep.mubr.f32.mxu0 0.0
      %1551 = vmatmul.mubr.f32.gmra.mrb[0].mxu0 %v1151
      %v1552 = vpop.f32.mrb[0].mxu0
      %v1553 = vadd.f32 %v1174, %v1552
      %v1554 = vpop.f32.mrb[0].mxu0
      %1555 = vmatprep.mubr.f32.mxu0 0.0
      %1556 = vmatmul.mubr.f32.gmra.mrb[0].mxu0 %v1152
      %v1557 = vpop.f32.mrb[0].mxu0
      %v1558 = vadd.f32 %v1174, %v1557
      %v1559 = vpop.f32.mrb[0].mxu0
      %1560 = vdwg.mxu0
      %v1561 = vadd.f32 %v1243, %v1248
      %v1562 = vadd.f32 %v1561, %v1253
      %v1563 = vadd.f32 %v1562, %v1258
      %v1564 = vadd.f32 %v1563, %v1263
      %v1565 = vadd.f32 %v1564, %v1268
      %v1566 = vadd.f32 %v1565, %v1273
      %v1567 = vadd.f32 %v1566, %v1278
      %v1568 = vadd.f32 %v1567, %v1283
      %v1569 = vadd.f32 %v1568, %v1288
      %v1570 = vadd.f32 %v1569, %v1293
      %v1571 = vadd.f32 %v1570, %v1298
      %v1572 = vadd.f32 %v1571, %v1303
      %v1573 = vadd.f32 %v1572, %v1308
      %v1574 = vadd.f32 %v1573, %v1313
      %v1575 = vadd.f32 %v1574, %v1318
      %v1576 = vadd.f32 %v1575, %v1323
      %v1577 = vadd.f32 %v1576, %v1328
      %v1578 = vadd.f32 %v1577, %v1333
      %v1579 = vadd.f32 %v1578, %v1338
      %v1580 = vadd.f32 %v1579, %v1343
      %v1581 = vadd.f32 %v1580, %v1348
      %v1582 = vadd.f32 %v1581, %v1353
      %v1583 = vadd.f32 %v1582, %v1358
      %v1584 = vadd.f32 %v1583, %v1363
      %v1585 = vadd.f32 %v1584, %v1368
      %v1586 = vadd.f32 %v1585, %v1373
      %v1587 = vadd.f32 %v1586, %v1378
      %v1588 = vadd.f32 %v1587, %v1383
      %v1589 = vadd.f32 %v1588, %v1388
      %v1590 = vadd.f32 %v1589, %v1393
      %v1591 = vadd.f32 %v1590, %v1398
      %v1592 = vadd.f32 %v1591, %v1403
      %v1593 = vadd.f32 %v1592, %v1408
      %v1594 = vadd.f32 %v1593, %v1413
      %v1595 = vadd.f32 %v1594, %v1418
      %v1596 = vadd.f32 %v1595, %v1423
      %v1597 = vadd.f32 %v1596, %v1428
      %v1598 = vadd.f32 %v1597, %v1433
      %v1599 = vadd.f32 %v1598, %v1438
      %v1600 = vadd.f32 %v1599, %v1443
      %v1601 = vadd.f32 %v1600, %v1448
      %v1602 = vadd.f32 %v1601, %v1453
      %v1603 = vadd.f32 %v1602, %v1458
      %v1604 = vadd.f32 %v1603, %v1463
      %v1605 = vadd.f32 %v1604, %v1468
      %v1606 = vadd.f32 %v1605, %v1473
      %v1607 = vadd.f32 %v1606, %v1478
      %v1608 = vadd.f32 %v1607, %v1483
      %v1609 = vadd.f32 %v1608, %v1488
      %v1610 = vadd.f32 %v1609, %v1493
      %v1611 = vadd.f32 %v1610, %v1498
      %v1612 = vadd.f32 %v1611, %v1503
      %v1613 = vadd.f32 %v1612, %v1508
      %v1614 = vadd.f32 %v1613, %v1513
      %v1615 = vadd.f32 %v1614, %v1518
      %v1616 = vadd.f32 %v1615, %v1523
      %v1617 = vadd.f32 %v1616, %v1528
      %v1618 = vadd.f32 %v1617, %v1533
      %v1619 = vadd.f32 %v1618, %v1538
      %v1620 = vadd.f32 %v1619, %v1543
      %v1621 = vadd.f32 %v1620, %v1548
      %v1622 = vadd.f32 %v1621, %v1553
      %v1623 = vadd.f32 %v1622, %v1558
      %v1624 = vrot.slane %v1623, 4
      %v1625 = vadd.f32 %v1623, %v1624
      %v1626 = vrot.slane %v1625, 2
      %v1627 = vadd.f32 %v1625, %v1626
      %v1628 = vrot.slane %v1627, 1
      %v1629 = vadd.f32 %v1627, %v1628
      %v1630 = vmul.f32 %v1243, %v1243
      %v1631 = vmul.f32 %v1248, %v1248
      %v1632 = vmul.f32 %v1253, %v1253
      %v1633 = vmul.f32 %v1258, %v1258
      %v1634 = vmul.f32 %v1263, %v1263
      %v1635 = vmul.f32 %v1268, %v1268
      %v1636 = vmul.f32 %v1273, %v1273
      %v1637 = vmul.f32 %v1278, %v1278
      %v1638 = vmul.f32 %v1283, %v1283
      %v1639 = vmul.f32 %v1288, %v1288
      %v1640 = vmul.f32 %v1293, %v1293
      %v1641 = vmul.f32 %v1298, %v1298
      %v1642 = vmul.f32 %v1303, %v1303
      %v1643 = vmul.f32 %v1308, %v1308
      %v1644 = vmul.f32 %v1313, %v1313
      %v1645 = vmul.f32 %v1318, %v1318
      %v1646 = vmul.f32 %v1323, %v1323
      %v1647 = vmul.f32 %v1328, %v1328
      %v1648 = vmul.f32 %v1333, %v1333
      %v1649 = vmul.f32 %v1338, %v1338
      %v1650 = vmul.f32 %v1343, %v1343
      %v1651 = vmul.f32 %v1348, %v1348
      %v1652 = vmul.f32 %v1353, %v1353
      %v1653 = vmul.f32 %v1358, %v1358
      %v1654 = vmul.f32 %v1363, %v1363
      %v1655 = vmul.f32 %v1368, %v1368
      %v1656 = vmul.f32 %v1373, %v1373
      %v1657 = vmul.f32 %v1378, %v1378
      %v1658 = vmul.f32 %v1383, %v1383
      %v1659 = vmul.f32 %v1388, %v1388
      %v1660 = vmul.f32 %v1393, %v1393
      %v1661 = vmul.f32 %v1398, %v1398
      %v1662 = vmul.f32 %v1403, %v1403
      %v1663 = vmul.f32 %v1408, %v1408
      %v1664 = vmul.f32 %v1413, %v1413
      %v1665 = vmul.f32 %v1418, %v1418
      %v1666 = vmul.f32 %v1423, %v1423
      %v1667 = vmul.f32 %v1428, %v1428
      %v1668 = vmul.f32 %v1433, %v1433
      %v1669 = vmul.f32 %v1438, %v1438
      %v1670 = vmul.f32 %v1443, %v1443
      %v1671 = vmul.f32 %v1448, %v1448
      %v1672 = vmul.f32 %v1453, %v1453
      %v1673 = vmul.f32 %v1458, %v1458
      %v1674 = vmul.f32 %v1463, %v1463
      %v1675 = vmul.f32 %v1468, %v1468
      %v1676 = vmul.f32 %v1473, %v1473
      %v1677 = vmul.f32 %v1478, %v1478
      %v1678 = vmul.f32 %v1483, %v1483
      %v1679 = vmul.f32 %v1488, %v1488
      %v1680 = vmul.f32 %v1493, %v1493
      %v1681 = vmul.f32 %v1498, %v1498
      %v1682 = vmul.f32 %v1503, %v1503
      %v1683 = vmul.f32 %v1508, %v1508
      %v1684 = vmul.f32 %v1513, %v1513
      %v1685 = vmul.f32 %v1518, %v1518
      %v1686 = vmul.f32 %v1523, %v1523
      %v1687 = vmul.f32 %v1528, %v1528
      %v1688 = vmul.f32 %v1533, %v1533
      %v1689 = vmul.f32 %v1538, %v1538
      %v1690 = vmul.f32 %v1543, %v1543
      %v1691 = vmul.f32 %v1548, %v1548
      %v1692 = vmul.f32 %v1553, %v1553
      %v1693 = vmul.f32 %v1558, %v1558
      %v1694 = vadd.f32 %v1630, %v1631
      %v1695 = vadd.f32 %v1694, %v1632
      %v1696 = vadd.f32 %v1695, %v1633
      %v1697 = vadd.f32 %v1696, %v1634
      %v1698 = vadd.f32 %v1697, %v1635
      %v1699 = vadd.f32 %v1698, %v1636
      %v1700 = vadd.f32 %v1699, %v1637
      %v1701 = vadd.f32 %v1700, %v1638
      %v1702 = vadd.f32 %v1701, %v1639
      %v1703 = vadd.f32 %v1702, %v1640
      %v1704 = vadd.f32 %v1703, %v1641
      %v1705 = vadd.f32 %v1704, %v1642
      %v1706 = vadd.f32 %v1705, %v1643
      %v1707 = vadd.f32 %v1706, %v1644
      %v1708 = vadd.f32 %v1707, %v1645
      %v1709 = vadd.f32 %v1708, %v1646
      %v1710 = vadd.f32 %v1709, %v1647
      %v1711 = vadd.f32 %v1710, %v1648
      %v1712 = vadd.f32 %v1711, %v1649
      %v1713 = vadd.f32 %v1712, %v1650
      %v1714 = vadd.f32 %v1713, %v1651
      %v1715 = vadd.f32 %v1714, %v1652
      %v1716 = vadd.f32 %v1715, %v1653
      %v1717 = vadd.f32 %v1716, %v1654
      %v1718 = vadd.f32 %v1717, %v1655
      %v1719 = vadd.f32 %v1718, %v1656
      %v1720 = vadd.f32 %v1719, %v1657
      %v1721 = vadd.f32 %v1720, %v1658
      %v1722 = vadd.f32 %v1721, %v1659
      %v1723 = vadd.f32 %v1722, %v1660
      %v1724 = vadd.f32 %v1723, %v1661
      %v1725 = vadd.f32 %v1724, %v1662
      %v1726 = vadd.f32 %v1725, %v1663
      %v1727 = vadd.f32 %v1726, %v1664
      %v1728 = vadd.f32 %v1727, %v1665
      %v1729 = vadd.f32 %v1728, %v1666
      %v1730 = vadd.f32 %v1729, %v1667
      %v1731 = vadd.f32 %v1730, %v1668
      %v1732 = vadd.f32 %v1731, %v1669
      %v1733 = vadd.f32 %v1732, %v1670
      %v1734 = vadd.f32 %v1733, %v1671
      %v1735 = vadd.f32 %v1734, %v1672
      %v1736 = vadd.f32 %v1735, %v1673
      %v1737 = vadd.f32 %v1736, %v1674
      %v1738 = vadd.f32 %v1737, %v1675
      %v1739 = vadd.f32 %v1738, %v1676
      %v1740 = vadd.f32 %v1739, %v1677
      %v1741 = vadd.f32 %v1740, %v1678
      %v1742 = vadd.f32 %v1741, %v1679
      %v1743 = vadd.f32 %v1742, %v1680
      %v1744 = vadd.f32 %v1743, %v1681
      %v1745 = vadd.f32 %v1744, %v1682
      %v1746 = vadd.f32 %v1745, %v1683
      %v1747 = vadd.f32 %v1746, %v1684
      %v1748 = vadd.f32 %v1747, %v1685
      %v1749 = vadd.f32 %v1748, %v1686
      %v1750 = vadd.f32 %v1749, %v1687
      %v1751 = vadd.f32 %v1750, %v1688
      %v1752 = vadd.f32 %v1751, %v1689
      %v1753 = vadd.f32 %v1752, %v1690
      %v1754 = vadd.f32 %v1753, %v1691
      %v1755 = vadd.f32 %v1754, %v1692
      %v1756 = vadd.f32 %v1755, %v1693
      %v1757 = vrot.slane %v1756, 4
      %v1758 = vadd.f32 %v1756, %v1757
      %v1759 = vrot.slane %v1758, 2
      %v1760 = vadd.f32 %v1758, %v1759
      %v1761 = vrot.slane %v1760, 1
      %v1762 = vadd.f32 %v1760, %v1761
      %v1763 = vld [vmem:[%s7] sm:$0x1]
      %v1764 = vadd.f32 %v1763, %v1629
      %1765 = vst [vmem:[%s7] sm:$0x1] %v1764
      %v1766 = vld [vmem:[%s8] sm:$0x1]
      %v1767 = vadd.f32 %v1766, %v1762
      %1768 = vst [vmem:[%s8] sm:$0x1] %v1767
      // Predicated region
      $region53: #{decoder_forward.4} parent=47 // pred_check
        %p1769 = pneg %p185
      $region54: #{decoder_forward.4} parent=47 // pred_check_branch
        %1771 = sbr.rel (%p1769) target = $region56
      $region55: #{decoder_forward.4} parent=47 // pred_region
        _
      $region56: #{decoder_forward.4} parent=47 // pred_fallthru
        _
      // Predicated region
      $region57: #{decoder_forward.4} parent=47 // pred_check
        %p1772 = pneg %p206
      $region58: #{decoder_forward.4} parent=47 // pred_check_branch
        %1774 = sbr.rel (%p1772) target = $region60
      $region59: #{decoder_forward.4} parent=47 // pred_region
        _
      $region60: #{decoder_forward.4} parent=47 // pred_fallthru
        _
      // Predicated region
      $region61: #{decoder_forward.4} parent=47 // pred_check
        %p1775 = pneg %p185
      $region62: #{decoder_forward.4} parent=47 // pred_check_branch
        %1777 = sbr.rel (%p1775) target = $region64
      $region63: #{decoder_forward.4} parent=47 // pred_region
        _
      $region64: #{decoder_forward.4} parent=47 // pred_fallthru
        _
      // Predicated region
      $region65: #{decoder_forward.4} parent=47 // pred_check
        %p1778 = pneg %p206
      $region66: #{decoder_forward.4} parent=47 // pred_check_branch
        %1780 = sbr.rel (%p1778) target = $region68
      $region67: #{decoder_forward.4} parent=47 // pred_region
        _
      $region68: #{decoder_forward.4} parent=47 // pred_fallthru
        _
    $region48: #{decoder_forward.4} parent=5 // pred_fallthru
      _
    %p1781 = scmp.le.s32.totalorder 2, %s15
    // Predicated region
    $region69: #{decoder_forward.4} parent=5 // pred_check
      %p1782 = pneg %p1781
    $region70: #{decoder_forward.4} parent=5 // pred_check_branch
      %1784 = sbr.rel (%p1782) target = $region72
    $region71: #{decoder_forward.4} parent=5 // pred_region
      %s1785 = ssub.s32 %s15, 2
    $region72: #{decoder_forward.4} parent=5 // pred_fallthru
      _
  $region6: #{decoder_forward.4} parent=0 // loop_footer
    %s19 = sadd.s32 1, %s15
  $region7: #{decoder_forward.4} parent=0 // loop_footer_branch
    %14 = sbr.rel target = $region3
  $region8: #{decoder_forward.4} parent=0 // loop_exit
    _

// kernel: decoder_forward.5
$region0: #{decoder_forward.5}
  #allocation0 [shape = 'u32[]', space=smem, size = 0x4, offset = 0x4, fixed_abs, tag = 'smem constant byte address 0x4 - core index']
  #allocation1 [shape = 'u32[144,128]{1,0:T(1,128)}', space=vmem, size = 0x12000, scoped, tag = 'internal scratch']
  %s0 = inlined_call_operand.vmem [shape: f32[1024,8], index: 0, kind: input, shape index: {}]
  %s1 = inlined_call_operand.vmem [shape: f32[8,128], index: 1, kind: input, shape index: {}]
  %s2 = inlined_call_operand.vmem [shape: f32[1,128], index: 2, kind: input, shape index: {}]
  %s3 = inlined_call_operand.vmem [shape: f32[1,128], index: 3, kind: input, shape index: {}]
  %s4 = inlined_call_operand.vmem [shape: f32[1,128], index: 4, kind: input, shape index: {}]
  %s5 = inlined_call_operand.vmem [shape: f32[128,128], index: 5, kind: input, shape index: {}]
  %s6 = inlined_call_operand.vmem [shape: f32[1,128], index: 6, kind: input, shape index: {}]
  %s7 = inlined_call_operand.vmem [shape: f32[1,128], index: 7, kind: input, shape index: {}]
  %s8 = inlined_call_operand.vmem [shape: f32[1,128], index: 8, kind: input, shape index: {}]
  %s9 = inlined_call_operand.vmem [shape: f32[1024,128], index: 9, kind: output, shape index: {}]
  %s10 = sld [smem:[#allocation0]]
  $region69: #{decoder_forward.5} parent=0
    _
  %s12 = ssub.s32 1, %s10
  %s13 = scalar_select 0, %s12, %s10
  loop: start=0, step=1, limit=4
  $region2: #{decoder_forward.5} parent=0 // loop_pre_header
    _
  $region3: #{decoder_forward.5} parent=0 // loop_header
    %s15 = sphi 0, %s19
    %p16 = scmp.ge.s32.totalorder %s15, 4
    %s25 = sphi 0, %s27
    %s28 = sphi 0, %s25
    %s29 = sphi 0, %s28
    %s45 = sphi 0, %s29
    %s49 = sphi 0, %s49
    %s51 = sphi 0, %s49
    %s52 = sphi 0, %s51
    %s66 = sphi 0, %s52
    %s70 = sphi 0, %s70
    %s72 = sphi 0, %s70
    %s73 = sphi 0, %s72
    %s87 = sphi 0, %s73
    %s91 = sphi 0, %s91
    %s93 = sphi 0, %s91
    %s94 = sphi 0, %s93
    %s108 = sphi 0, %s94
    %s112 = sphi 0, %s112
    %s114 = sphi 0, %s112
    %s115 = sphi 0, %s114
    %s129 = sphi 0, %s115
    %s133 = sphi 0, %s133
    %s135 = sphi 0, %s133
    %s136 = sphi 0, %s135
    %s150 = sphi 0, %s136
    %s154 = sphi 0, %s154
    %s156 = sphi 0, %s154
    %s157 = sphi 0, %s156
    %s171 = sphi 0, %s157
    %s175 = sphi 0, %s175
    %s177 = sphi 0, %s175
    %s178 = sphi 0, %s177
    %s192 = sphi 0, %s178
    %s196 = sphi 0, %s196
    %s198 = sphi 0, %s196
    %s199 = sphi 0, %s198
    %s213 = sphi 0, %s199
    %s219 = sphi 0, %s221
    %s222 = sphi 0, %s219
    %s223 = sphi 0, %s222
    %s239 = sphi 0, %s223
  $region4: #{decoder_forward.5} parent=0 // loop_header_branch
    %18 = sbr.rel (%p16) target = $region8
  $region5: #{decoder_forward.5} parent=0 // loop_body
    %s20 = ssub.s32 %s15, 1
    %s21 = ssub.s32 %s15, 2
    %s22 = sadd.s32 %s15, 1
    %s23 = ssub.s32 %s15, %s22
    %p24 = scmp.eq.s32.totalorder %s23, 0
    %s26 = sadd.s32 %s25, 1
    %s27 = scalar_select %p24, %s25, %s26
    %p30 = pneg %p24
    %p31 = scmp.eq.s32.totalorder %s15, 1
    %p32 = por %p30, %p31
    %p33 = scmp.ne.s32.totalorder %s25, %s28
    %p34 = scmp.eq.s32.totalorder %s15, 0
    %p35 = por %p33, %p34
    %p36 = scmp.ne.s32.totalorder %s25, %s28
    %p37 = scmp.eq.s32.totalorder %s20, 1
    %p38 = por %p36, %p37
    %p39 = scmp.ne.s32.totalorder %s28, %s29
    %p40 = scmp.eq.s32.totalorder %s20, 0
    %p41 = por %p39, %p40
    %p42 = scmp.ne.s32.totalorder %s28, %s29
    %p43 = scmp.eq.s32.totalorder %s21, 1
    %p44 = por %p42, %p43
    %p46 = scmp.ne.s32.totalorder %s29, %s45
    %p47 = scmp.eq.s32.totalorder %s21, 0
    %p48 = por %p46, %p47
    %s50 = sadd.s32 %s49, 1
    %p53 = scmp.eq.s32.totalorder %s15, 1
    %p54 = scmp.ne.s32.totalorder %s49, %s51
    %p55 = scmp.eq.s32.totalorder %s15, 0
    %p56 = por %p54, %p55
    %p57 = scmp.ne.s32.totalorder %s49, %s51
    %p58 = scmp.eq.s32.totalorder %s20, 1
    %p59 = por %p57, %p58
    %p60 = scmp.ne.s32.totalorder %s51, %s52
    %p61 = scmp.eq.s32.totalorder %s20, 0
    %p62 = por %p60, %p61
    %p63 = scmp.ne.s32.totalorder %s51, %s52
    %p64 = scmp.eq.s32.totalorder %s21, 1
    %p65 = por %p63, %p64
    %p67 = scmp.ne.s32.totalorder %s52, %s66
    %p68 = scmp.eq.s32.totalorder %s21, 0
    %p69 = por %p67, %p68
    %s71 = sadd.s32 %s70, 1
    %p74 = scmp.eq.s32.totalorder %s15, 1
    %p75 = scmp.ne.s32.totalorder %s70, %s72
    %p76 = scmp.eq.s32.totalorder %s15, 0
    %p77 = por %p75, %p76
    %p78 = scmp.ne.s32.totalorder %s70, %s72
    %p79 = scmp.eq.s32.totalorder %s20, 1
    %p80 = por %p78, %p79
    %p81 = scmp.ne.s32.totalorder %s72, %s73
    %p82 = scmp.eq.s32.totalorder %s20, 0
    %p83 = por %p81, %p82
    %p84 = scmp.ne.s32.totalorder %s72, %s73
    %p85 = scmp.eq.s32.totalorder %s21, 1
    %p86 = por %p84, %p85
    %p88 = scmp.ne.s32.totalorder %s73, %s87
    %p89 = scmp.eq.s32.totalorder %s21, 0
    %p90 = por %p88, %p89
    %s92 = sadd.s32 %s91, 1
    %p95 = scmp.eq.s32.totalorder %s15, 1
    %p96 = scmp.ne.s32.totalorder %s91, %s93
    %p97 = scmp.eq.s32.totalorder %s15, 0
    %p98 = por %p96, %p97
    %p99 = scmp.ne.s32.totalorder %s91, %s93
    %p100 = scmp.eq.s32.totalorder %s20, 1
    %p101 = por %p99, %p100
    %p102 = scmp.ne.s32.totalorder %s93, %s94
    %p103 = scmp.eq.s32.totalorder %s20, 0
    %p104 = por %p102, %p103
    %p105 = scmp.ne.s32.totalorder %s93, %s94
    %p106 = scmp.eq.s32.totalorder %s21, 1
    %p107 = por %p105, %p106
    %p109 = scmp.ne.s32.totalorder %s94, %s108
    %p110 = scmp.eq.s32.totalorder %s21, 0
    %p111 = por %p109, %p110
    %s113 = sadd.s32 %s112, 1
    %p116 = scmp.eq.s32.totalorder %s15, 1
    %p117 = scmp.ne.s32.totalorder %s112, %s114
    %p118 = scmp.eq.s32.totalorder %s15, 0
    %p119 = por %p117, %p118
    %p120 = scmp.ne.s32.totalorder %s112, %s114
    %p121 = scmp.eq.s32.totalorder %s20, 1
    %p122 = por %p120, %p121
    %p123 = scmp.ne.s32.totalorder %s114, %s115
    %p124 = scmp.eq.s32.totalorder %s20, 0
    %p125 = por %p123, %p124
    %p126 = scmp.ne.s32.totalorder %s114, %s115
    %p127 = scmp.eq.s32.totalorder %s21, 1
    %p128 = por %p126, %p127
    %p130 = scmp.ne.s32.totalorder %s115, %s129
    %p131 = scmp.eq.s32.totalorder %s21, 0
    %p132 = por %p130, %p131
    %s134 = sadd.s32 %s133, 1
    %p137 = scmp.eq.s32.totalorder %s15, 1
    %p138 = scmp.ne.s32.totalorder %s133, %s135
    %p139 = scmp.eq.s32.totalorder %s15, 0
    %p140 = por %p138, %p139
    %p141 = scmp.ne.s32.totalorder %s133, %s135
    %p142 = scmp.eq.s32.totalorder %s20, 1
    %p143 = por %p141, %p142
    %p144 = scmp.ne.s32.totalorder %s135, %s136
    %p145 = scmp.eq.s32.totalorder %s20, 0
    %p146 = por %p144, %p145
    %p147 = scmp.ne.s32.totalorder %s135, %s136
    %p148 = scmp.eq.s32.totalorder %s21, 1
    %p149 = por %p147, %p148
    %p151 = scmp.ne.s32.totalorder %s136, %s150
    %p152 = scmp.eq.s32.totalorder %s21, 0
    %p153 = por %p151, %p152
    %s155 = sadd.s32 %s154, 1
    %p158 = scmp.eq.s32.totalorder %s15, 1
    %p159 = scmp.ne.s32.totalorder %s154, %s156
    %p160 = scmp.eq.s32.totalorder %s15, 0
    %p161 = por %p159, %p160
    %p162 = scmp.ne.s32.totalorder %s154, %s156
    %p163 = scmp.eq.s32.totalorder %s20, 1
    %p164 = por %p162, %p163
    %p165 = scmp.ne.s32.totalorder %s156, %s157
    %p166 = scmp.eq.s32.totalorder %s20, 0
    %p167 = por %p165, %p166
    %p168 = scmp.ne.s32.totalorder %s156, %s157
    %p169 = scmp.eq.s32.totalorder %s21, 1
    %p170 = por %p168, %p169
    %p172 = scmp.ne.s32.totalorder %s157, %s171
    %p173 = scmp.eq.s32.totalorder %s21, 0
    %p174 = por %p172, %p173
    %s176 = sadd.s32 %s175, 1
    %p179 = scmp.eq.s32.totalorder %s15, 1
    %p180 = scmp.ne.s32.totalorder %s175, %s177
    %p181 = scmp.eq.s32.totalorder %s15, 0
    %p182 = por %p180, %p181
    %p183 = scmp.ne.s32.totalorder %s175, %s177
    %p184 = scmp.eq.s32.totalorder %s20, 1
    %p185 = por %p183, %p184
    %p186 = scmp.ne.s32.totalorder %s177, %s178
    %p187 = scmp.eq.s32.totalorder %s20, 0
    %p188 = por %p186, %p187
    %p189 = scmp.ne.s32.totalorder %s177, %s178
    %p190 = scmp.eq.s32.totalorder %s21, 1
    %p191 = por %p189, %p190
    %p193 = scmp.ne.s32.totalorder %s178, %s192
    %p194 = scmp.eq.s32.totalorder %s21, 0
    %p195 = por %p193, %p194
    %s197 = sadd.s32 %s196, 1
    %p200 = scmp.eq.s32.totalorder %s15, 1
    %p201 = scmp.ne.s32.totalorder %s196, %s198
    %p202 = scmp.eq.s32.totalorder %s15, 0
    %p203 = por %p201, %p202
    %p204 = scmp.ne.s32.totalorder %s196, %s198
    %p205 = scmp.eq.s32.totalorder %s20, 1
    %p206 = por %p204, %p205
    %p207 = scmp.ne.s32.totalorder %s198, %s199
    %p208 = scmp.eq.s32.totalorder %s20, 0
    %p209 = por %p207, %p208
    %p210 = scmp.ne.s32.totalorder %s198, %s199
    %p211 = scmp.eq.s32.totalorder %s21, 1
    %p212 = por %p210, %p211
    %p214 = scmp.ne.s32.totalorder %s199, %s213
    %p215 = scmp.eq.s32.totalorder %s21, 0
    %p216 = por %p214, %p215
    %s217 = ssub.s32 %s15, %s22
    %p218 = scmp.eq.s32.totalorder %s217, 0
    %s220 = sadd.s32 %s219, 1
    %s221 = scalar_select %p218, %s219, %s220
    %p224 = pneg %p218
    %p225 = scmp.eq.s32.totalorder %s15, 1
    %p226 = por %p224, %p225
    %p227 = scmp.ne.s32.totalorder %s219, %s222
    %p228 = scmp.eq.s32.totalorder %s15, 0
    %p229 = por %p227, %p228
    %p230 = scmp.ne.s32.totalorder %s219, %s222
    %p231 = scmp.eq.s32.totalorder %s20, 1
    %p232 = por %p230, %p231
    %p233 = scmp.ne.s32.totalorder %s222, %s223
    %p234 = scmp.eq.s32.totalorder %s20, 0
    %p235 = por %p233, %p234
    %p236 = scmp.ne.s32.totalorder %s222, %s223
    %p237 = scmp.eq.s32.totalorder %s21, 1
    %p238 = por %p236, %p237
    %p240 = scmp.ne.s32.totalorder %s223, %s239
    %p241 = scmp.eq.s32.totalorder %s21, 0
    %p242 = por %p240, %p241
    %p243 = scmp.le.s32.totalorder 1, %s15
    %p244 = scmp.lt.s32.totalorder %s15, 3
    %p245 = pnand %p243, %p244
    %p246 = pneg %p245
    // Predicated region
    $region9: #{decoder_forward.5} parent=5 // pred_check
      _
    $region10: #{decoder_forward.5} parent=5 // pred_check_branch
      %248 = sbr.rel (%p245) target = $region12
    $region11: #{decoder_forward.5} parent=5 // pred_region
      %s249 = ssub.s32 %s15, 1
      // Predicated region
      $region13: #{decoder_forward.5} parent=11 // pred_check
        %p250 = pneg %p62
      $region14: #{decoder_forward.5} parent=11 // pred_check_branch
        %252 = sbr.rel (%p250) target = $region16
      $region15: #{decoder_forward.5} parent=11 // pred_region
        _
      $region16: #{decoder_forward.5} parent=11 // pred_fallthru
        _
      // Predicated region
      $region17: #{decoder_forward.5} parent=11 // pred_check
        %p253 = pneg %p83
      $region18: #{decoder_forward.5} parent=11 // pred_check_branch
        %255 = sbr.rel (%p253) target = $region20
      $region19: #{decoder_forward.5} parent=11 // pred_region
        _
      $region20: #{decoder_forward.5} parent=11 // pred_fallthru
        _
      // Predicated region
      $region21: #{decoder_forward.5} parent=11 // pred_check
        %p256 = pneg %p104
      $region22: #{decoder_forward.5} parent=11 // pred_check_branch
        %258 = sbr.rel (%p256) target = $region24
      $region23: #{decoder_forward.5} parent=11 // pred_region
        _
      $region24: #{decoder_forward.5} parent=11 // pred_fallthru
        _
      // Predicated region
      $region25: #{decoder_forward.5} parent=11 // pred_check
        %p259 = pneg %p125
      $region26: #{decoder_forward.5} parent=11 // pred_check_branch
        %261 = sbr.rel (%p259) target = $region28
      $region27: #{decoder_forward.5} parent=11 // pred_region
        _
      $region28: #{decoder_forward.5} parent=11 // pred_fallthru
        _
      // Predicated region
      $region29: #{decoder_forward.5} parent=11 // pred_check
        %p262 = pneg %p146
      $region30: #{decoder_forward.5} parent=11 // pred_check_branch
        %264 = sbr.rel (%p262) target = $region32
      $region31: #{decoder_forward.5} parent=11 // pred_region
        _
      $region32: #{decoder_forward.5} parent=11 // pred_fallthru
        _
      // Predicated region
      $region33: #{decoder_forward.5} parent=11 // pred_check
        %p265 = pneg %p167
      $region34: #{decoder_forward.5} parent=11 // pred_check_branch
        %267 = sbr.rel (%p265) target = $region36
      $region35: #{decoder_forward.5} parent=11 // pred_region
        _
      $region36: #{decoder_forward.5} parent=11 // pred_fallthru
        _
      // Predicated region
      $region37: #{decoder_forward.5} parent=11 // pred_check
        %p268 = pneg %p188
      $region38: #{decoder_forward.5} parent=11 // pred_check_branch
        %270 = sbr.rel (%p268) target = $region40
      $region39: #{decoder_forward.5} parent=11 // pred_region
        _
      $region40: #{decoder_forward.5} parent=11 // pred_fallthru
        _
      // Predicated region
      $region41: #{decoder_forward.5} parent=11 // pred_check
        %p271 = pneg %p209
      $region42: #{decoder_forward.5} parent=11 // pred_check_branch
        %273 = sbr.rel (%p271) target = $region44
      $region43: #{decoder_forward.5} parent=11 // pred_region
        _
      $region44: #{decoder_forward.5} parent=11 // pred_fallthru
        _
    $region12: #{decoder_forward.5} parent=5 // pred_fallthru
      _
    %p274 = scmp.lt.s32.totalorder %s15, 2
    // Predicated region
    $region45: #{decoder_forward.5} parent=5 // pred_check
      %p275 = pneg %p274
    $region46: #{decoder_forward.5} parent=5 // pred_check_branch
      %277 = sbr.rel (%p275) target = $region48
    $region47: #{decoder_forward.5} parent=5 // pred_region
      // Predicated region
      $region49: #{decoder_forward.5} parent=47 // pred_check
        %p278 = pneg %p35
      $region50: #{decoder_forward.5} parent=47 // pred_check_branch
        %280 = sbr.rel (%p278) target = $region52
      $region51: #{decoder_forward.5} parent=47 // pred_region
        %s281 = smul.u32 64, %s15
        %p282 = scmp.lt.s32.totalorder %s281, 127
        %s283 = scalar_select %p282, %s281, 127
        %s284 = smul.addr %s283, 8
        %s285 = scalar_lea.vmem %s0, %s284
        %s286 = smul.u32 64, %s15
      $region52: #{decoder_forward.5} parent=47 // pred_fallthru
        _
    $region48: #{decoder_forward.5} parent=5 // pred_fallthru
      _
    %p287 = scmp.le.s32.totalorder 1, %s15
    %p288 = scmp.lt.s32.totalorder %s15, 3
    %p289 = pnand %p287, %p288
    %p290 = pneg %p289
    // Predicated region
    $region53: #{decoder_forward.5} parent=5 // pred_check
      _
    $region54: #{decoder_forward.5} parent=5 // pred_check_branch
      %292 = sbr.rel (%p289) target = $region56
    $region55: #{decoder_forward.5} parent=5 // pred_region
      %s293 = ssub.s32 %s15, 1
      %s294 = smul.u32 64, %s20
      %p295 = scmp.lt.s32.totalorder %s294, 127
      %s296 = scalar_select %p295, %s294, 127
      %s297 = smul.addr %s296, 8
      %s298 = scalar_lea.vmem %s0, %s297
      %p299 = pneg %p41
      %p300 = pneg %p38
      %p301 = pneg %p62
      %p302 = pneg %p59
      %p303 = pneg %p83
      %p304 = pneg %p80
      %p305 = pneg %p104
      %p306 = pneg %p101
      %p307 = pneg %p125
      %p308 = pneg %p122
      %p309 = pneg %p146
      %p310 = pneg %p143
      %p311 = pneg %p167
      %p312 = pneg %p164
      %p313 = pneg %p188
      %p314 = pneg %p185
      %p315 = pneg %p209
      %p316 = pneg %p206
      %p317 = pneg %p235
      %p318 = pneg %p232
      %s319 = smul.u32 64, %s20
      %p320 = scmp.lt.s32.totalorder %s319, 127
      %s321 = scalar_select %p320, %s319, 127
      %s322 = smul.addr %s321, 8
      %s323 = scalar_lea.vmem %s9, %s322
      %s324 = smul.u32 64, %s20
      %p325 = scmp.lt.s32.totalorder %s324, 127
      %s326 = scalar_select %p325, %s324, 127
      %s327 = smul.addr %s326, 8
      %s328 = scalar_lea.vmem %s0, %s327
      %s329 = smul.u32 64, %s20
      %s330 = smul.u32 64, %s20
      %p331 = scmp.lt.s32.totalorder %s330, 127
      %s332 = scalar_select %p331, %s330, 127
      %s333 = smul.addr %s332, 8
      %s334 = scalar_lea.vmem %s9, %s333
      %s335 = smul.u32 64, %s20
      %v336 = vld [vmem:[%s328] sm:$0xff]
      %v337 = vld [vmem:[%s328 + $0x8] sm:$0xff]
      %v338 = vld [vmem:[%s328 + $0x10] sm:$0xff]
      %v339 = vld [vmem:[%s328 + $0x18] sm:$0xff]
      %v340 = vld [vmem:[%s328 + $0x20] sm:$0xff]
      %v341 = vld [vmem:[%s328 + $0x28] sm:$0xff]
      %v342 = vld [vmem:[%s328 + $0x30] sm:$0xff]
      %v343 = vld [vmem:[%s328 + $0x38] sm:$0xff]
      %v344 = vld [vmem:[%s328 + $0x40] sm:$0xff]
      %v345 = vld [vmem:[%s328 + $0x48] sm:$0xff]
      %v346 = vld [vmem:[%s328 + $0x50] sm:$0xff]
      %v347 = vld [vmem:[%s328 + $0x58] sm:$0xff]
      %v348 = vld [vmem:[%s328 + $0x60] sm:$0xff]
      %v349 = vld [vmem:[%s328 + $0x68] sm:$0xff]
      %v350 = vld [vmem:[%s328 + $0x70] sm:$0xff]
      %v351 = vld [vmem:[%s328 + $0x78] sm:$0xff]
      %v352 = vld [vmem:[%s328 + $0x80] sm:$0xff]
      %v353 = vld [vmem:[%s328 + $0x88] sm:$0xff]
      %v354 = vld [vmem:[%s328 + $0x90] sm:$0xff]
      %v355 = vld [vmem:[%s328 + $0x98] sm:$0xff]
      %v356 = vld [vmem:[%s328 + $0xa0] sm:$0xff]
      %v357 = vld [vmem:[%s328 + $0xa8] sm:$0xff]
      %v358 = vld [vmem:[%s328 + $0xb0] sm:$0xff]
      %v359 = vld [vmem:[%s328 + $0xb8] sm:$0xff]
      %v360 = vld [vmem:[%s328 + $0xc0] sm:$0xff]
      %v361 = vld [vmem:[%s328 + $0xc8] sm:$0xff]
      %v362 = vld [vmem:[%s328 + $0xd0] sm:$0xff]
      %v363 = vld [vmem:[%s328 + $0xd8] sm:$0xff]
      %v364 = vld [vmem:[%s328 + $0xe0] sm:$0xff]
      %v365 = vld [vmem:[%s328 + $0xe8] sm:$0xff]
      %v366 = vld [vmem:[%s328 + $0xf0] sm:$0xff]
      %v367 = vld [vmem:[%s328 + $0xf8] sm:$0xff]
      %v368 = vld [vmem:[%s328 + $0x100] sm:$0xff]
      %v369 = vld [vmem:[%s328 + $0x108] sm:$0xff]
      %v370 = vld [vmem:[%s328 + $0x110] sm:$0xff]
      %v371 = vld [vmem:[%s328 + $0x118] sm:$0xff]
      %v372 = vld [vmem:[%s328 + $0x120] sm:$0xff]
      %v373 = vld [vmem:[%s328 + $0x128] sm:$0xff]
      %v374 = vld [vmem:[%s328 + $0x130] sm:$0xff]
      %v375 = vld [vmem:[%s328 + $0x138] sm:$0xff]
      %v376 = vld [vmem:[%s328 + $0x140] sm:$0xff]
      %v377 = vld [vmem:[%s328 + $0x148] sm:$0xff]
      %v378 = vld [vmem:[%s328 + $0x150] sm:$0xff]
      %v379 = vld [vmem:[%s328 + $0x158] sm:$0xff]
      %v380 = vld [vmem:[%s328 + $0x160] sm:$0xff]
      %v381 = vld [vmem:[%s328 + $0x168] sm:$0xff]
      %v382 = vld [vmem:[%s328 + $0x170] sm:$0xff]
      %v383 = vld [vmem:[%s328 + $0x178] sm:$0xff]
      %v384 = vld [vmem:[%s328 + $0x180] sm:$0xff]
      %v385 = vld [vmem:[%s328 + $0x188] sm:$0xff]
      %v386 = vld [vmem:[%s328 + $0x190] sm:$0xff]
      %v387 = vld [vmem:[%s328 + $0x198] sm:$0xff]
      %v388 = vld [vmem:[%s328 + $0x1a0] sm:$0xff]
      %v389 = vld [vmem:[%s328 + $0x1a8] sm:$0xff]
      %v390 = vld [vmem:[%s328 + $0x1b0] sm:$0xff]
      %v391 = vld [vmem:[%s328 + $0x1b8] sm:$0xff]
      %v392 = vld [vmem:[%s328 + $0x1c0] sm:$0xff]
      %v393 = vld [vmem:[%s328 + $0x1c8] sm:$0xff]
      %v394 = vld [vmem:[%s328 + $0x1d0] sm:$0xff]
      %v395 = vld [vmem:[%s328 + $0x1d8] sm:$0xff]
      %v396 = vld [vmem:[%s328 + $0x1e0] sm:$0xff]
      %v397 = vld [vmem:[%s328 + $0x1e8] sm:$0xff]
      %v398 = vld [vmem:[%s328 + $0x1f0] sm:$0xff]
      %v399 = vld [vmem:[%s328 + $0x1f8] sm:$0xff]
      %v400 = vld [vmem:[%s1] sm:$0xff]
      %v401 = vld [vmem:[%s2] sm:$0x1]
      %v403 = vlaneseq
      %v404 = vshrl.u32 %v403, 7
      %v405 = vsub.s32 0, %v404
      %v406 = vrot.slane %v401, %v405
      %vm408 = vcmask 64512
      %v410 = vsel %vm408, %v336, 0
      %v413 = vsel %vm408, %v337, 0
      %v416 = vsel %vm408, %v338, 0
      %v419 = vsel %vm408, %v339, 0
      %v422 = vsel %vm408, %v340, 0
      %v425 = vsel %vm408, %v341, 0
      %v428 = vsel %vm408, %v342, 0
      %v431 = vsel %vm408, %v343, 0
      %v434 = vsel %vm408, %v344, 0
      %v437 = vsel %vm408, %v345, 0
      %v440 = vsel %vm408, %v346, 0
      %v443 = vsel %vm408, %v347, 0
      %v446 = vsel %vm408, %v348, 0
      %v449 = vsel %vm408, %v349, 0
      %v452 = vsel %vm408, %v350, 0
      %v455 = vsel %vm408, %v351, 0
      %v458 = vsel %vm408, %v352, 0
      %v461 = vsel %vm408, %v353, 0
      %v464 = vsel %vm408, %v354, 0
      %v467 = vsel %vm408, %v355, 0
      %v470 = vsel %vm408, %v356, 0
      %v473 = vsel %vm408, %v357, 0
      %v476 = vsel %vm408, %v358, 0
      %v479 = vsel %vm408, %v359, 0
      %v482 = vsel %vm408, %v360, 0
      %v485 = vsel %vm408, %v361, 0
      %v488 = vsel %vm408, %v362, 0
      %v491 = vsel %vm408, %v363, 0
      %v494 = vsel %vm408, %v364, 0
      %v497 = vsel %vm408, %v365, 0
      %v500 = vsel %vm408, %v366, 0
      %v503 = vsel %vm408, %v367, 0
      %v506 = vsel %vm408, %v368, 0
      %v509 = vsel %vm408, %v369, 0
      %v512 = vsel %vm408, %v370, 0
      %v515 = vsel %vm408, %v371, 0
      %v518 = vsel %vm408, %v372, 0
      %v521 = vsel %vm408, %v373, 0
      %v524 = vsel %vm408, %v374, 0
      %v527 = vsel %vm408, %v375, 0
      %v530 = vsel %vm408, %v376, 0
      %v533 = vsel %vm408, %v377, 0
      %v536 = vsel %vm408, %v378, 0
      %v539 = vsel %vm408, %v379, 0
      %v542 = vsel %vm408, %v380, 0
      %v545 = vsel %vm408, %v381, 0
      %v548 = vsel %vm408, %v382, 0
      %v551 = vsel %vm408, %v383, 0
      %v554 = vsel %vm408, %v384, 0
      %v557 = vsel %vm408, %v385, 0
      %v560 = vsel %vm408, %v386, 0
      %v563 = vsel %vm408, %v387, 0
      %v566 = vsel %vm408, %v388, 0
      %v569 = vsel %vm408, %v389, 0
      %v572 = vsel %vm408, %v390, 0
      %v575 = vsel %vm408, %v391, 0
      %v578 = vsel %vm408, %v392, 0
      %v581 = vsel %vm408, %v393, 0
      %v584 = vsel %vm408, %v394, 0
      %v587 = vsel %vm408, %v395, 0
      %v590 = vsel %vm408, %v396, 0
      %v593 = vsel %vm408, %v397, 0
      %v596 = vsel %vm408, %v398, 0
      %v599 = vsel %vm408, %v399, 0
      %601 = vmatprep.subr.mxu0 0.0
      %602 = vmatpush1.msra.mxu0 %v400
      %603 = vmatprep.subr.mxu0 0.0
      %604 = vmatpush1.msra.mxu0 0.0
      %605 = vmatprep.subr.mxu0 0.0
      %606 = vmatpush1.msra.mxu0 0.0
      %607 = vmatprep.subr.mxu0 0.0
      %608 = vmatpush1.msra.mxu0 0.0
      %609 = vmatprep.subr.mxu0 0.0
      %610 = vmatpush1.msra.mxu0 0.0
      %611 = vmatprep.subr.mxu0 0.0
      %612 = vmatpush1.msra.mxu0 0.0
      %613 = vmatprep.subr.mxu0 0.0
      %614 = vmatpush1.msra.mxu0 0.0
      %615 = vmatprep.subr.mxu0 0.0
      %616 = vmatpush1.msra.mxu0 0.0
      %617 = vmatprep.subr.mxu0 0.0
      %618 = vmatpush1.msra.mxu0 0.0
      %619 = vmatprep.subr.mxu0 0.0
      %620 = vmatpush1.msra.mxu0 0.0
      %621 = vmatprep.subr.mxu0 0.0
      %622 = vmatpush1.msra.mxu0 0.0
      %623 = vmatprep.subr.mxu0 0.0
      %624 = vmatpush1.msra.mxu0 0.0
      %625 = vmatprep.subr.mxu0 0.0
      %626 = vmatpush1.msra.mxu0 0.0
      %627 = vmatprep.subr.mxu0 0.0
      %628 = vmatpush1.msra.mxu0 0.0
      %629 = vmatprep.subr.mxu0 0.0
      %630 = vmatpush1.msra.mxu0 0.0
      %631 = vmatprep.subr.mxu0 0.0
      %632 = vmatpush1.msra.mxu0 0.0
      %633 = vmatprep.subr.mxu0 0.0
      %634 = vmatpush1.msra.mxu0 0.0
      %635 = vmatprep.subr.mxu0 0.0
      %636 = vmatpush1.msra.mxu0 0.0
      %637 = vmatprep.subr.mxu0 0.0
      %638 = vmatpush1.msra.mxu0 0.0
      %639 = vmatprep.subr.mxu0 0.0
      %640 = vmatpush1.msra.mxu0 0.0
      %641 = vmatprep.subr.mxu0 0.0
      %642 = vmatpush1.msra.mxu0 0.0
      %643 = vmatprep.subr.mxu0 0.0
      %644 = vmatpush1.msra.mxu0 0.0
      %645 = vmatprep.subr.mxu0 0.0
      %646 = vmatpush1.msra.mxu0 0.0
      %647 = vmatprep.subr.mxu0 0.0
      %648 = vmatpush1.msra.mxu0 0.0
      %649 = vmatprep.subr.mxu0 0.0
      %650 = vmatpush1.msra.mxu0 0.0
      %651 = vmatprep.subr.mxu0 0.0
      %652 = vmatpush1.msra.mxu0 0.0
      %653 = vmatprep.subr.mxu0 0.0
      %654 = vmatpush1.msra.mxu0 0.0
      %655 = vmatprep.subr.mxu0 0.0
      %656 = vmatpush1.msra.mxu0 0.0
      %657 = vmatprep.subr.mxu0 0.0
      %658 = vmatpush1.msra.mxu0 0.0
      %659 = vmatprep.subr.mxu0 0.0
      %660 = vmatpush1.msra.mxu0 0.0
      %661 = vmatprep.subr.mxu0 0.0
      %662 = vmatpush1.msra.mxu0 0.0
      %663 = vmatprep.subr.mxu0 0.0
      %664 = vmatpush1.msra.mxu0 0.0
      %665 = vmatprep.mubr.f32.mxu0 0.0
      %666 = vmatmul.mubr.f32.gmra.mrb[0].mxu0 %v410
      %v667 = vpop.f32.mrb[0].mxu0
      %v668 = vadd.f32 %v406, %v667
      %v669 = vpop.f32.mrb[0].mxu0
      %670 = vmatprep.mubr.f32.mxu0 0.0
      %671 = vmatmul.mubr.f32.gmra.mrb[0].mxu0 %v413
      %v672 = vpop.f32.mrb[0].mxu0
      %v673 = vadd.f32 %v406, %v672
      %v674 = vpop.f32.mrb[0].mxu0
      %675 = vmatprep.mubr.f32.mxu0 0.0
      %676 = vmatmul.mubr.f32.gmra.mrb[0].mxu0 %v416
      %v677 = vpop.f32.mrb[0].mxu0
      %v678 = vadd.f32 %v406, %v677
      %v679 = vpop.f32.mrb[0].mxu0
      %680 = vmatprep.mubr.f32.mxu0 0.0
      %681 = vmatmul.mubr.f32.gmra.mrb[0].mxu0 %v419
      %v682 = vpop.f32.mrb[0].mxu0
      %v683 = vadd.f32 %v406, %v682
      %v684 = vpop.f32.mrb[0].mxu0
      %685 = vmatprep.mubr.f32.mxu0 0.0
      %686 = vmatmul.mubr.f32.gmra.mrb[0].mxu0 %v422
      %v687 = vpop.f32.mrb[0].mxu0
      %v688 = vadd.f32 %v406, %v687
      %v689 = vpop.f32.mrb[0].mxu0
      %690 = vmatprep.mubr.f32.mxu0 0.0
      %691 = vmatmul.mubr.f32.gmra.mrb[0].mxu0 %v425
      %v692 = vpop.f32.mrb[0].mxu0
      %v693 = vadd.f32 %v406, %v692
      %v694 = vpop.f32.mrb[0].mxu0
      %695 = vmatprep.mubr.f32.mxu0 0.0
      %696 = vmatmul.mubr.f32.gmra.mrb[0].mxu0 %v428
      %v697 = vpop.f32.mrb[0].mxu0
      %v698 = vadd.f32 %v406, %v697
      %v699 = vpop.f32.mrb[0].mxu0
      %700 = vmatprep.mubr.f32.mxu0 0.0
      %701 = vmatmul.mubr.f32.gmra.mrb[0].mxu0 %v431
      %v702 = vpop.f32.mrb[0].mxu0
      %v703 = vadd.f32 %v406, %v702
      %v704 = vpop.f32.mrb[0].mxu0
      %705 = vmatprep.mubr.f32.mxu0 0.0
      %706 = vmatmul.mubr.f32.gmra.mrb[0].mxu0 %v434
      %v707 = vpop.f32.mrb[0].mxu0
      %v708 = vadd.f32 %v406, %v707
      %v709 = vpop.f32.mrb[0].mxu0
      %710 = vmatprep.mubr.f32.mxu0 0.0
      %711 = vmatmul.mubr.f32.gmra.mrb[0].mxu0 %v437
      %v712 = vpop.f32.mrb[0].mxu0
      %v713 = vadd.f32 %v406, %v712
      %v714 = vpop.f32.mrb[0].mxu0
      %715 = vmatprep.mubr.f32.mxu0 0.0
      %716 = vmatmul.mubr.f32.gmra.mrb[0].mxu0 %v440
      %v717 = vpop.f32.mrb[0].mxu0
      %v718 = vadd.f32 %v406, %v717
      %v719 = vpop.f32.mrb[0].mxu0
      %720 = vmatprep.mubr.f32.mxu0 0.0
      %721 = vmatmul.mubr.f32.gmra.mrb[0].mxu0 %v443
      %v722 = vpop.f32.mrb[0].mxu0
      %v723 = vadd.f32 %v406, %v722
      %v724 = vpop.f32.mrb[0].mxu0
      %725 = vmatprep.mubr.f32.mxu0 0.0
      %726 = vmatmul.mubr.f32.gmra.mrb[0].mxu0 %v446
      %v727 = vpop.f32.mrb[0].mxu0
      %v728 = vadd.f32 %v406, %v727
      %v729 = vpop.f32.mrb[0].mxu0
      %730 = vmatprep.mubr.f32.mxu0 0.0
      %731 = vmatmul.mubr.f32.gmra.mrb[0].mxu0 %v449
      %v732 = vpop.f32.mrb[0].mxu0
      %v733 = vadd.f32 %v406, %v732
      %v734 = vpop.f32.mrb[0].mxu0
      %735 = vmatprep.mubr.f32.mxu0 0.0
      %736 = vmatmul.mubr.f32.gmra.mrb[0].mxu0 %v452
      %v737 = vpop.f32.mrb[0].mxu0
      %v738 = vadd.f32 %v406, %v737
      %v739 = vpop.f32.mrb[0].mxu0
      %740 = vmatprep.mubr.f32.mxu0 0.0
      %741 = vmatmul.mubr.f32.gmra.mrb[0].mxu0 %v455
      %v742 = vpop.f32.mrb[0].mxu0
      %v743 = vadd.f32 %v406, %v742
      %v744 = vpop.f32.mrb[0].mxu0
      %745 = vmatprep.mubr.f32.mxu0 0.0
      %746 = vmatmul.mubr.f32.gmra.mrb[0].mxu0 %v458
      %v747 = vpop.f32.mrb[0].mxu0
      %v748 = vadd.f32 %v406, %v747
      %v749 = vpop.f32.mrb[0].mxu0
      %750 = vmatprep.mubr.f32.mxu0 0.0
      %751 = vmatmul.mubr.f32.gmra.mrb[0].mxu0 %v461
      %v752 = vpop.f32.mrb[0].mxu0
      %v753 = vadd.f32 %v406, %v752
      %v754 = vpop.f32.mrb[0].mxu0
      %755 = vmatprep.mubr.f32.mxu0 0.0
      %756 = vmatmul.mubr.f32.gmra.mrb[0].mxu0 %v464
      %v757 = vpop.f32.mrb[0].mxu0
      %v758 = vadd.f32 %v406, %v757
      %v759 = vpop.f32.mrb[0].mxu0
      %760 = vmatprep.mubr.f32.mxu0 0.0
      %761 = vmatmul.mubr.f32.gmra.mrb[0].mxu0 %v467
      %v762 = vpop.f32.mrb[0].mxu0
      %v763 = vadd.f32 %v406, %v762
      %v764 = vpop.f32.mrb[0].mxu0
      %765 = vmatprep.mubr.f32.mxu0 0.0
      %766 = vmatmul.mubr.f32.gmra.mrb[0].mxu0 %v470
      %v767 = vpop.f32.mrb[0].mxu0
      %v768 = vadd.f32 %v406, %v767
      %v769 = vpop.f32.mrb[0].mxu0
      %770 = vmatprep.mubr.f32.mxu0 0.0
      %771 = vmatmul.mubr.f32.gmra.mrb[0].mxu0 %v473
      %v772 = vpop.f32.mrb[0].mxu0
      %v773 = vadd.f32 %v406, %v772
      %v774 = vpop.f32.mrb[0].mxu0
      %775 = vmatprep.mubr.f32.mxu0 0.0
      %776 = vmatmul.mubr.f32.gmra.mrb[0].mxu0 %v476
      %v777 = vpop.f32.mrb[0].mxu0
      %v778 = vadd.f32 %v406, %v777
      %v779 = vpop.f32.mrb[0].mxu0
      %780 = vmatprep.mubr.f32.mxu0 0.0
      %781 = vmatmul.mubr.f32.gmra.mrb[0].mxu0 %v479
      %v782 = vpop.f32.mrb[0].mxu0
      %v783 = vadd.f32 %v406, %v782
      %v784 = vpop.f32.mrb[0].mxu0
      %785 = vmatprep.mubr.f32.mxu0 0.0
      %786 = vmatmul.mubr.f32.gmra.mrb[0].mxu0 %v482
      %v787 = vpop.f32.mrb[0].mxu0
      %v788 = vadd.f32 %v406, %v787
      %v789 = vpop.f32.mrb[0].mxu0
      %790 = vmatprep.mubr.f32.mxu0 0.0
      %791 = vmatmul.mubr.f32.gmra.mrb[0].mxu0 %v485
      %v792 = vpop.f32.mrb[0].mxu0
      %v793 = vadd.f32 %v406, %v792
      %v794 = vpop.f32.mrb[0].mxu0
      %795 = vmatprep.mubr.f32.mxu0 0.0
      %796 = vmatmul.mubr.f32.gmra.mrb[0].mxu0 %v488
      %v797 = vpop.f32.mrb[0].mxu0
      %v798 = vadd.f32 %v406, %v797
      %v799 = vpop.f32.mrb[0].mxu0
      %800 = vmatprep.mubr.f32.mxu0 0.0
      %801 = vmatmul.mubr.f32.gmra.mrb[0].mxu0 %v491
      %v802 = vpop.f32.mrb[0].mxu0
      %v803 = vadd.f32 %v406, %v802
      %v804 = vpop.f32.mrb[0].mxu0
      %805 = vmatprep.mubr.f32.mxu0 0.0
      %806 = vmatmul.mubr.f32.gmra.mrb[0].mxu0 %v494
      %v807 = vpop.f32.mrb[0].mxu0
      %v808 = vadd.f32 %v406, %v807
      %v809 = vpop.f32.mrb[0].mxu0
      %810 = vmatprep.mubr.f32.mxu0 0.0
      %811 = vmatmul.mubr.f32.gmra.mrb[0].mxu0 %v497
      %v812 = vpop.f32.mrb[0].mxu0
      %v813 = vadd.f32 %v406, %v812
      %v814 = vpop.f32.mrb[0].mxu0
      %815 = vmatprep.mubr.f32.mxu0 0.0
      %816 = vmatmul.mubr.f32.gmra.mrb[0].mxu0 %v500
      %v817 = vpop.f32.mrb[0].mxu0
      %v818 = vadd.f32 %v406, %v817
      %v819 = vpop.f32.mrb[0].mxu0
      %820 = vmatprep.mubr.f32.mxu0 0.0
      %821 = vmatmul.mubr.f32.gmra.mrb[0].mxu0 %v503
      %v822 = vpop.f32.mrb[0].mxu0
      %v823 = vadd.f32 %v406, %v822
      %v824 = vpop.f32.mrb[0].mxu0
      %825 = vmatprep.mubr.f32.mxu0 0.0
      %826 = vmatmul.mubr.f32.gmra.mrb[0].mxu0 %v506
      %v827 = vpop.f32.mrb[0].mxu0
      %v828 = vadd.f32 %v406, %v827
      %v829 = vpop.f32.mrb[0].mxu0
      %830 = vmatprep.mubr.f32.mxu0 0.0
      %831 = vmatmul.mubr.f32.gmra.mrb[0].mxu0 %v509
      %v832 = vpop.f32.mrb[0].mxu0
      %v833 = vadd.f32 %v406, %v832
      %v834 = vpop.f32.mrb[0].mxu0
      %835 = vmatprep.mubr.f32.mxu0 0.0
      %836 = vmatmul.mubr.f32.gmra.mrb[0].mxu0 %v512
      %v837 = vpop.f32.mrb[0].mxu0
      %v838 = vadd.f32 %v406, %v837
      %v839 = vpop.f32.mrb[0].mxu0
      %840 = vmatprep.mubr.f32.mxu0 0.0
      %841 = vmatmul.mubr.f32.gmra.mrb[0].mxu0 %v515
      %v842 = vpop.f32.mrb[0].mxu0
      %v843 = vadd.f32 %v406, %v842
      %v844 = vpop.f32.mrb[0].mxu0
      %845 = vmatprep.mubr.f32.mxu0 0.0
      %846 = vmatmul.mubr.f32.gmra.mrb[0].mxu0 %v518
      %v847 = vpop.f32.mrb[0].mxu0
      %v848 = vadd.f32 %v406, %v847
      %v849 = vpop.f32.mrb[0].mxu0
      %850 = vmatprep.mubr.f32.mxu0 0.0
      %851 = vmatmul.mubr.f32.gmra.mrb[0].mxu0 %v521
      %v852 = vpop.f32.mrb[0].mxu0
      %v853 = vadd.f32 %v406, %v852
      %v854 = vpop.f32.mrb[0].mxu0
      %855 = vmatprep.mubr.f32.mxu0 0.0
      %856 = vmatmul.mubr.f32.gmra.mrb[0].mxu0 %v524
      %v857 = vpop.f32.mrb[0].mxu0
      %v858 = vadd.f32 %v406, %v857
      %v859 = vpop.f32.mrb[0].mxu0
      %860 = vmatprep.mubr.f32.mxu0 0.0
      %861 = vmatmul.mubr.f32.gmra.mrb[0].mxu0 %v527
      %v862 = vpop.f32.mrb[0].mxu0
      %v863 = vadd.f32 %v406, %v862
      %v864 = vpop.f32.mrb[0].mxu0
      %865 = vmatprep.mubr.f32.mxu0 0.0
      %866 = vmatmul.mubr.f32.gmra.mrb[0].mxu0 %v530
      %v867 = vpop.f32.mrb[0].mxu0
      %v868 = vadd.f32 %v406, %v867
      %v869 = vpop.f32.mrb[0].mxu0
      %870 = vmatprep.mubr.f32.mxu0 0.0
      %871 = vmatmul.mubr.f32.gmra.mrb[0].mxu0 %v533
      %v872 = vpop.f32.mrb[0].mxu0
      %v873 = vadd.f32 %v406, %v872
      %v874 = vpop.f32.mrb[0].mxu0
      %875 = vmatprep.mubr.f32.mxu0 0.0
      %876 = vmatmul.mubr.f32.gmra.mrb[0].mxu0 %v536
      %v877 = vpop.f32.mrb[0].mxu0
      %v878 = vadd.f32 %v406, %v877
      %v879 = vpop.f32.mrb[0].mxu0
      %880 = vmatprep.mubr.f32.mxu0 0.0
      %881 = vmatmul.mubr.f32.gmra.mrb[0].mxu0 %v539
      %v882 = vpop.f32.mrb[0].mxu0
      %v883 = vadd.f32 %v406, %v882
      %v884 = vpop.f32.mrb[0].mxu0
      %885 = vmatprep.mubr.f32.mxu0 0.0
      %886 = vmatmul.mubr.f32.gmra.mrb[0].mxu0 %v542
      %v887 = vpop.f32.mrb[0].mxu0
      %v888 = vadd.f32 %v406, %v887
      %v889 = vpop.f32.mrb[0].mxu0
      %890 = vmatprep.mubr.f32.mxu0 0.0
      %891 = vmatmul.mubr.f32.gmra.mrb[0].mxu0 %v545
      %v892 = vpop.f32.mrb[0].mxu0
      %v893 = vadd.f32 %v406, %v892
      %v894 = vpop.f32.mrb[0].mxu0
      %895 = vmatprep.mubr.f32.mxu0 0.0
      %896 = vmatmul.mubr.f32.gmra.mrb[0].mxu0 %v548
      %v897 = vpop.f32.mrb[0].mxu0
      %v898 = vadd.f32 %v406, %v897
      %v899 = vpop.f32.mrb[0].mxu0
      %900 = vmatprep.mubr.f32.mxu0 0.0
      %901 = vmatmul.mubr.f32.gmra.mrb[0].mxu0 %v551
      %v902 = vpop.f32.mrb[0].mxu0
      %v903 = vadd.f32 %v406, %v902
      %v904 = vpop.f32.mrb[0].mxu0
      %905 = vmatprep.mubr.f32.mxu0 0.0
      %906 = vmatmul.mubr.f32.gmra.mrb[0].mxu0 %v554
      %v907 = vpop.f32.mrb[0].mxu0
      %v908 = vadd.f32 %v406, %v907
      %v909 = vpop.f32.mrb[0].mxu0
      %910 = vmatprep.mubr.f32.mxu0 0.0
      %911 = vmatmul.mubr.f32.gmra.mrb[0].mxu0 %v557
      %v912 = vpop.f32.mrb[0].mxu0
      %v913 = vadd.f32 %v406, %v912
      %v914 = vpop.f32.mrb[0].mxu0
      %915 = vmatprep.mubr.f32.mxu0 0.0
      %916 = vmatmul.mubr.f32.gmra.mrb[0].mxu0 %v560
      %v917 = vpop.f32.mrb[0].mxu0
      %v918 = vadd.f32 %v406, %v917
      %v919 = vpop.f32.mrb[0].mxu0
      %920 = vmatprep.mubr.f32.mxu0 0.0
      %921 = vmatmul.mubr.f32.gmra.mrb[0].mxu0 %v563
      %v922 = vpop.f32.mrb[0].mxu0
      %v923 = vadd.f32 %v406, %v922
      %v924 = vpop.f32.mrb[0].mxu0
      %925 = vmatprep.mubr.f32.mxu0 0.0
      %926 = vmatmul.mubr.f32.gmra.mrb[0].mxu0 %v566
      %v927 = vpop.f32.mrb[0].mxu0
      %v928 = vadd.f32 %v406, %v927
      %v929 = vpop.f32.mrb[0].mxu0
      %930 = vmatprep.mubr.f32.mxu0 0.0
      %931 = vmatmul.mubr.f32.gmra.mrb[0].mxu0 %v569
      %v932 = vpop.f32.mrb[0].mxu0
      %v933 = vadd.f32 %v406, %v932
      %v934 = vpop.f32.mrb[0].mxu0
      %935 = vmatprep.mubr.f32.mxu0 0.0
      %936 = vmatmul.mubr.f32.gmra.mrb[0].mxu0 %v572
      %v937 = vpop.f32.mrb[0].mxu0
      %v938 = vadd.f32 %v406, %v937
      %v939 = vpop.f32.mrb[0].mxu0
      %940 = vmatprep.mubr.f32.mxu0 0.0
      %941 = vmatmul.mubr.f32.gmra.mrb[0].mxu0 %v575
      %v942 = vpop.f32.mrb[0].mxu0
      %v943 = vadd.f32 %v406, %v942
      %v944 = vpop.f32.mrb[0].mxu0
      %945 = vmatprep.mubr.f32.mxu0 0.0
      %946 = vmatmul.mubr.f32.gmra.mrb[0].mxu0 %v578
      %v947 = vpop.f32.mrb[0].mxu0
      %v948 = vadd.f32 %v406, %v947
      %v949 = vpop.f32.mrb[0].mxu0
      %950 = vmatprep.mubr.f32.mxu0 0.0
      %951 = vmatmul.mubr.f32.gmra.mrb[0].mxu0 %v581
      %v952 = vpop.f32.mrb[0].mxu0
      %v953 = vadd.f32 %v406, %v952
      %v954 = vpop.f32.mrb[0].mxu0
      %955 = vmatprep.mubr.f32.mxu0 0.0
      %956 = vmatmul.mubr.f32.gmra.mrb[0].mxu0 %v584
      %v957 = vpop.f32.mrb[0].mxu0
      %v958 = vadd.f32 %v406, %v957
      %v959 = vpop.f32.mrb[0].mxu0
      %960 = vmatprep.mubr.f32.mxu0 0.0
      %961 = vmatmul.mubr.f32.gmra.mrb[0].mxu0 %v587
      %v962 = vpop.f32.mrb[0].mxu0
      %v963 = vadd.f32 %v406, %v962
      %v964 = vpop.f32.mrb[0].mxu0
      %965 = vmatprep.mubr.f32.mxu0 0.0
      %966 = vmatmul.mubr.f32.gmra.mrb[0].mxu0 %v590
      %v967 = vpop.f32.mrb[0].mxu0
      %v968 = vadd.f32 %v406, %v967
      %v969 = vpop.f32.mrb[0].mxu0
      %970 = vmatprep.mubr.f32.mxu0 0.0
      %971 = vmatmul.mubr.f32.gmra.mrb[0].mxu0 %v593
      %v972 = vpop.f32.mrb[0].mxu0
      %v973 = vadd.f32 %v406, %v972
      %v974 = vpop.f32.mrb[0].mxu0
      %975 = vmatprep.mubr.f32.mxu0 0.0
      %976 = vmatmul.mubr.f32.gmra.mrb[0].mxu0 %v596
      %v977 = vpop.f32.mrb[0].mxu0
      %v978 = vadd.f32 %v406, %v977
      %v979 = vpop.f32.mrb[0].mxu0
      %980 = vmatprep.mubr.f32.mxu0 0.0
      %981 = vmatmul.mubr.f32.gmra.mrb[0].mxu0 %v599
      %v982 = vpop.f32.mrb[0].mxu0
      %v983 = vadd.f32 %v406, %v982
      %v984 = vpop.f32.mrb[0].mxu0
      %985 = vdwg.mxu0
      %v986 = vld [vmem:[%s3] sm:$0x1]
      %v988 = vlaneseq
      %v989 = vshrl.u32 %v988, 7
      %v990 = vsub.s32 0, %v989
      %v991 = vrot.slane %v986, %v990
      %v993 = vmul.f32 %v668, %v991
      %v994 = vmul.f32 %v673, %v991
      %v995 = vmul.f32 %v678, %v991
      %v996 = vmul.f32 %v683, %v991
      %v997 = vmul.f32 %v688, %v991
      %v998 = vmul.f32 %v693, %v991
      %v999 = vmul.f32 %v698, %v991
      %v1000 = vmul.f32 %v703, %v991
      %v1001 = vmul.f32 %v708, %v991
      %v1002 = vmul.f32 %v713, %v991
      %v1003 = vmul.f32 %v718, %v991
      %v1004 = vmul.f32 %v723, %v991
      %v1005 = vmul.f32 %v728, %v991
      %v1006 = vmul.f32 %v733, %v991
      %v1007 = vmul.f32 %v738, %v991
      %v1008 = vmul.f32 %v743, %v991
      %v1009 = vmul.f32 %v748, %v991
      %v1010 = vmul.f32 %v753, %v991
      %v1011 = vmul.f32 %v758, %v991
      %v1012 = vmul.f32 %v763, %v991
      %v1013 = vmul.f32 %v768, %v991
      %v1014 = vmul.f32 %v773, %v991
      %v1015 = vmul.f32 %v778, %v991
      %v1016 = vmul.f32 %v783, %v991
      %v1017 = vmul.f32 %v788, %v991
      %v1018 = vmul.f32 %v793, %v991
      %v1019 = vmul.f32 %v798, %v991
      %v1020 = vmul.f32 %v803, %v991
      %v1021 = vmul.f32 %v808, %v991
      %v1022 = vmul.f32 %v813, %v991
      %v1023 = vmul.f32 %v818, %v991
      %v1024 = vmul.f32 %v823, %v991
      %v1025 = vmul.f32 %v828, %v991
      %v1026 = vmul.f32 %v833, %v991
      %v1027 = vmul.f32 %v838, %v991
      %v1028 = vmul.f32 %v843, %v991
      %v1029 = vmul.f32 %v848, %v991
      %v1030 = vmul.f32 %v853, %v991
      %v1031 = vmul.f32 %v858, %v991
      %v1032 = vmul.f32 %v863, %v991
      %v1033 = vmul.f32 %v868, %v991
      %v1034 = vmul.f32 %v873, %v991
      %v1035 = vmul.f32 %v878, %v991
      %v1036 = vmul.f32 %v883, %v991
      %v1037 = vmul.f32 %v888, %v991
      %v1038 = vmul.f32 %v893, %v991
      %v1039 = vmul.f32 %v898, %v991
      %v1040 = vmul.f32 %v903, %v991
      %v1041 = vmul.f32 %v908, %v991
      %v1042 = vmul.f32 %v913, %v991
      %v1043 = vmul.f32 %v918, %v991
      %v1044 = vmul.f32 %v923, %v991
      %v1045 = vmul.f32 %v928, %v991
      %v1046 = vmul.f32 %v933, %v991
      %v1047 = vmul.f32 %v938, %v991
      %v1048 = vmul.f32 %v943, %v991
      %v1049 = vmul.f32 %v948, %v991
      %v1050 = vmul.f32 %v953, %v991
      %v1051 = vmul.f32 %v958, %v991
      %v1052 = vmul.f32 %v963, %v991
      %v1053 = vmul.f32 %v968, %v991
      %v1054 = vmul.f32 %v973, %v991
      %v1055 = vmul.f32 %v978, %v991
      %v1056 = vmul.f32 %v983, %v991
      %v1057 = vld [vmem:[%s4] sm:$0x1]
      %v1059 = vlaneseq
      %v1060 = vshrl.u32 %v1059, 7
      %v1061 = vsub.s32 0, %v1060
      %v1062 = vrot.slane %v1057, %v1061
      %v1064 = vadd.f32 %v993, %v1062
      %v1065 = vadd.f32 %v994, %v1062
      %v1066 = vadd.f32 %v995, %v1062
      %v1067 = vadd.f32 %v996, %v1062
      %v1068 = vadd.f32 %v997, %v1062
      %v1069 = vadd.f32 %v998, %v1062
      %v1070 = vadd.f32 %v999, %v1062
      %v1071 = vadd.f32 %v1000, %v1062
      %v1072 = vadd.f32 %v1001, %v1062
      %v1073 = vadd.f32 %v1002, %v1062
      %v1074 = vadd.f32 %v1003, %v1062
      %v1075 = vadd.f32 %v1004, %v1062
      %v1076 = vadd.f32 %v1005, %v1062
      %v1077 = vadd.f32 %v1006, %v1062
      %v1078 = vadd.f32 %v1007, %v1062
      %v1079 = vadd.f32 %v1008, %v1062
      %v1080 = vadd.f32 %v1009, %v1062
      %v1081 = vadd.f32 %v1010, %v1062
      %v1082 = vadd.f32 %v1011, %v1062
      %v1083 = vadd.f32 %v1012, %v1062
      %v1084 = vadd.f32 %v1013, %v1062
      %v1085 = vadd.f32 %v1014, %v1062
      %v1086 = vadd.f32 %v1015, %v1062
      %v1087 = vadd.f32 %v1016, %v1062
      %v1088 = vadd.f32 %v1017, %v1062
      %v1089 = vadd.f32 %v1018, %v1062
      %v1090 = vadd.f32 %v1019, %v1062
      %v1091 = vadd.f32 %v1020, %v1062
      %v1092 = vadd.f32 %v1021, %v1062
      %v1093 = vadd.f32 %v1022, %v1062
      %v1094 = vadd.f32 %v1023, %v1062
      %v1095 = vadd.f32 %v1024, %v1062
      %v1096 = vadd.f32 %v1025, %v1062
      %v1097 = vadd.f32 %v1026, %v1062
      %v1098 = vadd.f32 %v1027, %v1062
      %v1099 = vadd.f32 %v1028, %v1062
      %v1100 = vadd.f32 %v1029, %v1062
      %v1101 = vadd.f32 %v1030, %v1062
      %v1102 = vadd.f32 %v1031, %v1062
      %v1103 = vadd.f32 %v1032, %v1062
      %v1104 = vadd.f32 %v1033, %v1062
      %v1105 = vadd.f32 %v1034, %v1062
      %v1106 = vadd.f32 %v1035, %v1062
      %v1107 = vadd.f32 %v1036, %v1062
      %v1108 = vadd.f32 %v1037, %v1062
      %v1109 = vadd.f32 %v1038, %v1062
      %v1110 = vadd.f32 %v1039, %v1062
      %v1111 = vadd.f32 %v1040, %v1062
      %v1112 = vadd.f32 %v1041, %v1062
      %v1113 = vadd.f32 %v1042, %v1062
      %v1114 = vadd.f32 %v1043, %v1062
      %v1115 = vadd.f32 %v1044, %v1062
      %v1116 = vadd.f32 %v1045, %v1062
      %v1117 = vadd.f32 %v1046, %v1062
      %v1118 = vadd.f32 %v1047, %v1062
      %v1119 = vadd.f32 %v1048, %v1062
      %v1120 = vadd.f32 %v1049, %v1062
      %v1121 = vadd.f32 %v1050, %v1062
      %v1122 = vadd.f32 %v1051, %v1062
      %v1123 = vadd.f32 %v1052, %v1062
      %v1124 = vadd.f32 %v1053, %v1062
      %v1125 = vadd.f32 %v1054, %v1062
      %v1126 = vadd.f32 %v1055, %v1062
      %v1127 = vadd.f32 %v1056, %v1062
      %v1128 = vmax.f32 %v1064, 0.0
      %v1129 = vmax.f32 %v1065, 0.0
      %v1130 = vmax.f32 %v1066, 0.0
      %v1131 = vmax.f32 %v1067, 0.0
      %v1132 = vmax.f32 %v1068, 0.0
      %v1133 = vmax.f32 %v1069, 0.0
      %v1134 = vmax.f32 %v1070, 0.0
      %v1135 = vmax.f32 %v1071, 0.0
      %v1136 = vmax.f32 %v1072, 0.0
      %v1137 = vmax.f32 %v1073, 0.0
      %v1138 = vmax.f32 %v1074, 0.0
      %v1139 = vmax.f32 %v1075, 0.0
      %v1140 = vmax.f32 %v1076, 0.0
      %v1141 = vmax.f32 %v1077, 0.0
      %v1142 = vmax.f32 %v1078, 0.0
      %v1143 = vmax.f32 %v1079, 0.0
      %v1144 = vmax.f32 %v1080, 0.0
      %v1145 = vmax.f32 %v1081, 0.0
      %v1146 = vmax.f32 %v1082, 0.0
      %v1147 = vmax.f32 %v1083, 0.0
      %v1148 = vmax.f32 %v1084, 0.0
      %v1149 = vmax.f32 %v1085, 0.0
      %v1150 = vmax.f32 %v1086, 0.0
      %v1151 = vmax.f32 %v1087, 0.0
      %v1152 = vmax.f32 %v1088, 0.0
      %v1153 = vmax.f32 %v1089, 0.0
      %v1154 = vmax.f32 %v1090, 0.0
      %v1155 = vmax.f32 %v1091, 0.0
      %v1156 = vmax.f32 %v1092, 0.0
      %v1157 = vmax.f32 %v1093, 0.0
      %v1158 = vmax.f32 %v1094, 0.0
      %v1159 = vmax.f32 %v1095, 0.0
      %v1160 = vmax.f32 %v1096, 0.0
      %v1161 = vmax.f32 %v1097, 0.0
      %v1162 = vmax.f32 %v1098, 0.0
      %v1163 = vmax.f32 %v1099, 0.0
      %v1164 = vmax.f32 %v1100, 0.0
      %v1165 = vmax.f32 %v1101, 0.0
      %v1166 = vmax.f32 %v1102, 0.0
      %v1167 = vmax.f32 %v1103, 0.0
      %v1168 = vmax.f32 %v1104, 0.0
      %v1169 = vmax.f32 %v1105, 0.0
      %v1170 = vmax.f32 %v1106, 0.0
      %v1171 = vmax.f32 %v1107, 0.0
      %v1172 = vmax.f32 %v1108, 0.0
      %v1173 = vmax.f32 %v1109, 0.0
      %v1174 = vmax.f32 %v1110, 0.0
      %v1175 = vmax.f32 %v1111, 0.0
      %v1176 = vmax.f32 %v1112, 0.0
      %v1177 = vmax.f32 %v1113, 0.0
      %v1178 = vmax.f32 %v1114, 0.0
      %v1179 = vmax.f32 %v1115, 0.0
      %v1180 = vmax.f32 %v1116, 0.0
      %v1181 = vmax.f32 %v1117, 0.0
      %v1182 = vmax.f32 %v1118, 0.0
      %v1183 = vmax.f32 %v1119, 0.0
      %v1184 = vmax.f32 %v1120, 0.0
      %v1185 = vmax.f32 %v1121, 0.0
      %v1186 = vmax.f32 %v1122, 0.0
      %v1187 = vmax.f32 %v1123, 0.0
      %v1188 = vmax.f32 %v1124, 0.0
      %v1189 = vmax.f32 %v1125, 0.0
      %v1190 = vmax.f32 %v1126, 0.0
      %v1191 = vmax.f32 %v1127, 0.0
      %v1192 = vld [vmem:[%s5] sm:$0xff]
      %v1193 = vld [vmem:[%s5 + $0x8] sm:$0xff]
      %v1194 = vld [vmem:[%s5 + $0x10] sm:$0xff]
      %v1195 = vld [vmem:[%s5 + $0x18] sm:$0xff]
      %v1196 = vld [vmem:[%s5 + $0x20] sm:$0xff]
      %v1197 = vld [vmem:[%s5 + $0x28] sm:$0xff]
      %v1198 = vld [vmem:[%s5 + $0x30] sm:$0xff]
      %v1199 = vld [vmem:[%s5 + $0x38] sm:$0xff]
      %v1200 = vld [vmem:[%s5 + $0x40] sm:$0xff]
      %v1201 = vld [vmem:[%s5 + $0x48] sm:$0xff]
      %v1202 = vld [vmem:[%s5 + $0x50] sm:$0xff]
      %v1203 = vld [vmem:[%s5 + $0x58] sm:$0xff]
      %v1204 = vld [vmem:[%s5 + $0x60] sm:$0xff]
      %v1205 = vld [vmem:[%s5 + $0x68] sm:$0xff]
      %v1206 = vld [vmem:[%s5 + $0x70] sm:$0xff]
      %v1207 = vld [vmem:[%s5 + $0x78] sm:$0xff]
      %v1208 = vld [vmem:[%s6] sm:$0x1]
      %v1210 = vlaneseq
      %v1211 = vshrl.u32 %v1210, 7
      %v1212 = vsub.s32 0, %v1211
      %v1213 = vrot.slane %v1208, %v1212
      %1215 = vmatprep.subr.mxu0 0.0
      %1216 = vmatpush1.msra.mxu0 %v1192
      %1217 = vmatprep.subr.mxu0 0.0
      %1218 = vmatpush1.msra.mxu0 %v1193
      %1219 = vmatprep.subr.mxu0 0.0
      %1220 = vmatpush1.msra.mxu0 %v1194
      %1221 = vmatprep.subr.mxu0 0.0
      %1222 = vmatpush1.msra.mxu0 %v1195
      %1223 = vmatprep.subr.mxu0 0.0
      %1224 = vmatpush1.msra.mxu0 %v1196
      %1225 = vmatprep.subr.mxu0 0.0
      %1226 = vmatpush1.msra.mxu0 %v1197
      %1227 = vmatprep.subr.mxu0 0.0
      %1228 = vmatpush1.msra.mxu0 %v1198
      %1229 = vmatprep.subr.mxu0 0.0
      %1230 = vmatpush1.msra.mxu0 %v1199
      %1231 = vmatprep.subr.mxu0 0.0
      %1232 = vmatpush1.msra.mxu0 %v1200
      %1233 = vmatprep.subr.mxu0 0.0
      %1234 = vmatpush1.msra.mxu0 %v1201
      %1235 = vmatprep.subr.mxu0 0.0
      %1236 = vmatpush1.msra.mxu0 %v1202
      %1237 = vmatprep.subr.mxu0 0.0
      %1238 = vmatpush1.msra.mxu0 %v1203
      %1239 = vmatprep.subr.mxu0 0.0
      %1240 = vmatpush1.msra.mxu0 %v1204
      %1241 = vmatprep.subr.mxu0 0.0
      %1242 = vmatpush1.msra.mxu0 %v1205
      %1243 = vmatprep.subr.mxu0 0.0
      %1244 = vmatpush1.msra.mxu0 %v1206
      %1245 = vmatprep.subr.mxu0 0.0
      %1246 = vmatpush1.msra.mxu0 %v1207
      %1247 = vmatprep.subr.mxu0 0.0
      %1248 = vmatpush1.msra.mxu0 0.0
      %1249 = vmatprep.subr.mxu0 0.0
      %1250 = vmatpush1.msra.mxu0 0.0
      %1251 = vmatprep.subr.mxu0 0.0
      %1252 = vmatpush1.msra.mxu0 0.0
      %1253 = vmatprep.subr.mxu0 0.0
      %1254 = vmatpush1.msra.mxu0 0.0
      %1255 = vmatprep.subr.mxu0 0.0
      %1256 = vmatpush1.msra.mxu0 0.0
      %1257 = vmatprep.subr.mxu0 0.0
      %1258 = vmatpush1.msra.mxu0 0.0
      %1259 = vmatprep.subr.mxu0 0.0
      %1260 = vmatpush1.msra.mxu0 0.0
      %1261 = vmatprep.subr.mxu0 0.0
      %1262 = vmatpush1.msra.mxu0 0.0
      %1263 = vmatprep.subr.mxu0 0.0
      %1264 = vmatpush1.msra.mxu0 0.0
      %1265 = vmatprep.subr.mxu0 0.0
      %1266 = vmatpush1.msra.mxu0 0.0
      %1267 = vmatprep.subr.mxu0 0.0
      %1268 = vmatpush1.msra.mxu0 0.0
      %1269 = vmatprep.subr.mxu0 0.0
      %1270 = vmatpush1.msra.mxu0 0.0
      %1271 = vmatprep.subr.mxu0 0.0
      %1272 = vmatpush1.msra.mxu0 0.0
      %1273 = vmatprep.subr.mxu0 0.0
      %1274 = vmatpush1.msra.mxu0 0.0
      %1275 = vmatprep.subr.mxu0 0.0
      %1276 = vmatpush1.msra.mxu0 0.0
      %1277 = vmatprep.subr.mxu0 0.0
      %1278 = vmatpush1.msra.mxu0 0.0
      %1279 = vmatprep.mubr.f32.mxu0 0.0
      %1280 = vmatmul.mubr.f32.gmra.mrb[0].mxu0 %v1128
      %v1281 = vpop.f32.mrb[0].mxu0
      %v1282 = vadd.f32 %v1213, %v1281
      %v1283 = vpop.f32.mrb[0].mxu0
      %1284 = vmatprep.mubr.f32.mxu0 0.0
      %1285 = vmatmul.mubr.f32.gmra.mrb[0].mxu0 %v1129
      %v1286 = vpop.f32.mrb[0].mxu0
      %v1287 = vadd.f32 %v1213, %v1286
      %v1288 = vpop.f32.mrb[0].mxu0
      %1289 = vmatprep.mubr.f32.mxu0 0.0
      %1290 = vmatmul.mubr.f32.gmra.mrb[0].mxu0 %v1130
      %v1291 = vpop.f32.mrb[0].mxu0
      %v1292 = vadd.f32 %v1213, %v1291
      %v1293 = vpop.f32.mrb[0].mxu0
      %1294 = vmatprep.mubr.f32.mxu0 0.0
      %1295 = vmatmul.mubr.f32.gmra.mrb[0].mxu0 %v1131
      %v1296 = vpop.f32.mrb[0].mxu0
      %v1297 = vadd.f32 %v1213, %v1296
      %v1298 = vpop.f32.mrb[0].mxu0
      %1299 = vmatprep.mubr.f32.mxu0 0.0
      %1300 = vmatmul.mubr.f32.gmra.mrb[0].mxu0 %v1132
      %v1301 = vpop.f32.mrb[0].mxu0
      %v1302 = vadd.f32 %v1213, %v1301
      %v1303 = vpop.f32.mrb[0].mxu0
      %1304 = vmatprep.mubr.f32.mxu0 0.0
      %1305 = vmatmul.mubr.f32.gmra.mrb[0].mxu0 %v1133
      %v1306 = vpop.f32.mrb[0].mxu0
      %v1307 = vadd.f32 %v1213, %v1306
      %v1308 = vpop.f32.mrb[0].mxu0
      %1309 = vmatprep.mubr.f32.mxu0 0.0
      %1310 = vmatmul.mubr.f32.gmra.mrb[0].mxu0 %v1134
      %v1311 = vpop.f32.mrb[0].mxu0
      %v1312 = vadd.f32 %v1213, %v1311
      %v1313 = vpop.f32.mrb[0].mxu0
      %1314 = vmatprep.mubr.f32.mxu0 0.0
      %1315 = vmatmul.mubr.f32.gmra.mrb[0].mxu0 %v1135
      %v1316 = vpop.f32.mrb[0].mxu0
      %v1317 = vadd.f32 %v1213, %v1316
      %v1318 = vpop.f32.mrb[0].mxu0
      %1319 = vmatprep.mubr.f32.mxu0 0.0
      %1320 = vmatmul.mubr.f32.gmra.mrb[0].mxu0 %v1136
      %v1321 = vpop.f32.mrb[0].mxu0
      %v1322 = vadd.f32 %v1213, %v1321
      %v1323 = vpop.f32.mrb[0].mxu0
      %1324 = vmatprep.mubr.f32.mxu0 0.0
      %1325 = vmatmul.mubr.f32.gmra.mrb[0].mxu0 %v1137
      %v1326 = vpop.f32.mrb[0].mxu0
      %v1327 = vadd.f32 %v1213, %v1326
      %v1328 = vpop.f32.mrb[0].mxu0
      %1329 = vmatprep.mubr.f32.mxu0 0.0
      %1330 = vmatmul.mubr.f32.gmra.mrb[0].mxu0 %v1138
      %v1331 = vpop.f32.mrb[0].mxu0
      %v1332 = vadd.f32 %v1213, %v1331
      %v1333 = vpop.f32.mrb[0].mxu0
      %1334 = vmatprep.mubr.f32.mxu0 0.0
      %1335 = vmatmul.mubr.f32.gmra.mrb[0].mxu0 %v1139
      %v1336 = vpop.f32.mrb[0].mxu0
      %v1337 = vadd.f32 %v1213, %v1336
      %v1338 = vpop.f32.mrb[0].mxu0
      %1339 = vmatprep.mubr.f32.mxu0 0.0
      %1340 = vmatmul.mubr.f32.gmra.mrb[0].mxu0 %v1140
      %v1341 = vpop.f32.mrb[0].mxu0
      %v1342 = vadd.f32 %v1213, %v1341
      %v1343 = vpop.f32.mrb[0].mxu0
      %1344 = vmatprep.mubr.f32.mxu0 0.0
      %1345 = vmatmul.mubr.f32.gmra.mrb[0].mxu0 %v1141
      %v1346 = vpop.f32.mrb[0].mxu0
      %v1347 = vadd.f32 %v1213, %v1346
      %v1348 = vpop.f32.mrb[0].mxu0
      %1349 = vmatprep.mubr.f32.mxu0 0.0
      %1350 = vmatmul.mubr.f32.gmra.mrb[0].mxu0 %v1142
      %v1351 = vpop.f32.mrb[0].mxu0
      %v1352 = vadd.f32 %v1213, %v1351
      %v1353 = vpop.f32.mrb[0].mxu0
      %1354 = vmatprep.mubr.f32.mxu0 0.0
      %1355 = vmatmul.mubr.f32.gmra.mrb[0].mxu0 %v1143
      %v1356 = vpop.f32.mrb[0].mxu0
      %v1357 = vadd.f32 %v1213, %v1356
      %v1358 = vpop.f32.mrb[0].mxu0
      %1359 = vmatprep.mubr.f32.mxu0 0.0
      %1360 = vmatmul.mubr.f32.gmra.mrb[0].mxu0 %v1144
      %v1361 = vpop.f32.mrb[0].mxu0
      %v1362 = vadd.f32 %v1213, %v1361
      %v1363 = vpop.f32.mrb[0].mxu0
      %1364 = vmatprep.mubr.f32.mxu0 0.0
      %1365 = vmatmul.mubr.f32.gmra.mrb[0].mxu0 %v1145
      %v1366 = vpop.f32.mrb[0].mxu0
      %v1367 = vadd.f32 %v1213, %v1366
      %v1368 = vpop.f32.mrb[0].mxu0
      %1369 = vmatprep.mubr.f32.mxu0 0.0
      %1370 = vmatmul.mubr.f32.gmra.mrb[0].mxu0 %v1146
      %v1371 = vpop.f32.mrb[0].mxu0
      %v1372 = vadd.f32 %v1213, %v1371
      %v1373 = vpop.f32.mrb[0].mxu0
      %1374 = vmatprep.mubr.f32.mxu0 0.0
      %1375 = vmatmul.mubr.f32.gmra.mrb[0].mxu0 %v1147
      %v1376 = vpop.f32.mrb[0].mxu0
      %v1377 = vadd.f32 %v1213, %v1376
      %v1378 = vpop.f32.mrb[0].mxu0
      %1379 = vmatprep.mubr.f32.mxu0 0.0
      %1380 = vmatmul.mubr.f32.gmra.mrb[0].mxu0 %v1148
      %v1381 = vpop.f32.mrb[0].mxu0
      %v1382 = vadd.f32 %v1213, %v1381
      %v1383 = vpop.f32.mrb[0].mxu0
      %1384 = vmatprep.mubr.f32.mxu0 0.0
      %1385 = vmatmul.mubr.f32.gmra.mrb[0].mxu0 %v1149
      %v1386 = vpop.f32.mrb[0].mxu0
      %v1387 = vadd.f32 %v1213, %v1386
      %v1388 = vpop.f32.mrb[0].mxu0
      %1389 = vmatprep.mubr.f32.mxu0 0.0
      %1390 = vmatmul.mubr.f32.gmra.mrb[0].mxu0 %v1150
      %v1391 = vpop.f32.mrb[0].mxu0
      %v1392 = vadd.f32 %v1213, %v1391
      %v1393 = vpop.f32.mrb[0].mxu0
      %1394 = vmatprep.mubr.f32.mxu0 0.0
      %1395 = vmatmul.mubr.f32.gmra.mrb[0].mxu0 %v1151
      %v1396 = vpop.f32.mrb[0].mxu0
      %v1397 = vadd.f32 %v1213, %v1396
      %v1398 = vpop.f32.mrb[0].mxu0
      %1399 = vmatprep.mubr.f32.mxu0 0.0
      %1400 = vmatmul.mubr.f32.gmra.mrb[0].mxu0 %v1152
      %v1401 = vpop.f32.mrb[0].mxu0
      %v1402 = vadd.f32 %v1213, %v1401
      %v1403 = vpop.f32.mrb[0].mxu0
      %1404 = vmatprep.mubr.f32.mxu0 0.0
      %1405 = vmatmul.mubr.f32.gmra.mrb[0].mxu0 %v1153
      %v1406 = vpop.f32.mrb[0].mxu0
      %v1407 = vadd.f32 %v1213, %v1406
      %v1408 = vpop.f32.mrb[0].mxu0
      %1409 = vmatprep.mubr.f32.mxu0 0.0
      %1410 = vmatmul.mubr.f32.gmra.mrb[0].mxu0 %v1154
      %v1411 = vpop.f32.mrb[0].mxu0
      %v1412 = vadd.f32 %v1213, %v1411
      %v1413 = vpop.f32.mrb[0].mxu0
      %1414 = vmatprep.mubr.f32.mxu0 0.0
      %1415 = vmatmul.mubr.f32.gmra.mrb[0].mxu0 %v1155
      %v1416 = vpop.f32.mrb[0].mxu0
      %v1417 = vadd.f32 %v1213, %v1416
      %v1418 = vpop.f32.mrb[0].mxu0
      %1419 = vmatprep.mubr.f32.mxu0 0.0
      %1420 = vmatmul.mubr.f32.gmra.mrb[0].mxu0 %v1156
      %v1421 = vpop.f32.mrb[0].mxu0
      %v1422 = vadd.f32 %v1213, %v1421
      %v1423 = vpop.f32.mrb[0].mxu0
      %1424 = vmatprep.mubr.f32.mxu0 0.0
      %1425 = vmatmul.mubr.f32.gmra.mrb[0].mxu0 %v1157
      %v1426 = vpop.f32.mrb[0].mxu0
      %v1427 = vadd.f32 %v1213, %v1426
      %v1428 = vpop.f32.mrb[0].mxu0
      %1429 = vmatprep.mubr.f32.mxu0 0.0
      %1430 = vmatmul.mubr.f32.gmra.mrb[0].mxu0 %v1158
      %v1431 = vpop.f32.mrb[0].mxu0
      %v1432 = vadd.f32 %v1213, %v1431
      %v1433 = vpop.f32.mrb[0].mxu0
      %1434 = vmatprep.mubr.f32.mxu0 0.0
      %1435 = vmatmul.mubr.f32.gmra.mrb[0].mxu0 %v1159
      %v1436 = vpop.f32.mrb[0].mxu0
      %v1437 = vadd.f32 %v1213, %v1436
      %v1438 = vpop.f32.mrb[0].mxu0
      %1439 = vmatprep.mubr.f32.mxu0 0.0
      %1440 = vmatmul.mubr.f32.gmra.mrb[0].mxu0 %v1160
      %v1441 = vpop.f32.mrb[0].mxu0
      %v1442 = vadd.f32 %v1213, %v1441
      %v1443 = vpop.f32.mrb[0].mxu0
      %1444 = vmatprep.mubr.f32.mxu0 0.0
      %1445 = vmatmul.mubr.f32.gmra.mrb[0].mxu0 %v1161
      %v1446 = vpop.f32.mrb[0].mxu0
      %v1447 = vadd.f32 %v1213, %v1446
      %v1448 = vpop.f32.mrb[0].mxu0
      %1449 = vmatprep.mubr.f32.mxu0 0.0
      %1450 = vmatmul.mubr.f32.gmra.mrb[0].mxu0 %v1162
      %v1451 = vpop.f32.mrb[0].mxu0
      %v1452 = vadd.f32 %v1213, %v1451
      %v1453 = vpop.f32.mrb[0].mxu0
      %1454 = vmatprep.mubr.f32.mxu0 0.0
      %1455 = vmatmul.mubr.f32.gmra.mrb[0].mxu0 %v1163
      %v1456 = vpop.f32.mrb[0].mxu0
      %v1457 = vadd.f32 %v1213, %v1456
      %v1458 = vpop.f32.mrb[0].mxu0
      %1459 = vmatprep.mubr.f32.mxu0 0.0
      %1460 = vmatmul.mubr.f32.gmra.mrb[0].mxu0 %v1164
      %v1461 = vpop.f32.mrb[0].mxu0
      %v1462 = vadd.f32 %v1213, %v1461
      %v1463 = vpop.f32.mrb[0].mxu0
      %1464 = vmatprep.mubr.f32.mxu0 0.0
      %1465 = vmatmul.mubr.f32.gmra.mrb[0].mxu0 %v1165
      %v1466 = vpop.f32.mrb[0].mxu0
      %v1467 = vadd.f32 %v1213, %v1466
      %v1468 = vpop.f32.mrb[0].mxu0
      %1469 = vmatprep.mubr.f32.mxu0 0.0
      %1470 = vmatmul.mubr.f32.gmra.mrb[0].mxu0 %v1166
      %v1471 = vpop.f32.mrb[0].mxu0
      %v1472 = vadd.f32 %v1213, %v1471
      %v1473 = vpop.f32.mrb[0].mxu0
      %1474 = vmatprep.mubr.f32.mxu0 0.0
      %1475 = vmatmul.mubr.f32.gmra.mrb[0].mxu0 %v1167
      %v1476 = vpop.f32.mrb[0].mxu0
      %v1477 = vadd.f32 %v1213, %v1476
      %v1478 = vpop.f32.mrb[0].mxu0
      %1479 = vmatprep.mubr.f32.mxu0 0.0
      %1480 = vmatmul.mubr.f32.gmra.mrb[0].mxu0 %v1168
      %v1481 = vpop.f32.mrb[0].mxu0
      %v1482 = vadd.f32 %v1213, %v1481
      %v1483 = vpop.f32.mrb[0].mxu0
      %1484 = vmatprep.mubr.f32.mxu0 0.0
      %1485 = vmatmul.mubr.f32.gmra.mrb[0].mxu0 %v1169
      %v1486 = vpop.f32.mrb[0].mxu0
      %v1487 = vadd.f32 %v1213, %v1486
      %v1488 = vpop.f32.mrb[0].mxu0
      %1489 = vmatprep.mubr.f32.mxu0 0.0
      %1490 = vmatmul.mubr.f32.gmra.mrb[0].mxu0 %v1170
      %v1491 = vpop.f32.mrb[0].mxu0
      %v1492 = vadd.f32 %v1213, %v1491
      %v1493 = vpop.f32.mrb[0].mxu0
      %1494 = vmatprep.mubr.f32.mxu0 0.0
      %1495 = vmatmul.mubr.f32.gmra.mrb[0].mxu0 %v1171
      %v1496 = vpop.f32.mrb[0].mxu0
      %v1497 = vadd.f32 %v1213, %v1496
      %v1498 = vpop.f32.mrb[0].mxu0
      %1499 = vmatprep.mubr.f32.mxu0 0.0
      %1500 = vmatmul.mubr.f32.gmra.mrb[0].mxu0 %v1172
      %v1501 = vpop.f32.mrb[0].mxu0
      %v1502 = vadd.f32 %v1213, %v1501
      %v1503 = vpop.f32.mrb[0].mxu0
      %1504 = vmatprep.mubr.f32.mxu0 0.0
      %1505 = vmatmul.mubr.f32.gmra.mrb[0].mxu0 %v1173
      %v1506 = vpop.f32.mrb[0].mxu0
      %v1507 = vadd.f32 %v1213, %v1506
      %v1508 = vpop.f32.mrb[0].mxu0
      %1509 = vmatprep.mubr.f32.mxu0 0.0
      %1510 = vmatmul.mubr.f32.gmra.mrb[0].mxu0 %v1174
      %v1511 = vpop.f32.mrb[0].mxu0
      %v1512 = vadd.f32 %v1213, %v1511
      %v1513 = vpop.f32.mrb[0].mxu0
      %1514 = vmatprep.mubr.f32.mxu0 0.0
      %1515 = vmatmul.mubr.f32.gmra.mrb[0].mxu0 %v1175
      %v1516 = vpop.f32.mrb[0].mxu0
      %v1517 = vadd.f32 %v1213, %v1516
      %v1518 = vpop.f32.mrb[0].mxu0
      %1519 = vmatprep.mubr.f32.mxu0 0.0
      %1520 = vmatmul.mubr.f32.gmra.mrb[0].mxu0 %v1176
      %v1521 = vpop.f32.mrb[0].mxu0
      %v1522 = vadd.f32 %v1213, %v1521
      %v1523 = vpop.f32.mrb[0].mxu0
      %1524 = vmatprep.mubr.f32.mxu0 0.0
      %1525 = vmatmul.mubr.f32.gmra.mrb[0].mxu0 %v1177
      %v1526 = vpop.f32.mrb[0].mxu0
      %v1527 = vadd.f32 %v1213, %v1526
      %v1528 = vpop.f32.mrb[0].mxu0
      %1529 = vmatprep.mubr.f32.mxu0 0.0
      %1530 = vmatmul.mubr.f32.gmra.mrb[0].mxu0 %v1178
      %v1531 = vpop.f32.mrb[0].mxu0
      %v1532 = vadd.f32 %v1213, %v1531
      %v1533 = vpop.f32.mrb[0].mxu0
      %1534 = vmatprep.mubr.f32.mxu0 0.0
      %1535 = vmatmul.mubr.f32.gmra.mrb[0].mxu0 %v1179
      %v1536 = vpop.f32.mrb[0].mxu0
      %v1537 = vadd.f32 %v1213, %v1536
      %v1538 = vpop.f32.mrb[0].mxu0
      %1539 = vmatprep.mubr.f32.mxu0 0.0
      %1540 = vmatmul.mubr.f32.gmra.mrb[0].mxu0 %v1180
      %v1541 = vpop.f32.mrb[0].mxu0
      %v1542 = vadd.f32 %v1213, %v1541
      %v1543 = vpop.f32.mrb[0].mxu0
      %1544 = vmatprep.mubr.f32.mxu0 0.0
      %1545 = vmatmul.mubr.f32.gmra.mrb[0].mxu0 %v1181
      %v1546 = vpop.f32.mrb[0].mxu0
      %v1547 = vadd.f32 %v1213, %v1546
      %v1548 = vpop.f32.mrb[0].mxu0
      %1549 = vmatprep.mubr.f32.mxu0 0.0
      %1550 = vmatmul.mubr.f32.gmra.mrb[0].mxu0 %v1182
      %v1551 = vpop.f32.mrb[0].mxu0
      %v1552 = vadd.f32 %v1213, %v1551
      %v1553 = vpop.f32.mrb[0].mxu0
      %1554 = vmatprep.mubr.f32.mxu0 0.0
      %1555 = vmatmul.mubr.f32.gmra.mrb[0].mxu0 %v1183
      %v1556 = vpop.f32.mrb[0].mxu0
      %v1557 = vadd.f32 %v1213, %v1556
      %v1558 = vpop.f32.mrb[0].mxu0
      %1559 = vmatprep.mubr.f32.mxu0 0.0
      %1560 = vmatmul.mubr.f32.gmra.mrb[0].mxu0 %v1184
      %v1561 = vpop.f32.mrb[0].mxu0
      %v1562 = vadd.f32 %v1213, %v1561
      %v1563 = vpop.f32.mrb[0].mxu0
      %1564 = vmatprep.mubr.f32.mxu0 0.0
      %1565 = vmatmul.mubr.f32.gmra.mrb[0].mxu0 %v1185
      %v1566 = vpop.f32.mrb[0].mxu0
      %v1567 = vadd.f32 %v1213, %v1566
      %v1568 = vpop.f32.mrb[0].mxu0
      %1569 = vmatprep.mubr.f32.mxu0 0.0
      %1570 = vmatmul.mubr.f32.gmra.mrb[0].mxu0 %v1186
      %v1571 = vpop.f32.mrb[0].mxu0
      %v1572 = vadd.f32 %v1213, %v1571
      %v1573 = vpop.f32.mrb[0].mxu0
      %1574 = vmatprep.mubr.f32.mxu0 0.0
      %1575 = vmatmul.mubr.f32.gmra.mrb[0].mxu0 %v1187
      %v1576 = vpop.f32.mrb[0].mxu0
      %v1577 = vadd.f32 %v1213, %v1576
      %v1578 = vpop.f32.mrb[0].mxu0
      %1579 = vmatprep.mubr.f32.mxu0 0.0
      %1580 = vmatmul.mubr.f32.gmra.mrb[0].mxu0 %v1188
      %v1581 = vpop.f32.mrb[0].mxu0
      %v1582 = vadd.f32 %v1213, %v1581
      %v1583 = vpop.f32.mrb[0].mxu0
      %1584 = vmatprep.mubr.f32.mxu0 0.0
      %1585 = vmatmul.mubr.f32.gmra.mrb[0].mxu0 %v1189
      %v1586 = vpop.f32.mrb[0].mxu0
      %v1587 = vadd.f32 %v1213, %v1586
      %v1588 = vpop.f32.mrb[0].mxu0
      %1589 = vmatprep.mubr.f32.mxu0 0.0
      %1590 = vmatmul.mubr.f32.gmra.mrb[0].mxu0 %v1190
      %v1591 = vpop.f32.mrb[0].mxu0
      %v1592 = vadd.f32 %v1213, %v1591
      %v1593 = vpop.f32.mrb[0].mxu0
      %1594 = vmatprep.mubr.f32.mxu0 0.0
      %1595 = vmatmul.mubr.f32.gmra.mrb[0].mxu0 %v1191
      %v1596 = vpop.f32.mrb[0].mxu0
      %v1597 = vadd.f32 %v1213, %v1596
      %v1598 = vpop.f32.mrb[0].mxu0
      %1599 = vdwg.mxu0
      %v1600 = vld [vmem:[%s7] sm:$0x1]
      %v1602 = vlaneseq
      %v1603 = vshrl.u32 %v1602, 7
      %v1604 = vsub.s32 0, %v1603
      %v1605 = vrot.slane %v1600, %v1604
      %v1607 = vmul.f32 %v1282, %v1605
      %v1608 = vmul.f32 %v1287, %v1605
      %v1609 = vmul.f32 %v1292, %v1605
      %v1610 = vmul.f32 %v1297, %v1605
      %v1611 = vmul.f32 %v1302, %v1605
      %v1612 = vmul.f32 %v1307, %v1605
      %v1613 = vmul.f32 %v1312, %v1605
      %v1614 = vmul.f32 %v1317, %v1605
      %v1615 = vmul.f32 %v1322, %v1605
      %v1616 = vmul.f32 %v1327, %v1605
      %v1617 = vmul.f32 %v1332, %v1605
      %v1618 = vmul.f32 %v1337, %v1605
      %v1619 = vmul.f32 %v1342, %v1605
      %v1620 = vmul.f32 %v1347, %v1605
      %v1621 = vmul.f32 %v1352, %v1605
      %v1622 = vmul.f32 %v1357, %v1605
      %v1623 = vmul.f32 %v1362, %v1605
      %v1624 = vmul.f32 %v1367, %v1605
      %v1625 = vmul.f32 %v1372, %v1605
      %v1626 = vmul.f32 %v1377, %v1605
      %v1627 = vmul.f32 %v1382, %v1605
      %v1628 = vmul.f32 %v1387, %v1605
      %v1629 = vmul.f32 %v1392, %v1605
      %v1630 = vmul.f32 %v1397, %v1605
      %v1631 = vmul.f32 %v1402, %v1605
      %v1632 = vmul.f32 %v1407, %v1605
      %v1633 = vmul.f32 %v1412, %v1605
      %v1634 = vmul.f32 %v1417, %v1605
      %v1635 = vmul.f32 %v1422, %v1605
      %v1636 = vmul.f32 %v1427, %v1605
      %v1637 = vmul.f32 %v1432, %v1605
      %v1638 = vmul.f32 %v1437, %v1605
      %v1639 = vmul.f32 %v1442, %v1605
      %v1640 = vmul.f32 %v1447, %v1605
      %v1641 = vmul.f32 %v1452, %v1605
      %v1642 = vmul.f32 %v1457, %v1605
      %v1643 = vmul.f32 %v1462, %v1605
      %v1644 = vmul.f32 %v1467, %v1605
      %v1645 = vmul.f32 %v1472, %v1605
      %v1646 = vmul.f32 %v1477, %v1605
      %v1647 = vmul.f32 %v1482, %v1605
      %v1648 = vmul.f32 %v1487, %v1605
      %v1649 = vmul.f32 %v1492, %v1605
      %v1650 = vmul.f32 %v1497, %v1605
      %v1651 = vmul.f32 %v1502, %v1605
      %v1652 = vmul.f32 %v1507, %v1605
      %v1653 = vmul.f32 %v1512, %v1605
      %v1654 = vmul.f32 %v1517, %v1605
      %v1655 = vmul.f32 %v1522, %v1605
      %v1656 = vmul.f32 %v1527, %v1605
      %v1657 = vmul.f32 %v1532, %v1605
      %v1658 = vmul.f32 %v1537, %v1605
      %v1659 = vmul.f32 %v1542, %v1605
      %v1660 = vmul.f32 %v1547, %v1605
      %v1661 = vmul.f32 %v1552, %v1605
      %v1662 = vmul.f32 %v1557, %v1605
      %v1663 = vmul.f32 %v1562, %v1605
      %v1664 = vmul.f32 %v1567, %v1605
      %v1665 = vmul.f32 %v1572, %v1605
      %v1666 = vmul.f32 %v1577, %v1605
      %v1667 = vmul.f32 %v1582, %v1605
      %v1668 = vmul.f32 %v1587, %v1605
      %v1669 = vmul.f32 %v1592, %v1605
      %v1670 = vmul.f32 %v1597, %v1605
      %v1671 = vld [vmem:[%s8] sm:$0x1]
      %v1673 = vlaneseq
      %v1674 = vshrl.u32 %v1673, 7
      %v1675 = vsub.s32 0, %v1674
      %v1676 = vrot.slane %v1671, %v1675
      %v1678 = vadd.f32 %v1607, %v1676
      %v1679 = vadd.f32 %v1608, %v1676
      %v1680 = vadd.f32 %v1609, %v1676
      %v1681 = vadd.f32 %v1610, %v1676
      %v1682 = vadd.f32 %v1611, %v1676
      %v1683 = vadd.f32 %v1612, %v1676
      %v1684 = vadd.f32 %v1613, %v1676
      %v1685 = vadd.f32 %v1614, %v1676
      %v1686 = vadd.f32 %v1615, %v1676
      %v1687 = vadd.f32 %v1616, %v1676
      %v1688 = vadd.f32 %v1617, %v1676
      %v1689 = vadd.f32 %v1618, %v1676
      %v1690 = vadd.f32 %v1619, %v1676
      %v1691 = vadd.f32 %v1620, %v1676
      %v1692 = vadd.f32 %v1621, %v1676
      %v1693 = vadd.f32 %v1622, %v1676
      %v1694 = vadd.f32 %v1623, %v1676
      %v1695 = vadd.f32 %v1624, %v1676
      %v1696 = vadd.f32 %v1625, %v1676
      %v1697 = vadd.f32 %v1626, %v1676
      %v1698 = vadd.f32 %v1627, %v1676
      %v1699 = vadd.f32 %v1628, %v1676
      %v1700 = vadd.f32 %v1629, %v1676
      %v1701 = vadd.f32 %v1630, %v1676
      %v1702 = vadd.f32 %v1631, %v1676
      %v1703 = vadd.f32 %v1632, %v1676
      %v1704 = vadd.f32 %v1633, %v1676
      %v1705 = vadd.f32 %v1634, %v1676
      %v1706 = vadd.f32 %v1635, %v1676
      %v1707 = vadd.f32 %v1636, %v1676
      %v1708 = vadd.f32 %v1637, %v1676
      %v1709 = vadd.f32 %v1638, %v1676
      %v1710 = vadd.f32 %v1639, %v1676
      %v1711 = vadd.f32 %v1640, %v1676
      %v1712 = vadd.f32 %v1641, %v1676
      %v1713 = vadd.f32 %v1642, %v1676
      %v1714 = vadd.f32 %v1643, %v1676
      %v1715 = vadd.f32 %v1644, %v1676
      %v1716 = vadd.f32 %v1645, %v1676
      %v1717 = vadd.f32 %v1646, %v1676
      %v1718 = vadd.f32 %v1647, %v1676
      %v1719 = vadd.f32 %v1648, %v1676
      %v1720 = vadd.f32 %v1649, %v1676
      %v1721 = vadd.f32 %v1650, %v1676
      %v1722 = vadd.f32 %v1651, %v1676
      %v1723 = vadd.f32 %v1652, %v1676
      %v1724 = vadd.f32 %v1653, %v1676
      %v1725 = vadd.f32 %v1654, %v1676
      %v1726 = vadd.f32 %v1655, %v1676
      %v1727 = vadd.f32 %v1656, %v1676
      %v1728 = vadd.f32 %v1657, %v1676
      %v1729 = vadd.f32 %v1658, %v1676
      %v1730 = vadd.f32 %v1659, %v1676
      %v1731 = vadd.f32 %v1660, %v1676
      %v1732 = vadd.f32 %v1661, %v1676
      %v1733 = vadd.f32 %v1662, %v1676
      %v1734 = vadd.f32 %v1663, %v1676
      %v1735 = vadd.f32 %v1664, %v1676
      %v1736 = vadd.f32 %v1665, %v1676
      %v1737 = vadd.f32 %v1666, %v1676
      %v1738 = vadd.f32 %v1667, %v1676
      %v1739 = vadd.f32 %v1668, %v1676
      %v1740 = vadd.f32 %v1669, %v1676
      %v1741 = vadd.f32 %v1670, %v1676
      %v1742 = vmax.f32 %v1678, 0.0
      %v1743 = vmax.f32 %v1679, 0.0
      %v1744 = vmax.f32 %v1680, 0.0
      %v1745 = vmax.f32 %v1681, 0.0
      %v1746 = vmax.f32 %v1682, 0.0
      %v1747 = vmax.f32 %v1683, 0.0
      %v1748 = vmax.f32 %v1684, 0.0
      %v1749 = vmax.f32 %v1685, 0.0
      %v1750 = vmax.f32 %v1686, 0.0
      %v1751 = vmax.f32 %v1687, 0.0
      %v1752 = vmax.f32 %v1688, 0.0
      %v1753 = vmax.f32 %v1689, 0.0
      %v1754 = vmax.f32 %v1690, 0.0
      %v1755 = vmax.f32 %v1691, 0.0
      %v1756 = vmax.f32 %v1692, 0.0
      %v1757 = vmax.f32 %v1693, 0.0
      %v1758 = vmax.f32 %v1694, 0.0
      %v1759 = vmax.f32 %v1695, 0.0
      %v1760 = vmax.f32 %v1696, 0.0
      %v1761 = vmax.f32 %v1697, 0.0
      %v1762 = vmax.f32 %v1698, 0.0
      %v1763 = vmax.f32 %v1699, 0.0
      %v1764 = vmax.f32 %v1700, 0.0
      %v1765 = vmax.f32 %v1701, 0.0
      %v1766 = vmax.f32 %v1702, 0.0
      %v1767 = vmax.f32 %v1703, 0.0
      %v1768 = vmax.f32 %v1704, 0.0
      %v1769 = vmax.f32 %v1705, 0.0
      %v1770 = vmax.f32 %v1706, 0.0
      %v1771 = vmax.f32 %v1707, 0.0
      %v1772 = vmax.f32 %v1708, 0.0
      %v1773 = vmax.f32 %v1709, 0.0
      %v1774 = vmax.f32 %v1710, 0.0
      %v1775 = vmax.f32 %v1711, 0.0
      %v1776 = vmax.f32 %v1712, 0.0
      %v1777 = vmax.f32 %v1713, 0.0
      %v1778 = vmax.f32 %v1714, 0.0
      %v1779 = vmax.f32 %v1715, 0.0
      %v1780 = vmax.f32 %v1716, 0.0
      %v1781 = vmax.f32 %v1717, 0.0
      %v1782 = vmax.f32 %v1718, 0.0
      %v1783 = vmax.f32 %v1719, 0.0
      %v1784 = vmax.f32 %v1720, 0.0
      %v1785 = vmax.f32 %v1721, 0.0
      %v1786 = vmax.f32 %v1722, 0.0
      %v1787 = vmax.f32 %v1723, 0.0
      %v1788 = vmax.f32 %v1724, 0.0
      %v1789 = vmax.f32 %v1725, 0.0
      %v1790 = vmax.f32 %v1726, 0.0
      %v1791 = vmax.f32 %v1727, 0.0
      %v1792 = vmax.f32 %v1728, 0.0
      %v1793 = vmax.f32 %v1729, 0.0
      %v1794 = vmax.f32 %v1730, 0.0
      %v1795 = vmax.f32 %v1731, 0.0
      %v1796 = vmax.f32 %v1732, 0.0
      %v1797 = vmax.f32 %v1733, 0.0
      %v1798 = vmax.f32 %v1734, 0.0
      %v1799 = vmax.f32 %v1735, 0.0
      %v1800 = vmax.f32 %v1736, 0.0
      %v1801 = vmax.f32 %v1737, 0.0
      %v1802 = vmax.f32 %v1738, 0.0
      %v1803 = vmax.f32 %v1739, 0.0
      %v1804 = vmax.f32 %v1740, 0.0
      %v1805 = vmax.f32 %v1741, 0.0
      %1806 = vst [vmem:[%s334] sm:$0xff] %v1742
      %1807 = vst [vmem:[%s334 + $0x8] sm:$0xff] %v1743
      %1808 = vst [vmem:[%s334 + $0x10] sm:$0xff] %v1744
      %1809 = vst [vmem:[%s334 + $0x18] sm:$0xff] %v1745
      %1810 = vst [vmem:[%s334 + $0x20] sm:$0xff] %v1746
      %1811 = vst [vmem:[%s334 + $0x28] sm:$0xff] %v1747
      %1812 = vst [vmem:[%s334 + $0x30] sm:$0xff] %v1748
      %1813 = vst [vmem:[%s334 + $0x38] sm:$0xff] %v1749
      %1814 = vst [vmem:[%s334 + $0x40] sm:$0xff] %v1750
      %1815 = vst [vmem:[%s334 + $0x48] sm:$0xff] %v1751
      %1816 = vst [vmem:[%s334 + $0x50] sm:$0xff] %v1752
      %1817 = vst [vmem:[%s334 + $0x58] sm:$0xff] %v1753
      %1818 = vst [vmem:[%s334 + $0x60] sm:$0xff] %v1754
      %1819 = vst [vmem:[%s334 + $0x68] sm:$0xff] %v1755
      %1820 = vst [vmem:[%s334 + $0x70] sm:$0xff] %v1756
      %1821 = vst [vmem:[%s334 + $0x78] sm:$0xff] %v1757
      %1822 = vst [vmem:[%s334 + $0x80] sm:$0xff] %v1758
      %1823 = vst [vmem:[%s334 + $0x88] sm:$0xff] %v1759
      %1824 = vst [vmem:[%s334 + $0x90] sm:$0xff] %v1760
      %1825 = vst [vmem:[%s334 + $0x98] sm:$0xff] %v1761
      %1826 = vst [vmem:[%s334 + $0xa0] sm:$0xff] %v1762
      %1827 = vst [vmem:[%s334 + $0xa8] sm:$0xff] %v1763
      %1828 = vst [vmem:[%s334 + $0xb0] sm:$0xff] %v1764
      %1829 = vst [vmem:[%s334 + $0xb8] sm:$0xff] %v1765
      %1830 = vst [vmem:[%s334 + $0xc0] sm:$0xff] %v1766
      %1831 = vst [vmem:[%s334 + $0xc8] sm:$0xff] %v1767
      %1832 = vst [vmem:[%s334 + $0xd0] sm:$0xff] %v1768
      %1833 = vst [vmem:[%s334 + $0xd8] sm:$0xff] %v1769
      %1834 = vst [vmem:[%s334 + $0xe0] sm:$0xff] %v1770
      %1835 = vst [vmem:[%s334 + $0xe8] sm:$0xff] %v1771
      %1836 = vst [vmem:[%s334 + $0xf0] sm:$0xff] %v1772
      %1837 = vst [vmem:[%s334 + $0xf8] sm:$0xff] %v1773
      %1838 = vst [vmem:[%s334 + $0x100] sm:$0xff] %v1774
      %1839 = vst [vmem:[%s334 + $0x108] sm:$0xff] %v1775
      %1840 = vst [vmem:[%s334 + $0x110] sm:$0xff] %v1776
      %1841 = vst [vmem:[%s334 + $0x118] sm:$0xff] %v1777
      %1842 = vst [vmem:[%s334 + $0x120] sm:$0xff] %v1778
      %1843 = vst [vmem:[%s334 + $0x128] sm:$0xff] %v1779
      %1844 = vst [vmem:[%s334 + $0x130] sm:$0xff] %v1780
      %1845 = vst [vmem:[%s334 + $0x138] sm:$0xff] %v1781
      %1846 = vst [vmem:[%s334 + $0x140] sm:$0xff] %v1782
      %1847 = vst [vmem:[%s334 + $0x148] sm:$0xff] %v1783
      %1848 = vst [vmem:[%s334 + $0x150] sm:$0xff] %v1784
      %1849 = vst [vmem:[%s334 + $0x158] sm:$0xff] %v1785
      %1850 = vst [vmem:[%s334 + $0x160] sm:$0xff] %v1786
      %1851 = vst [vmem:[%s334 + $0x168] sm:$0xff] %v1787
      %1852 = vst [vmem:[%s334 + $0x170] sm:$0xff] %v1788
      %1853 = vst [vmem:[%s334 + $0x178] sm:$0xff] %v1789
      %1854 = vst [vmem:[%s334 + $0x180] sm:$0xff] %v1790
      %1855 = vst [vmem:[%s334 + $0x188] sm:$0xff] %v1791
      %1856 = vst [vmem:[%s334 + $0x190] sm:$0xff] %v1792
      %1857 = vst [vmem:[%s334 + $0x198] sm:$0xff] %v1793
      %1858 = vst [vmem:[%s334 + $0x1a0] sm:$0xff] %v1794
      %1859 = vst [vmem:[%s334 + $0x1a8] sm:$0xff] %v1795
      %1860 = vst [vmem:[%s334 + $0x1b0] sm:$0xff] %v1796
      %1861 = vst [vmem:[%s334 + $0x1b8] sm:$0xff] %v1797
      %1862 = vst [vmem:[%s334 + $0x1c0] sm:$0xff] %v1798
      %1863 = vst [vmem:[%s334 + $0x1c8] sm:$0xff] %v1799
      %1864 = vst [vmem:[%s334 + $0x1d0] sm:$0xff] %v1800
      %1865 = vst [vmem:[%s334 + $0x1d8] sm:$0xff] %v1801
      %1866 = vst [vmem:[%s334 + $0x1e0] sm:$0xff] %v1802
      %1867 = vst [vmem:[%s334 + $0x1e8] sm:$0xff] %v1803
      %1868 = vst [vmem:[%s334 + $0x1f0] sm:$0xff] %v1804
      %1869 = vst [vmem:[%s334 + $0x1f8] sm:$0xff] %v1805
      %s1870 = smul.u32 64, %s20
      %p1871 = scmp.lt.s32.totalorder %s1870, 127
      %s1872 = scalar_select %p1871, %s1870, 127
      %s1873 = smul.addr %s1872, 8
      %s1874 = scalar_lea.vmem %s9, %s1873
      // Predicated region
      $region57: #{decoder_forward.5} parent=55 // pred_check
        %p1875 = pneg %p232
      $region58: #{decoder_forward.5} parent=55 // pred_check_branch
        %1877 = sbr.rel (%p1875) target = $region60
      $region59: #{decoder_forward.5} parent=55 // pred_region
        %s1878 = smul.u32 64, %s20
      $region60: #{decoder_forward.5} parent=55 // pred_fallthru
        _
    $region56: #{decoder_forward.5} parent=5 // pred_fallthru
      _
    %p1879 = scmp.le.s32.totalorder 2, %s15
    // Predicated region
    $region61: #{decoder_forward.5} parent=5 // pred_check
      %p1880 = pneg %p1879
    $region62: #{decoder_forward.5} parent=5 // pred_check_branch
      %1882 = sbr.rel (%p1880) target = $region64
    $region63: #{decoder_forward.5} parent=5 // pred_region
      %s1883 = ssub.s32 %s15, 2
      // Predicated region
      $region65: #{decoder_forward.5} parent=63 // pred_check
        %p1884 = pneg %p238
      $region66: #{decoder_forward.5} parent=63 // pred_check_branch
        %1886 = sbr.rel (%p1884) target = $region68
      $region67: #{decoder_forward.5} parent=63 // pred_region
        %s1887 = smul.u32 64, %s21
        %p1888 = scmp.lt.s32.totalorder %s1887, 127
        %s1889 = scalar_select %p1888, %s1887, 127
        %s1890 = smul.addr %s1889, 8
        %s1891 = scalar_lea.vmem %s9, %s1890
      $region68: #{decoder_forward.5} parent=63 // pred_fallthru
        _
    $region64: #{decoder_forward.5} parent=5 // pred_fallthru
      _
  $region6: #{decoder_forward.5} parent=0 // loop_footer
    %s19 = sadd.s32 1, %s15
  $region7: #{decoder_forward.5} parent=0 // loop_footer_branch
    %14 = sbr.rel target = $region3
  $region8: #{decoder_forward.5} parent=0 // loop_exit
    _

</llo_original>
